<compile_context>
chip_gen: v7x
topology: tpu7x:2x2x1
jax: 0.10.0
libtpu: 0.0.40
codegen_flags: <defaults>
</compile_context>

<pallas_src>
import functools

import jax
import jax.numpy as jnp
from jax.experimental import pallas as pl
from jax.experimental.pallas import tpu as pltpu


def _round_up(n, m):
    return ((n + m - 1) // m) * m


# ------------------------------ Pallas kernel --------------------------------
def _gru_recurrence_kernel(feat_ref,                     # (T, B, D_pad) f32 time-major features
                           wih0_ref, bi0_ref, bhn0_ref,  # layer-0 input proj + biases
                           wf0_ref,                      # (H, 6H) fused [W_hh0 | W_ih1] (bf16)
                           whh1_ref,                     # (H, 3H) layer-1 recurrent (bf16)
                           bi1_ref, bhn1_ref,            # layer-1 biases
                           out_ref):                     # (B, H) last hidden of layer 1
    T = feat_ref.shape[0]
    B, H = out_ref.shape
    G = 3 * H
    wdt = wf0_ref.dtype                                  # recurrent-matmul weight dtype

    # Hoist loop-invariant bias broadcasts (JAX does not CSE broadcast_in_dim;
    # doing these inside the unrolled loop would re-materialize them).
    bi0 = jnp.broadcast_to(bi0_ref[...], (B, G))
    bi1 = jnp.broadcast_to(bi1_ref[...], (B, G))
    bhn0 = jnp.broadcast_to(bhn0_ref[...], (B, H))
    bhn1 = jnp.broadcast_to(bhn1_ref[...], (B, H))

    def input_gates0(t):
        # Layer-0 input projection for step t.  Not on the recurrent dependency
        # chain (depends only on feat[t]), so the scheduler can run it ahead.
        return jnp.dot(feat_ref[t], wih0_ref[...],
                       preferred_element_type=jnp.float32) + bi0

    def gates(gi, gh, h_prev, bhn):
        # gi: (B, 3H) input gates (r/z biases folded), gh: (B, 3H) recurrent gates.
        r = jax.nn.sigmoid(gi[:, 0:H] + gh[:, 0:H])
        z = jax.nn.sigmoid(gi[:, H:2 * H] + gh[:, H:2 * H])
        n = jnp.tanh(gi[:, 2 * H:G] + r * (gh[:, 2 * H:G] + bhn))
        return (1.0 - z) * n + z * h_prev

    # Prologue: layer-0 step 0 (initial hidden state is zero -> gh0 == 0).
    zeros_h = jnp.zeros((B, H), jnp.float32)
    h0 = gates(input_gates0(0), jnp.zeros((B, G), jnp.float32), zeros_h, bhn0)
    h1 = zeros_h

    # Wavefront: iteration t runs layer-1 for step t-1 and layer-0 for step t.
    # Both depend only on the carry, so their matmuls overlap.
    def step(t, carry):
        h0_prev, h1_prev = carry
        # Single fused matmul with LHS h0_prev: [gh0 | gi1_lin].
        fused = jnp.dot(h0_prev.astype(wdt), wf0_ref[...],
                        preferred_element_type=jnp.float32)      # (B, 6H) f32
        gh0 = fused[:, 0:G]
        gi1 = fused[:, G:2 * G] + bi1
        # Layer 1, step t-1.
        gh1 = jnp.dot(h1_prev.astype(wdt), whh1_ref[...],
                      preferred_element_type=jnp.float32)
        h1_new = gates(gi1, gh1, h1_prev, bhn1)
        # Layer 0, step t.
        h0_new = gates(input_gates0(t), gh0, h0_prev, bhn0)
        return (h0_new, h1_new)

    h0_last, h1_last = jax.lax.fori_loop(1, T, step, (h0, h1), unroll=True)

    # Epilogue: layer-1 for the final timestep.
    fused = jnp.dot(h0_last.astype(wdt), wf0_ref[...],
                    preferred_element_type=jnp.float32)
    gi1 = fused[:, G:2 * G] + bi1
    gh1 = jnp.dot(h1_last.astype(wdt), whh1_ref[...],
                  preferred_element_type=jnp.float32)
    out_ref[...] = gates(gi1, gh1, h1_last, bhn1).astype(out_ref.dtype)


def _run_gru_kernel(feat_tm, packed, B_pad, H):
    """feat_tm: (T, B_pad, D_pad) time-major, batch/feature padded features."""
    vmem = pl.BlockSpec(memory_space=pltpu.MemorySpace.VMEM)
    return pl.pallas_call(
        _gru_recurrence_kernel,
        out_shape=jax.ShapeDtypeStruct((B_pad, H), jnp.float32),
        in_specs=[vmem] * 8,
        out_specs=vmem,
    )(feat_tm,
      packed["wih0"], packed["bi0"], packed["bhn0"],
      packed["wf0"], packed["whh1"], packed["bi1"], packed["bhn1"])


# ------------------------------ model wrapper ---------------------------------
@functools.partial(jax.jit, static_argnames=("d_feat", "hidden_size"))
def gru_model_forward(x, packed, *, d_feat, hidden_size):
    """Reproduces GRUModel.forward. x: (B, d_feat*T + 1) float32."""
    B = x.shape[0]
    H = hidden_size
    feature = x[:, :-1]
    xt = x[:, -1:]                                        # (B, 1)
    feature = feature.reshape(B, d_feat, -1)              # (B, D, T)
    feat_tm = jnp.transpose(feature, (2, 0, 1))           # (T, B, D) time-major

    # Pad batch to a full sublane tile and d_feat to an aligned contraction dim;
    # zero padding is inert and padded batch rows are sliced away below.
    B_pad = _round_up(max(B, 8), 8)
    D_pad = _round_up(d_feat, 8)
    feat_tm = jnp.pad(feat_tm, ((0, 0), (0, B_pad - B), (0, D_pad - d_feat)))

    h_last = _run_gru_kernel(feat_tm, packed, B_pad, H)   # (B_pad, H)
    return jnp.concatenate([h_last[:B], xt], axis=1)      # (B, H+1)


# ------------------- deterministic torch-layout parameter init ----------------
def init_gru_params(key, d_feat, hidden_size):
    """torch.nn.GRU-layout params, uniform(-1/sqrt(H), 1/sqrt(H))."""
    H = hidden_size
    k = 1.0 / jnp.sqrt(jnp.float32(H))
    keys = jax.random.split(key, 8)

    def u(rk, shape):
        return jax.random.uniform(rk, shape, jnp.float32, -k, k)

    return {
        "weight_ih_l0": u(keys[0], (3 * H, d_feat)),
        "weight_hh_l0": u(keys[1], (3 * H, H)),
        "bias_ih_l0":   u(keys[2], (3 * H,)),
        "bias_hh_l0":   u(keys[3], (3 * H,)),
        "weight_ih_l1": u(keys[4], (3 * H, H)),
        "weight_hh_l1": u(keys[5], (3 * H, H)),
        "bias_ih_l1":   u(keys[6], (3 * H,)),
        "bias_hh_l1":   u(keys[7], (3 * H,)),
    }


def pack_gru_params(tp, hidden_size, weight_dtype=jnp.bfloat16):
    """Pack torch-layout params into the gate-fused layout the kernel uses.

    weight_dtype applies to the per-step recurrent matrices (the ones streamed
    into the MXU every timestep); biases and the tiny layer-0 input projection
    stay f32.
    """
    H = hidden_size

    def fold_biases(bih, bhh):
        # Fold r/z biases host-side; keep the n-gate hidden bias separate
        # (torch: n = tanh(gi_n + r * (W_hn h + b_hn))).
        bi = jnp.concatenate([bih[0:H] + bhh[0:H],
                              bih[H:2 * H] + bhh[H:2 * H],
                              bih[2 * H:3 * H]]).reshape(1, 3 * H)
        bhn = bhh[2 * H:3 * H].reshape(1, H)
        return bi, bhn

    wih0 = jnp.transpose(tp["weight_ih_l0"])              # (D, 3H), gates r|z|n
    whh0 = jnp.transpose(tp["weight_hh_l0"])              # (H, 3H)
    wih1 = jnp.transpose(tp["weight_ih_l1"])              # (H, 3H)
    whh1 = jnp.transpose(tp["weight_hh_l1"])              # (H, 3H)
    bi0, bhn0 = fold_biases(tp["bias_ih_l0"], tp["bias_hh_l0"])
    bi1, bhn1 = fold_biases(tp["bias_ih_l1"], tp["bias_hh_l1"])

    # Pad the layer-0 input projection contraction dim to a multiple of 8
    # (must match the feature padding in gru_model_forward).
    D = wih0.shape[0]
    D_pad = _round_up(D, 8)
    wih0 = jnp.pad(wih0, ((0, D_pad - D), (0, 0)))

    # Fused RHS for the two matmuls sharing LHS h0_prev: [W_hh0 | W_ih1].
    wf0 = jnp.concatenate([whh0, wih1], axis=1).astype(weight_dtype)  # (H, 6H)

    return {"wih0": wih0, "bi0": bi0, "bhn0": bhn0,
            "wf0": wf0, "whh1": whh1.astype(weight_dtype),
            "bi1": bi1, "bhn1": bhn1}


# ------------------------------ pure-JAX reference ----------------------------
def gru_model_reference(x, tp, *, d_feat, hidden_size):
    B = x.shape[0]
    H = hidden_size
    feature = x[:, :-1]
    xt = x[:, -1:]
    feature = feature.reshape(B, d_feat, -1)
    feature = jnp.transpose(feature, (0, 2, 1))           # (B, T, D)
    T = feature.shape[1]

    def cell(xv, h, wih, whh, bih, bhh):
        gi = xv @ wih.T + bih
        gh = h @ whh.T + bhh
        r = jax.nn.sigmoid(gi[:, 0:H] + gh[:, 0:H])
        z = jax.nn.sigmoid(gi[:, H:2 * H] + gh[:, H:2 * H])
        n = jnp.tanh(gi[:, 2 * H:3 * H] + r * gh[:, 2 * H:3 * H])
        return (1.0 - z) * n + z * h

    h0 = jnp.zeros((B, H), jnp.float32)
    h1 = jnp.zeros((B, H), jnp.float32)
    for t in range(T):
        h0 = cell(feature[:, t, :], h0, tp["weight_ih_l0"], tp["weight_hh_l0"],
                  tp["bias_ih_l0"], tp["bias_hh_l0"])
        h1 = cell(h0, h1, tp["weight_ih_l1"], tp["weight_hh_l1"],
                  tp["bias_ih_l1"], tp["bias_hh_l1"])
    return jnp.concatenate([h1, xt], axis=1)


# ----------------------------------- main --------------------------------------
if __name__ == "__main__":
    # hidden_size=128 / d_feat=6 are the module defaults; B and T kept small.
    B, D_FEAT, T, HIDDEN = 2, 6, 8, 128

    key = jax.random.PRNGKey(0)
    k_x, k_p = jax.random.split(key)
    x = jax.random.normal(k_x, (B, D_FEAT * T + 1), jnp.float32)

    torch_params = init_gru_params(k_p, D_FEAT, HIDDEN)
    ref = gru_model_reference(x, torch_params, d_feat=D_FEAT, hidden_size=HIDDEN)

    # 1) Exact-structure check with f32 weights (tight tolerance).
    packed_f32 = pack_gru_params(torch_params, HIDDEN, weight_dtype=jnp.float32)
    out_f32 = gru_model_forward(x, packed_f32, d_feat=D_FEAT, hidden_size=HIDDEN)
    out_f32 = jax.block_until_ready(out_f32)
    assert out_f32.shape == (B, HIDDEN + 1), out_f32.shape
    err_f32 = float(jnp.max(jnp.abs(out_f32 - ref)))
    assert jnp.allclose(out_f32, ref, atol=1e-4, rtol=1e-4), \
        f"f32 kernel mismatch vs reference (max_err={err_f32})"

    # 2) Performance configuration: bf16 recurrent weights, f32 accumulation
    #    and f32 elementwise math (looser tolerance from the bf16 weights).
    packed_bf16 = pack_gru_params(torch_params, HIDDEN, weight_dtype=jnp.bfloat16)
    out_bf16 = gru_model_forward(x, packed_bf16, d_feat=D_FEAT, hidden_size=HIDDEN)
    out_bf16 = jax.block_until_ready(out_bf16)
    assert out_bf16.shape == (B, HIDDEN + 1), out_bf16.shape
    err_bf16 = float(jnp.max(jnp.abs(out_bf16 - ref)))
    assert jnp.allclose(out_bf16, ref, atol=2e-2, rtol=2e-2), \
        f"bf16 kernel mismatch vs reference (max_err={err_bf16})"

    print("KERNEL_OK")
</pallas_src>

<mosaic_0001>
module attributes {stable_mosaic.version = 11 : i64} {
  func.func @_gru_recurrence_kernel(%arg0: memref<8x8x8xf32, #tpu.memory_space<vmem>>, %arg1: memref<8x384xf32, #tpu.memory_space<vmem>>, %arg2: memref<1x384xf32, #tpu.memory_space<vmem>>, %arg3: memref<1x128xf32, #tpu.memory_space<vmem>>, %arg4: memref<128x768xf32, #tpu.memory_space<vmem>>, %arg5: memref<128x384xf32, #tpu.memory_space<vmem>>, %arg6: memref<1x384xf32, #tpu.memory_space<vmem>>, %arg7: memref<1x128xf32, #tpu.memory_space<vmem>>, %arg8: memref<8x128xf32, #tpu.memory_space<vmem>>) attributes {dimension_semantics = [], scalar_prefetch = 0 : i64, scratch_operands = 0 : i64, tpu.core_type = #tpu.core_type<tc>} {
    %c0 = arith.constant 0 : index
    %c0_0 = arith.constant 0 : index
    %0 = vector.load %arg2[%c0, %c0_0] : memref<1x384xf32, #tpu.memory_space<vmem>>, vector<1x384xf32>
    %1 = vector.shape_cast %0 : vector<1x384xf32> to vector<1x384xf32>
    %2 = vector.broadcast %1 : vector<1x384xf32> to vector<8x384xf32>
    %c0_1 = arith.constant 0 : index
    %c0_2 = arith.constant 0 : index
    %3 = vector.load %arg6[%c0_1, %c0_2] : memref<1x384xf32, #tpu.memory_space<vmem>>, vector<1x384xf32>
    %4 = vector.shape_cast %3 : vector<1x384xf32> to vector<1x384xf32>
    %5 = vector.broadcast %4 : vector<1x384xf32> to vector<8x384xf32>
    %c0_3 = arith.constant 0 : index
    %c0_4 = arith.constant 0 : index
    %6 = vector.load %arg3[%c0_3, %c0_4] : memref<1x128xf32, #tpu.memory_space<vmem>>, vector<1x128xf32>
    %7 = vector.shape_cast %6 : vector<1x128xf32> to vector<1x128xf32>
    %8 = vector.broadcast %7 : vector<1x128xf32> to vector<8x128xf32>
    %c0_5 = arith.constant 0 : index
    %c0_6 = arith.constant 0 : index
    %9 = vector.load %arg7[%c0_5, %c0_6] : memref<1x128xf32, #tpu.memory_space<vmem>>, vector<1x128xf32>
    %10 = vector.shape_cast %9 : vector<1x128xf32> to vector<1x128xf32>
    %11 = vector.broadcast %10 : vector<1x128xf32> to vector<8x128xf32>
    %cst = arith.constant 0.000000e+00 : f32
    %12 = vector.broadcast %cst : f32 to vector<8x128xf32>
    %c0_7 = arith.constant 0 : index
    %c0_8 = arith.constant 0 : index
    %c0_9 = arith.constant 0 : index
    %13 = vector.load %arg0[%c0_7, %c0_8, %c0_9] : memref<8x8x8xf32, #tpu.memory_space<vmem>>, vector<1x8x8xf32>
    %14 = vector.shape_cast %13 : vector<1x8x8xf32> to vector<8x8xf32>
    %c0_10 = arith.constant 0 : index
    %c0_11 = arith.constant 0 : index
    %15 = vector.load %arg1[%c0_10, %c0_11] : memref<8x384xf32, #tpu.memory_space<vmem>>, vector<8x384xf32>
    %cst_12 = arith.constant dense<0.000000e+00> : vector<8x384xf32>
    %16 = tpu.matmul %14, %15, %cst_12 {dimension_numbers = #tpu.dot_dimension_numbers<[1], [0], [0], [1], [0, 0, 1, 1], [], []>} : vector<8x8xf32>, vector<8x384xf32>, vector<8x384xf32> -> vector<8x384xf32>
    %17 = arith.addf %16, %2 : vector<8x384xf32>
    %cst_13 = arith.constant 0.000000e+00 : f32
    %18 = vector.broadcast %cst_13 : f32 to vector<8x384xf32>
    %19 = vector.extract_strided_slice %17 {offsets = [0, 0], sizes = [8, 128], strides = [1, 1]} : vector<8x384xf32> to vector<8x128xf32>
    %20 = vector.extract_strided_slice %18 {offsets = [0, 0], sizes = [8, 128], strides = [1, 1]} : vector<8x384xf32> to vector<8x128xf32>
    %21 = arith.addf %19, %20 : vector<8x128xf32>
    %22 = arith.negf %21 : vector<8x128xf32>
    %23 = math.exp %22 : vector<8x128xf32>
    %cst_14 = arith.constant 1.000000e+00 : f32
    %24 = vector.broadcast %cst_14 : f32 to vector<8x128xf32>
    %25 = arith.addf %24, %23 : vector<8x128xf32>
    %26 = arith.divf %24, %25 : vector<8x128xf32>
    %27 = vector.extract_strided_slice %17 {offsets = [0, 128], sizes = [8, 128], strides = [1, 1]} : vector<8x384xf32> to vector<8x128xf32>
    %28 = vector.extract_strided_slice %18 {offsets = [0, 128], sizes = [8, 128], strides = [1, 1]} : vector<8x384xf32> to vector<8x128xf32>
    %29 = arith.addf %27, %28 : vector<8x128xf32>
    %30 = arith.negf %29 : vector<8x128xf32>
    %31 = math.exp %30 : vector<8x128xf32>
    %cst_15 = arith.constant 1.000000e+00 : f32
    %32 = vector.broadcast %cst_15 : f32 to vector<8x128xf32>
    %33 = arith.addf %32, %31 : vector<8x128xf32>
    %34 = arith.divf %32, %33 : vector<8x128xf32>
    %35 = vector.extract_strided_slice %17 {offsets = [0, 256], sizes = [8, 128], strides = [1, 1]} : vector<8x384xf32> to vector<8x128xf32>
    %36 = vector.extract_strided_slice %18 {offsets = [0, 256], sizes = [8, 128], strides = [1, 1]} : vector<8x384xf32> to vector<8x128xf32>
    %37 = arith.addf %36, %8 : vector<8x128xf32>
    %38 = arith.mulf %26, %37 : vector<8x128xf32>
    %39 = arith.addf %35, %38 : vector<8x128xf32>
    %40 = math.tanh %39 : vector<8x128xf32>
    %cst_16 = arith.constant 1.000000e+00 : f32
    %41 = vector.broadcast %cst_16 : f32 to vector<8x128xf32>
    %42 = arith.subf %41, %34 : vector<8x128xf32>
    %43 = arith.mulf %42, %40 : vector<8x128xf32>
    %44 = arith.mulf %34, %12 : vector<8x128xf32>
    %45 = arith.addf %43, %44 : vector<8x128xf32>
    %c1_i32 = arith.constant 1 : i32
    %c0_17 = arith.constant 0 : index
    %c0_18 = arith.constant 0 : index
    %46 = vector.load %arg4[%c0_17, %c0_18] : memref<128x768xf32, #tpu.memory_space<vmem>>, vector<128x768xf32>
    %cst_19 = arith.constant dense<0.000000e+00> : vector<8x768xf32>
    %47 = tpu.matmul %45, %46, %cst_19 {dimension_numbers = #tpu.dot_dimension_numbers<[1], [0], [0], [1], [0, 0, 1, 1], [], []>} : vector<8x128xf32>, vector<128x768xf32>, vector<8x768xf32> -> vector<8x768xf32>
    %48 = vector.extract_strided_slice %47 {offsets = [0, 0], sizes = [8, 384], strides = [1, 1]} : vector<8x768xf32> to vector<8x384xf32>
    %49 = vector.extract_strided_slice %47 {offsets = [0, 384], sizes = [8, 384], strides = [1, 1]} : vector<8x768xf32> to vector<8x384xf32>
    %50 = arith.addf %49, %5 : vector<8x384xf32>
    %c0_20 = arith.constant 0 : index
    %c0_21 = arith.constant 0 : index
    %51 = vector.load %arg5[%c0_20, %c0_21] : memref<128x384xf32, #tpu.memory_space<vmem>>, vector<128x384xf32>
    %cst_22 = arith.constant dense<0.000000e+00> : vector<8x384xf32>
    %52 = tpu.matmul %12, %51, %cst_22 {dimension_numbers = #tpu.dot_dimension_numbers<[1], [0], [0], [1], [0, 0, 1, 1], [], []>} : vector<8x128xf32>, vector<128x384xf32>, vector<8x384xf32> -> vector<8x384xf32>
    %53 = vector.extract_strided_slice %50 {offsets = [0, 0], sizes = [8, 128], strides = [1, 1]} : vector<8x384xf32> to vector<8x128xf32>
    %54 = vector.extract_strided_slice %52 {offsets = [0, 0], sizes = [8, 128], strides = [1, 1]} : vector<8x384xf32> to vector<8x128xf32>
    %55 = arith.addf %53, %54 : vector<8x128xf32>
    %56 = arith.negf %55 : vector<8x128xf32>
    %57 = math.exp %56 : vector<8x128xf32>
    %cst_23 = arith.constant 1.000000e+00 : f32
    %58 = vector.broadcast %cst_23 : f32 to vector<8x128xf32>
    %59 = arith.addf %58, %57 : vector<8x128xf32>
    %60 = arith.divf %58, %59 : vector<8x128xf32>
    %61 = vector.extract_strided_slice %50 {offsets = [0, 128], sizes = [8, 128], strides = [1, 1]} : vector<8x384xf32> to vector<8x128xf32>
    %62 = vector.extract_strided_slice %52 {offsets = [0, 128], sizes = [8, 128], strides = [1, 1]} : vector<8x384xf32> to vector<8x128xf32>
    %63 = arith.addf %61, %62 : vector<8x128xf32>
    %64 = arith.negf %63 : vector<8x128xf32>
    %65 = math.exp %64 : vector<8x128xf32>
    %cst_24 = arith.constant 1.000000e+00 : f32
    %66 = vector.broadcast %cst_24 : f32 to vector<8x128xf32>
    %67 = arith.addf %66, %65 : vector<8x128xf32>
    %68 = arith.divf %66, %67 : vector<8x128xf32>
    %69 = vector.extract_strided_slice %50 {offsets = [0, 256], sizes = [8, 128], strides = [1, 1]} : vector<8x384xf32> to vector<8x128xf32>
    %70 = vector.extract_strided_slice %52 {offsets = [0, 256], sizes = [8, 128], strides = [1, 1]} : vector<8x384xf32> to vector<8x128xf32>
    %71 = arith.addf %70, %11 : vector<8x128xf32>
    %72 = arith.mulf %60, %71 : vector<8x128xf32>
    %73 = arith.addf %69, %72 : vector<8x128xf32>
    %74 = math.tanh %73 : vector<8x128xf32>
    %cst_25 = arith.constant 1.000000e+00 : f32
    %75 = vector.broadcast %cst_25 : f32 to vector<8x128xf32>
    %76 = arith.subf %75, %68 : vector<8x128xf32>
    %77 = arith.mulf %76, %74 : vector<8x128xf32>
    %78 = arith.mulf %68, %12 : vector<8x128xf32>
    %79 = arith.addf %77, %78 : vector<8x128xf32>
    %80 = arith.index_cast %c1_i32 : i32 to index
    %c0_26 = arith.constant 0 : index
    %c0_27 = arith.constant 0 : index
    %81 = vector.load %arg0[%80, %c0_26, %c0_27] : memref<8x8x8xf32, #tpu.memory_space<vmem>>, vector<1x8x8xf32>
    %82 = vector.shape_cast %81 : vector<1x8x8xf32> to vector<8x8xf32>
    %c0_28 = arith.constant 0 : index
    %c0_29 = arith.constant 0 : index
    %83 = vector.load %arg1[%c0_28, %c0_29] : memref<8x384xf32, #tpu.memory_space<vmem>>, vector<8x384xf32>
    %cst_30 = arith.constant dense<0.000000e+00> : vector<8x384xf32>
    %84 = tpu.matmul %82, %83, %cst_30 {dimension_numbers = #tpu.dot_dimension_numbers<[1], [0], [0], [1], [0, 0, 1, 1], [], []>} : vector<8x8xf32>, vector<8x384xf32>, vector<8x384xf32> -> vector<8x384xf32>
    %85 = arith.addf %84, %2 : vector<8x384xf32>
    %86 = vector.extract_strided_slice %85 {offsets = [0, 0], sizes = [8, 128], strides = [1, 1]} : vector<8x384xf32> to vector<8x128xf32>
    %87 = vector.extract_strided_slice %48 {offsets = [0, 0], sizes = [8, 128], strides = [1, 1]} : vector<8x384xf32> to vector<8x128xf32>
    %88 = arith.addf %86, %87 : vector<8x128xf32>
    %89 = arith.negf %88 : vector<8x128xf32>
    %90 = math.exp %89 : vector<8x128xf32>
    %cst_31 = arith.constant 1.000000e+00 : f32
    %91 = vector.broadcast %cst_31 : f32 to vector<8x128xf32>
    %92 = arith.addf %91, %90 : vector<8x128xf32>
    %93 = arith.divf %91, %92 : vector<8x128xf32>
    %94 = vector.extract_strided_slice %85 {offsets = [0, 128], sizes = [8, 128], strides = [1, 1]} : vector<8x384xf32> to vector<8x128xf32>
    %95 = vector.extract_strided_slice %48 {offsets = [0, 128], sizes = [8, 128], strides = [1, 1]} : vector<8x384xf32> to vector<8x128xf32>
    %96 = arith.addf %94, %95 : vector<8x128xf32>
    %97 = arith.negf %96 : vector<8x128xf32>
    %98 = math.exp %97 : vector<8x128xf32>
    %cst_32 = arith.constant 1.000000e+00 : f32
    %99 = vector.broadcast %cst_32 : f32 to vector<8x128xf32>
    %100 = arith.addf %99, %98 : vector<8x128xf32>
    %101 = arith.divf %99, %100 : vector<8x128xf32>
    %102 = vector.extract_strided_slice %85 {offsets = [0, 256], sizes = [8, 128], strides = [1, 1]} : vector<8x384xf32> to vector<8x128xf32>
    %103 = vector.extract_strided_slice %48 {offsets = [0, 256], sizes = [8, 128], strides = [1, 1]} : vector<8x384xf32> to vector<8x128xf32>
    %104 = arith.addf %103, %8 : vector<8x128xf32>
    %105 = arith.mulf %93, %104 : vector<8x128xf32>
    %106 = arith.addf %102, %105 : vector<8x128xf32>
    %107 = math.tanh %106 : vector<8x128xf32>
    %cst_33 = arith.constant 1.000000e+00 : f32
    %108 = vector.broadcast %cst_33 : f32 to vector<8x128xf32>
    %109 = arith.subf %108, %101 : vector<8x128xf32>
    %110 = arith.mulf %109, %107 : vector<8x128xf32>
    %111 = arith.mulf %101, %45 : vector<8x128xf32>
    %112 = arith.addf %110, %111 : vector<8x128xf32>
    %c2_i32 = arith.constant 2 : i32
    %c0_34 = arith.constant 0 : index
    %c0_35 = arith.constant 0 : index
    %113 = vector.load %arg4[%c0_34, %c0_35] : memref<128x768xf32, #tpu.memory_space<vmem>>, vector<128x768xf32>
    %cst_36 = arith.constant dense<0.000000e+00> : vector<8x768xf32>
    %114 = tpu.matmul %112, %113, %cst_36 {dimension_numbers = #tpu.dot_dimension_numbers<[1], [0], [0], [1], [0, 0, 1, 1], [], []>} : vector<8x128xf32>, vector<128x768xf32>, vector<8x768xf32> -> vector<8x768xf32>
    %115 = vector.extract_strided_slice %114 {offsets = [0, 0], sizes = [8, 384], strides = [1, 1]} : vector<8x768xf32> to vector<8x384xf32>
    %116 = vector.extract_strided_slice %114 {offsets = [0, 384], sizes = [8, 384], strides = [1, 1]} : vector<8x768xf32> to vector<8x384xf32>
    %117 = arith.addf %116, %5 : vector<8x384xf32>
    %c0_37 = arith.constant 0 : index
    %c0_38 = arith.constant 0 : index
    %118 = vector.load %arg5[%c0_37, %c0_38] : memref<128x384xf32, #tpu.memory_space<vmem>>, vector<128x384xf32>
    %cst_39 = arith.constant dense<0.000000e+00> : vector<8x384xf32>
    %119 = tpu.matmul %79, %118, %cst_39 {dimension_numbers = #tpu.dot_dimension_numbers<[1], [0], [0], [1], [0, 0, 1, 1], [], []>} : vector<8x128xf32>, vector<128x384xf32>, vector<8x384xf32> -> vector<8x384xf32>
    %120 = vector.extract_strided_slice %117 {offsets = [0, 0], sizes = [8, 128], strides = [1, 1]} : vector<8x384xf32> to vector<8x128xf32>
    %121 = vector.extract_strided_slice %119 {offsets = [0, 0], sizes = [8, 128], strides = [1, 1]} : vector<8x384xf32> to vector<8x128xf32>
    %122 = arith.addf %120, %121 : vector<8x128xf32>
    %123 = arith.negf %122 : vector<8x128xf32>
    %124 = math.exp %123 : vector<8x128xf32>
    %cst_40 = arith.constant 1.000000e+00 : f32
    %125 = vector.broadcast %cst_40 : f32 to vector<8x128xf32>
    %126 = arith.addf %125, %124 : vector<8x128xf32>
    %127 = arith.divf %125, %126 : vector<8x128xf32>
    %128 = vector.extract_strided_slice %117 {offsets = [0, 128], sizes = [8, 128], strides = [1, 1]} : vector<8x384xf32> to vector<8x128xf32>
    %129 = vector.extract_strided_slice %119 {offsets = [0, 128], sizes = [8, 128], strides = [1, 1]} : vector<8x384xf32> to vector<8x128xf32>
    %130 = arith.addf %128, %129 : vector<8x128xf32>
    %131 = arith.negf %130 : vector<8x128xf32>
    %132 = math.exp %131 : vector<8x128xf32>
    %cst_41 = arith.constant 1.000000e+00 : f32
    %133 = vector.broadcast %cst_41 : f32 to vector<8x128xf32>
    %134 = arith.addf %133, %132 : vector<8x128xf32>
    %135 = arith.divf %133, %134 : vector<8x128xf32>
    %136 = vector.extract_strided_slice %117 {offsets = [0, 256], sizes = [8, 128], strides = [1, 1]} : vector<8x384xf32> to vector<8x128xf32>
    %137 = vector.extract_strided_slice %119 {offsets = [0, 256], sizes = [8, 128], strides = [1, 1]} : vector<8x384xf32> to vector<8x128xf32>
    %138 = arith.addf %137, %11 : vector<8x128xf32>
    %139 = arith.mulf %127, %138 : vector<8x128xf32>
    %140 = arith.addf %136, %139 : vector<8x128xf32>
    %141 = math.tanh %140 : vector<8x128xf32>
    %cst_42 = arith.constant 1.000000e+00 : f32
    %142 = vector.broadcast %cst_42 : f32 to vector<8x128xf32>
    %143 = arith.subf %142, %135 : vector<8x128xf32>
    %144 = arith.mulf %143, %141 : vector<8x128xf32>
    %145 = arith.mulf %135, %79 : vector<8x128xf32>
    %146 = arith.addf %144, %145 : vector<8x128xf32>
    %147 = arith.index_cast %c2_i32 : i32 to index
    %c0_43 = arith.constant 0 : index
    %c0_44 = arith.constant 0 : index
    %148 = vector.load %arg0[%147, %c0_43, %c0_44] : memref<8x8x8xf32, #tpu.memory_space<vmem>>, vector<1x8x8xf32>
    %149 = vector.shape_cast %148 : vector<1x8x8xf32> to vector<8x8xf32>
    %c0_45 = arith.constant 0 : index
    %c0_46 = arith.constant 0 : index
    %150 = vector.load %arg1[%c0_45, %c0_46] : memref<8x384xf32, #tpu.memory_space<vmem>>, vector<8x384xf32>
    %cst_47 = arith.constant dense<0.000000e+00> : vector<8x384xf32>
    %151 = tpu.matmul %149, %150, %cst_47 {dimension_numbers = #tpu.dot_dimension_numbers<[1], [0], [0], [1], [0, 0, 1, 1], [], []>} : vector<8x8xf32>, vector<8x384xf32>, vector<8x384xf32> -> vector<8x384xf32>
    %152 = arith.addf %151, %2 : vector<8x384xf32>
    %153 = vector.extract_strided_slice %152 {offsets = [0, 0], sizes = [8, 128], strides = [1, 1]} : vector<8x384xf32> to vector<8x128xf32>
    %154 = vector.extract_strided_slice %115 {offsets = [0, 0], sizes = [8, 128], strides = [1, 1]} : vector<8x384xf32> to vector<8x128xf32>
    %155 = arith.addf %153, %154 : vector<8x128xf32>
    %156 = arith.negf %155 : vector<8x128xf32>
    %157 = math.exp %156 : vector<8x128xf32>
    %cst_48 = arith.constant 1.000000e+00 : f32
    %158 = vector.broadcast %cst_48 : f32 to vector<8x128xf32>
    %159 = arith.addf %158, %157 : vector<8x128xf32>
    %160 = arith.divf %158, %159 : vector<8x128xf32>
    %161 = vector.extract_strided_slice %152 {offsets = [0, 128], sizes = [8, 128], strides = [1, 1]} : vector<8x384xf32> to vector<8x128xf32>
    %162 = vector.extract_strided_slice %115 {offsets = [0, 128], sizes = [8, 128], strides = [1, 1]} : vector<8x384xf32> to vector<8x128xf32>
    %163 = arith.addf %161, %162 : vector<8x128xf32>
    %164 = arith.negf %163 : vector<8x128xf32>
    %165 = math.exp %164 : vector<8x128xf32>
    %cst_49 = arith.constant 1.000000e+00 : f32
    %166 = vector.broadcast %cst_49 : f32 to vector<8x128xf32>
    %167 = arith.addf %166, %165 : vector<8x128xf32>
    %168 = arith.divf %166, %167 : vector<8x128xf32>
    %169 = vector.extract_strided_slice %152 {offsets = [0, 256], sizes = [8, 128], strides = [1, 1]} : vector<8x384xf32> to vector<8x128xf32>
    %170 = vector.extract_strided_slice %115 {offsets = [0, 256], sizes = [8, 128], strides = [1, 1]} : vector<8x384xf32> to vector<8x128xf32>
    %171 = arith.addf %170, %8 : vector<8x128xf32>
    %172 = arith.mulf %160, %171 : vector<8x128xf32>
    %173 = arith.addf %169, %172 : vector<8x128xf32>
    %174 = math.tanh %173 : vector<8x128xf32>
    %cst_50 = arith.constant 1.000000e+00 : f32
    %175 = vector.broadcast %cst_50 : f32 to vector<8x128xf32>
    %176 = arith.subf %175, %168 : vector<8x128xf32>
    %177 = arith.mulf %176, %174 : vector<8x128xf32>
    %178 = arith.mulf %168, %112 : vector<8x128xf32>
    %179 = arith.addf %177, %178 : vector<8x128xf32>
    %c3_i32 = arith.constant 3 : i32
    %c0_51 = arith.constant 0 : index
    %c0_52 = arith.constant 0 : index
    %180 = vector.load %arg4[%c0_51, %c0_52] : memref<128x768xf32, #tpu.memory_space<vmem>>, vector<128x768xf32>
    %cst_53 = arith.constant dense<0.000000e+00> : vector<8x768xf32>
    %181 = tpu.matmul %179, %180, %cst_53 {dimension_numbers = #tpu.dot_dimension_numbers<[1], [0], [0], [1], [0, 0, 1, 1], [], []>} : vector<8x128xf32>, vector<128x768xf32>, vector<8x768xf32> -> vector<8x768xf32>
    %182 = vector.extract_strided_slice %181 {offsets = [0, 0], sizes = [8, 384], strides = [1, 1]} : vector<8x768xf32> to vector<8x384xf32>
    %183 = vector.extract_strided_slice %181 {offsets = [0, 384], sizes = [8, 384], strides = [1, 1]} : vector<8x768xf32> to vector<8x384xf32>
    %184 = arith.addf %183, %5 : vector<8x384xf32>
    %c0_54 = arith.constant 0 : index
    %c0_55 = arith.constant 0 : index
    %185 = vector.load %arg5[%c0_54, %c0_55] : memref<128x384xf32, #tpu.memory_space<vmem>>, vector<128x384xf32>
    %cst_56 = arith.constant dense<0.000000e+00> : vector<8x384xf32>
    %186 = tpu.matmul %146, %185, %cst_56 {dimension_numbers = #tpu.dot_dimension_numbers<[1], [0], [0], [1], [0, 0, 1, 1], [], []>} : vector<8x128xf32>, vector<128x384xf32>, vector<8x384xf32> -> vector<8x384xf32>
    %187 = vector.extract_strided_slice %184 {offsets = [0, 0], sizes = [8, 128], strides = [1, 1]} : vector<8x384xf32> to vector<8x128xf32>
    %188 = vector.extract_strided_slice %186 {offsets = [0, 0], sizes = [8, 128], strides = [1, 1]} : vector<8x384xf32> to vector<8x128xf32>
    %189 = arith.addf %187, %188 : vector<8x128xf32>
    %190 = arith.negf %189 : vector<8x128xf32>
    %191 = math.exp %190 : vector<8x128xf32>
    %cst_57 = arith.constant 1.000000e+00 : f32
    %192 = vector.broadcast %cst_57 : f32 to vector<8x128xf32>
    %193 = arith.addf %192, %191 : vector<8x128xf32>
    %194 = arith.divf %192, %193 : vector<8x128xf32>
    %195 = vector.extract_strided_slice %184 {offsets = [0, 128], sizes = [8, 128], strides = [1, 1]} : vector<8x384xf32> to vector<8x128xf32>
    %196 = vector.extract_strided_slice %186 {offsets = [0, 128], sizes = [8, 128], strides = [1, 1]} : vector<8x384xf32> to vector<8x128xf32>
    %197 = arith.addf %195, %196 : vector<8x128xf32>
    %198 = arith.negf %197 : vector<8x128xf32>
    %199 = math.exp %198 : vector<8x128xf32>
    %cst_58 = arith.constant 1.000000e+00 : f32
    %200 = vector.broadcast %cst_58 : f32 to vector<8x128xf32>
    %201 = arith.addf %200, %199 : vector<8x128xf32>
    %202 = arith.divf %200, %201 : vector<8x128xf32>
    %203 = vector.extract_strided_slice %184 {offsets = [0, 256], sizes = [8, 128], strides = [1, 1]} : vector<8x384xf32> to vector<8x128xf32>
    %204 = vector.extract_strided_slice %186 {offsets = [0, 256], sizes = [8, 128], strides = [1, 1]} : vector<8x384xf32> to vector<8x128xf32>
    %205 = arith.addf %204, %11 : vector<8x128xf32>
    %206 = arith.mulf %194, %205 : vector<8x128xf32>
    %207 = arith.addf %203, %206 : vector<8x128xf32>
    %208 = math.tanh %207 : vector<8x128xf32>
    %cst_59 = arith.constant 1.000000e+00 : f32
    %209 = vector.broadcast %cst_59 : f32 to vector<8x128xf32>
    %210 = arith.subf %209, %202 : vector<8x128xf32>
    %211 = arith.mulf %210, %208 : vector<8x128xf32>
    %212 = arith.mulf %202, %146 : vector<8x128xf32>
    %213 = arith.addf %211, %212 : vector<8x128xf32>
    %214 = arith.index_cast %c3_i32 : i32 to index
    %c0_60 = arith.constant 0 : index
    %c0_61 = arith.constant 0 : index
    %215 = vector.load %arg0[%214, %c0_60, %c0_61] : memref<8x8x8xf32, #tpu.memory_space<vmem>>, vector<1x8x8xf32>
    %216 = vector.shape_cast %215 : vector<1x8x8xf32> to vector<8x8xf32>
    %c0_62 = arith.constant 0 : index
    %c0_63 = arith.constant 0 : index
    %217 = vector.load %arg1[%c0_62, %c0_63] : memref<8x384xf32, #tpu.memory_space<vmem>>, vector<8x384xf32>
    %cst_64 = arith.constant dense<0.000000e+00> : vector<8x384xf32>
    %218 = tpu.matmul %216, %217, %cst_64 {dimension_numbers = #tpu.dot_dimension_numbers<[1], [0], [0], [1], [0, 0, 1, 1], [], []>} : vector<8x8xf32>, vector<8x384xf32>, vector<8x384xf32> -> vector<8x384xf32>
    %219 = arith.addf %218, %2 : vector<8x384xf32>
    %220 = vector.extract_strided_slice %219 {offsets = [0, 0], sizes = [8, 128], strides = [1, 1]} : vector<8x384xf32> to vector<8x128xf32>
    %221 = vector.extract_strided_slice %182 {offsets = [0, 0], sizes = [8, 128], strides = [1, 1]} : vector<8x384xf32> to vector<8x128xf32>
    %222 = arith.addf %220, %221 : vector<8x128xf32>
    %223 = arith.negf %222 : vector<8x128xf32>
    %224 = math.exp %223 : vector<8x128xf32>
    %cst_65 = arith.constant 1.000000e+00 : f32
    %225 = vector.broadcast %cst_65 : f32 to vector<8x128xf32>
    %226 = arith.addf %225, %224 : vector<8x128xf32>
    %227 = arith.divf %225, %226 : vector<8x128xf32>
    %228 = vector.extract_strided_slice %219 {offsets = [0, 128], sizes = [8, 128], strides = [1, 1]} : vector<8x384xf32> to vector<8x128xf32>
    %229 = vector.extract_strided_slice %182 {offsets = [0, 128], sizes = [8, 128], strides = [1, 1]} : vector<8x384xf32> to vector<8x128xf32>
    %230 = arith.addf %228, %229 : vector<8x128xf32>
    %231 = arith.negf %230 : vector<8x128xf32>
    %232 = math.exp %231 : vector<8x128xf32>
    %cst_66 = arith.constant 1.000000e+00 : f32
    %233 = vector.broadcast %cst_66 : f32 to vector<8x128xf32>
    %234 = arith.addf %233, %232 : vector<8x128xf32>
    %235 = arith.divf %233, %234 : vector<8x128xf32>
    %236 = vector.extract_strided_slice %219 {offsets = [0, 256], sizes = [8, 128], strides = [1, 1]} : vector<8x384xf32> to vector<8x128xf32>
    %237 = vector.extract_strided_slice %182 {offsets = [0, 256], sizes = [8, 128], strides = [1, 1]} : vector<8x384xf32> to vector<8x128xf32>
    %238 = arith.addf %237, %8 : vector<8x128xf32>
    %239 = arith.mulf %227, %238 : vector<8x128xf32>
    %240 = arith.addf %236, %239 : vector<8x128xf32>
    %241 = math.tanh %240 : vector<8x128xf32>
    %cst_67 = arith.constant 1.000000e+00 : f32
    %242 = vector.broadcast %cst_67 : f32 to vector<8x128xf32>
    %243 = arith.subf %242, %235 : vector<8x128xf32>
    %244 = arith.mulf %243, %241 : vector<8x128xf32>
    %245 = arith.mulf %235, %179 : vector<8x128xf32>
    %246 = arith.addf %244, %245 : vector<8x128xf32>
    %c4_i32 = arith.constant 4 : i32
    %c0_68 = arith.constant 0 : index
    %c0_69 = arith.constant 0 : index
    %247 = vector.load %arg4[%c0_68, %c0_69] : memref<128x768xf32, #tpu.memory_space<vmem>>, vector<128x768xf32>
    %cst_70 = arith.constant dense<0.000000e+00> : vector<8x768xf32>
    %248 = tpu.matmul %246, %247, %cst_70 {dimension_numbers = #tpu.dot_dimension_numbers<[1], [0], [0], [1], [0, 0, 1, 1], [], []>} : vector<8x128xf32>, vector<128x768xf32>, vector<8x768xf32> -> vector<8x768xf32>
    %249 = vector.extract_strided_slice %248 {offsets = [0, 0], sizes = [8, 384], strides = [1, 1]} : vector<8x768xf32> to vector<8x384xf32>
    %250 = vector.extract_strided_slice %248 {offsets = [0, 384], sizes = [8, 384], strides = [1, 1]} : vector<8x768xf32> to vector<8x384xf32>
    %251 = arith.addf %250, %5 : vector<8x384xf32>
    %c0_71 = arith.constant 0 : index
    %c0_72 = arith.constant 0 : index
    %252 = vector.load %arg5[%c0_71, %c0_72] : memref<128x384xf32, #tpu.memory_space<vmem>>, vector<128x384xf32>
    %cst_73 = arith.constant dense<0.000000e+00> : vector<8x384xf32>
    %253 = tpu.matmul %213, %252, %cst_73 {dimension_numbers = #tpu.dot_dimension_numbers<[1], [0], [0], [1], [0, 0, 1, 1], [], []>} : vector<8x128xf32>, vector<128x384xf32>, vector<8x384xf32> -> vector<8x384xf32>
    %254 = vector.extract_strided_slice %251 {offsets = [0, 0], sizes = [8, 128], strides = [1, 1]} : vector<8x384xf32> to vector<8x128xf32>
    %255 = vector.extract_strided_slice %253 {offsets = [0, 0], sizes = [8, 128], strides = [1, 1]} : vector<8x384xf32> to vector<8x128xf32>
    %256 = arith.addf %254, %255 : vector<8x128xf32>
    %257 = arith.negf %256 : vector<8x128xf32>
    %258 = math.exp %257 : vector<8x128xf32>
    %cst_74 = arith.constant 1.000000e+00 : f32
    %259 = vector.broadcast %cst_74 : f32 to vector<8x128xf32>
    %260 = arith.addf %259, %258 : vector<8x128xf32>
    %261 = arith.divf %259, %260 : vector<8x128xf32>
    %262 = vector.extract_strided_slice %251 {offsets = [0, 128], sizes = [8, 128], strides = [1, 1]} : vector<8x384xf32> to vector<8x128xf32>
    %263 = vector.extract_strided_slice %253 {offsets = [0, 128], sizes = [8, 128], strides = [1, 1]} : vector<8x384xf32> to vector<8x128xf32>
    %264 = arith.addf %262, %263 : vector<8x128xf32>
    %265 = arith.negf %264 : vector<8x128xf32>
    %266 = math.exp %265 : vector<8x128xf32>
    %cst_75 = arith.constant 1.000000e+00 : f32
    %267 = vector.broadcast %cst_75 : f32 to vector<8x128xf32>
    %268 = arith.addf %267, %266 : vector<8x128xf32>
    %269 = arith.divf %267, %268 : vector<8x128xf32>
    %270 = vector.extract_strided_slice %251 {offsets = [0, 256], sizes = [8, 128], strides = [1, 1]} : vector<8x384xf32> to vector<8x128xf32>
    %271 = vector.extract_strided_slice %253 {offsets = [0, 256], sizes = [8, 128], strides = [1, 1]} : vector<8x384xf32> to vector<8x128xf32>
    %272 = arith.addf %271, %11 : vector<8x128xf32>
    %273 = arith.mulf %261, %272 : vector<8x128xf32>
    %274 = arith.addf %270, %273 : vector<8x128xf32>
    %275 = math.tanh %274 : vector<8x128xf32>
    %cst_76 = arith.constant 1.000000e+00 : f32
    %276 = vector.broadcast %cst_76 : f32 to vector<8x128xf32>
    %277 = arith.subf %276, %269 : vector<8x128xf32>
    %278 = arith.mulf %277, %275 : vector<8x128xf32>
    %279 = arith.mulf %269, %213 : vector<8x128xf32>
    %280 = arith.addf %278, %279 : vector<8x128xf32>
    %281 = arith.index_cast %c4_i32 : i32 to index
    %c0_77 = arith.constant 0 : index
    %c0_78 = arith.constant 0 : index
    %282 = vector.load %arg0[%281, %c0_77, %c0_78] : memref<8x8x8xf32, #tpu.memory_space<vmem>>, vector<1x8x8xf32>
    %283 = vector.shape_cast %282 : vector<1x8x8xf32> to vector<8x8xf32>
    %c0_79 = arith.constant 0 : index
    %c0_80 = arith.constant 0 : index
    %284 = vector.load %arg1[%c0_79, %c0_80] : memref<8x384xf32, #tpu.memory_space<vmem>>, vector<8x384xf32>
    %cst_81 = arith.constant dense<0.000000e+00> : vector<8x384xf32>
    %285 = tpu.matmul %283, %284, %cst_81 {dimension_numbers = #tpu.dot_dimension_numbers<[1], [0], [0], [1], [0, 0, 1, 1], [], []>} : vector<8x8xf32>, vector<8x384xf32>, vector<8x384xf32> -> vector<8x384xf32>
    %286 = arith.addf %285, %2 : vector<8x384xf32>
    %287 = vector.extract_strided_slice %286 {offsets = [0, 0], sizes = [8, 128], strides = [1, 1]} : vector<8x384xf32> to vector<8x128xf32>
    %288 = vector.extract_strided_slice %249 {offsets = [0, 0], sizes = [8, 128], strides = [1, 1]} : vector<8x384xf32> to vector<8x128xf32>
    %289 = arith.addf %287, %288 : vector<8x128xf32>
    %290 = arith.negf %289 : vector<8x128xf32>
    %291 = math.exp %290 : vector<8x128xf32>
    %cst_82 = arith.constant 1.000000e+00 : f32
    %292 = vector.broadcast %cst_82 : f32 to vector<8x128xf32>
    %293 = arith.addf %292, %291 : vector<8x128xf32>
    %294 = arith.divf %292, %293 : vector<8x128xf32>
    %295 = vector.extract_strided_slice %286 {offsets = [0, 128], sizes = [8, 128], strides = [1, 1]} : vector<8x384xf32> to vector<8x128xf32>
    %296 = vector.extract_strided_slice %249 {offsets = [0, 128], sizes = [8, 128], strides = [1, 1]} : vector<8x384xf32> to vector<8x128xf32>
    %297 = arith.addf %295, %296 : vector<8x128xf32>
    %298 = arith.negf %297 : vector<8x128xf32>
    %299 = math.exp %298 : vector<8x128xf32>
    %cst_83 = arith.constant 1.000000e+00 : f32
    %300 = vector.broadcast %cst_83 : f32 to vector<8x128xf32>
    %301 = arith.addf %300, %299 : vector<8x128xf32>
    %302 = arith.divf %300, %301 : vector<8x128xf32>
    %303 = vector.extract_strided_slice %286 {offsets = [0, 256], sizes = [8, 128], strides = [1, 1]} : vector<8x384xf32> to vector<8x128xf32>
    %304 = vector.extract_strided_slice %249 {offsets = [0, 256], sizes = [8, 128], strides = [1, 1]} : vector<8x384xf32> to vector<8x128xf32>
    %305 = arith.addf %304, %8 : vector<8x128xf32>
    %306 = arith.mulf %294, %305 : vector<8x128xf32>
    %307 = arith.addf %303, %306 : vector<8x128xf32>
    %308 = math.tanh %307 : vector<8x128xf32>
    %cst_84 = arith.constant 1.000000e+00 : f32
    %309 = vector.broadcast %cst_84 : f32 to vector<8x128xf32>
    %310 = arith.subf %309, %302 : vector<8x128xf32>
    %311 = arith.mulf %310, %308 : vector<8x128xf32>
    %312 = arith.mulf %302, %246 : vector<8x128xf32>
    %313 = arith.addf %311, %312 : vector<8x128xf32>
    %c5_i32 = arith.constant 5 : i32
    %c0_85 = arith.constant 0 : index
    %c0_86 = arith.constant 0 : index
    %314 = vector.load %arg4[%c0_85, %c0_86] : memref<128x768xf32, #tpu.memory_space<vmem>>, vector<128x768xf32>
    %cst_87 = arith.constant dense<0.000000e+00> : vector<8x768xf32>
    %315 = tpu.matmul %313, %314, %cst_87 {dimension_numbers = #tpu.dot_dimension_numbers<[1], [0], [0], [1], [0, 0, 1, 1], [], []>} : vector<8x128xf32>, vector<128x768xf32>, vector<8x768xf32> -> vector<8x768xf32>
    %316 = vector.extract_strided_slice %315 {offsets = [0, 0], sizes = [8, 384], strides = [1, 1]} : vector<8x768xf32> to vector<8x384xf32>
    %317 = vector.extract_strided_slice %315 {offsets = [0, 384], sizes = [8, 384], strides = [1, 1]} : vector<8x768xf32> to vector<8x384xf32>
    %318 = arith.addf %317, %5 : vector<8x384xf32>
    %c0_88 = arith.constant 0 : index
    %c0_89 = arith.constant 0 : index
    %319 = vector.load %arg5[%c0_88, %c0_89] : memref<128x384xf32, #tpu.memory_space<vmem>>, vector<128x384xf32>
    %cst_90 = arith.constant dense<0.000000e+00> : vector<8x384xf32>
    %320 = tpu.matmul %280, %319, %cst_90 {dimension_numbers = #tpu.dot_dimension_numbers<[1], [0], [0], [1], [0, 0, 1, 1], [], []>} : vector<8x128xf32>, vector<128x384xf32>, vector<8x384xf32> -> vector<8x384xf32>
    %321 = vector.extract_strided_slice %318 {offsets = [0, 0], sizes = [8, 128], strides = [1, 1]} : vector<8x384xf32> to vector<8x128xf32>
    %322 = vector.extract_strided_slice %320 {offsets = [0, 0], sizes = [8, 128], strides = [1, 1]} : vector<8x384xf32> to vector<8x128xf32>
    %323 = arith.addf %321, %322 : vector<8x128xf32>
    %324 = arith.negf %323 : vector<8x128xf32>
    %325 = math.exp %324 : vector<8x128xf32>
    %cst_91 = arith.constant 1.000000e+00 : f32
    %326 = vector.broadcast %cst_91 : f32 to vector<8x128xf32>
    %327 = arith.addf %326, %325 : vector<8x128xf32>
    %328 = arith.divf %326, %327 : vector<8x128xf32>
    %329 = vector.extract_strided_slice %318 {offsets = [0, 128], sizes = [8, 128], strides = [1, 1]} : vector<8x384xf32> to vector<8x128xf32>
    %330 = vector.extract_strided_slice %320 {offsets = [0, 128], sizes = [8, 128], strides = [1, 1]} : vector<8x384xf32> to vector<8x128xf32>
    %331 = arith.addf %329, %330 : vector<8x128xf32>
    %332 = arith.negf %331 : vector<8x128xf32>
    %333 = math.exp %332 : vector<8x128xf32>
    %cst_92 = arith.constant 1.000000e+00 : f32
    %334 = vector.broadcast %cst_92 : f32 to vector<8x128xf32>
    %335 = arith.addf %334, %333 : vector<8x128xf32>
    %336 = arith.divf %334, %335 : vector<8x128xf32>
    %337 = vector.extract_strided_slice %318 {offsets = [0, 256], sizes = [8, 128], strides = [1, 1]} : vector<8x384xf32> to vector<8x128xf32>
    %338 = vector.extract_strided_slice %320 {offsets = [0, 256], sizes = [8, 128], strides = [1, 1]} : vector<8x384xf32> to vector<8x128xf32>
    %339 = arith.addf %338, %11 : vector<8x128xf32>
    %340 = arith.mulf %328, %339 : vector<8x128xf32>
    %341 = arith.addf %337, %340 : vector<8x128xf32>
    %342 = math.tanh %341 : vector<8x128xf32>
    %cst_93 = arith.constant 1.000000e+00 : f32
    %343 = vector.broadcast %cst_93 : f32 to vector<8x128xf32>
    %344 = arith.subf %343, %336 : vector<8x128xf32>
    %345 = arith.mulf %344, %342 : vector<8x128xf32>
    %346 = arith.mulf %336, %280 : vector<8x128xf32>
    %347 = arith.addf %345, %346 : vector<8x128xf32>
    %348 = arith.index_cast %c5_i32 : i32 to index
    %c0_94 = arith.constant 0 : index
    %c0_95 = arith.constant 0 : index
    %349 = vector.load %arg0[%348, %c0_94, %c0_95] : memref<8x8x8xf32, #tpu.memory_space<vmem>>, vector<1x8x8xf32>
    %350 = vector.shape_cast %349 : vector<1x8x8xf32> to vector<8x8xf32>
    %c0_96 = arith.constant 0 : index
    %c0_97 = arith.constant 0 : index
    %351 = vector.load %arg1[%c0_96, %c0_97] : memref<8x384xf32, #tpu.memory_space<vmem>>, vector<8x384xf32>
    %cst_98 = arith.constant dense<0.000000e+00> : vector<8x384xf32>
    %352 = tpu.matmul %350, %351, %cst_98 {dimension_numbers = #tpu.dot_dimension_numbers<[1], [0], [0], [1], [0, 0, 1, 1], [], []>} : vector<8x8xf32>, vector<8x384xf32>, vector<8x384xf32> -> vector<8x384xf32>
    %353 = arith.addf %352, %2 : vector<8x384xf32>
    %354 = vector.extract_strided_slice %353 {offsets = [0, 0], sizes = [8, 128], strides = [1, 1]} : vector<8x384xf32> to vector<8x128xf32>
    %355 = vector.extract_strided_slice %316 {offsets = [0, 0], sizes = [8, 128], strides = [1, 1]} : vector<8x384xf32> to vector<8x128xf32>
    %356 = arith.addf %354, %355 : vector<8x128xf32>
    %357 = arith.negf %356 : vector<8x128xf32>
    %358 = math.exp %357 : vector<8x128xf32>
    %cst_99 = arith.constant 1.000000e+00 : f32
    %359 = vector.broadcast %cst_99 : f32 to vector<8x128xf32>
    %360 = arith.addf %359, %358 : vector<8x128xf32>
    %361 = arith.divf %359, %360 : vector<8x128xf32>
    %362 = vector.extract_strided_slice %353 {offsets = [0, 128], sizes = [8, 128], strides = [1, 1]} : vector<8x384xf32> to vector<8x128xf32>
    %363 = vector.extract_strided_slice %316 {offsets = [0, 128], sizes = [8, 128], strides = [1, 1]} : vector<8x384xf32> to vector<8x128xf32>
    %364 = arith.addf %362, %363 : vector<8x128xf32>
    %365 = arith.negf %364 : vector<8x128xf32>
    %366 = math.exp %365 : vector<8x128xf32>
    %cst_100 = arith.constant 1.000000e+00 : f32
    %367 = vector.broadcast %cst_100 : f32 to vector<8x128xf32>
    %368 = arith.addf %367, %366 : vector<8x128xf32>
    %369 = arith.divf %367, %368 : vector<8x128xf32>
    %370 = vector.extract_strided_slice %353 {offsets = [0, 256], sizes = [8, 128], strides = [1, 1]} : vector<8x384xf32> to vector<8x128xf32>
    %371 = vector.extract_strided_slice %316 {offsets = [0, 256], sizes = [8, 128], strides = [1, 1]} : vector<8x384xf32> to vector<8x128xf32>
    %372 = arith.addf %371, %8 : vector<8x128xf32>
    %373 = arith.mulf %361, %372 : vector<8x128xf32>
    %374 = arith.addf %370, %373 : vector<8x128xf32>
    %375 = math.tanh %374 : vector<8x128xf32>
    %cst_101 = arith.constant 1.000000e+00 : f32
    %376 = vector.broadcast %cst_101 : f32 to vector<8x128xf32>
    %377 = arith.subf %376, %369 : vector<8x128xf32>
    %378 = arith.mulf %377, %375 : vector<8x128xf32>
    %379 = arith.mulf %369, %313 : vector<8x128xf32>
    %380 = arith.addf %378, %379 : vector<8x128xf32>
    %c6_i32 = arith.constant 6 : i32
    %c0_102 = arith.constant 0 : index
    %c0_103 = arith.constant 0 : index
    %381 = vector.load %arg4[%c0_102, %c0_103] : memref<128x768xf32, #tpu.memory_space<vmem>>, vector<128x768xf32>
    %cst_104 = arith.constant dense<0.000000e+00> : vector<8x768xf32>
    %382 = tpu.matmul %380, %381, %cst_104 {dimension_numbers = #tpu.dot_dimension_numbers<[1], [0], [0], [1], [0, 0, 1, 1], [], []>} : vector<8x128xf32>, vector<128x768xf32>, vector<8x768xf32> -> vector<8x768xf32>
    %383 = vector.extract_strided_slice %382 {offsets = [0, 0], sizes = [8, 384], strides = [1, 1]} : vector<8x768xf32> to vector<8x384xf32>
    %384 = vector.extract_strided_slice %382 {offsets = [0, 384], sizes = [8, 384], strides = [1, 1]} : vector<8x768xf32> to vector<8x384xf32>
    %385 = arith.addf %384, %5 : vector<8x384xf32>
    %c0_105 = arith.constant 0 : index
    %c0_106 = arith.constant 0 : index
    %386 = vector.load %arg5[%c0_105, %c0_106] : memref<128x384xf32, #tpu.memory_space<vmem>>, vector<128x384xf32>
    %cst_107 = arith.constant dense<0.000000e+00> : vector<8x384xf32>
    %387 = tpu.matmul %347, %386, %cst_107 {dimension_numbers = #tpu.dot_dimension_numbers<[1], [0], [0], [1], [0, 0, 1, 1], [], []>} : vector<8x128xf32>, vector<128x384xf32>, vector<8x384xf32> -> vector<8x384xf32>
    %388 = vector.extract_strided_slice %385 {offsets = [0, 0], sizes = [8, 128], strides = [1, 1]} : vector<8x384xf32> to vector<8x128xf32>
    %389 = vector.extract_strided_slice %387 {offsets = [0, 0], sizes = [8, 128], strides = [1, 1]} : vector<8x384xf32> to vector<8x128xf32>
    %390 = arith.addf %388, %389 : vector<8x128xf32>
    %391 = arith.negf %390 : vector<8x128xf32>
    %392 = math.exp %391 : vector<8x128xf32>
    %cst_108 = arith.constant 1.000000e+00 : f32
    %393 = vector.broadcast %cst_108 : f32 to vector<8x128xf32>
    %394 = arith.addf %393, %392 : vector<8x128xf32>
    %395 = arith.divf %393, %394 : vector<8x128xf32>
    %396 = vector.extract_strided_slice %385 {offsets = [0, 128], sizes = [8, 128], strides = [1, 1]} : vector<8x384xf32> to vector<8x128xf32>
    %397 = vector.extract_strided_slice %387 {offsets = [0, 128], sizes = [8, 128], strides = [1, 1]} : vector<8x384xf32> to vector<8x128xf32>
    %398 = arith.addf %396, %397 : vector<8x128xf32>
    %399 = arith.negf %398 : vector<8x128xf32>
    %400 = math.exp %399 : vector<8x128xf32>
    %cst_109 = arith.constant 1.000000e+00 : f32
    %401 = vector.broadcast %cst_109 : f32 to vector<8x128xf32>
    %402 = arith.addf %401, %400 : vector<8x128xf32>
    %403 = arith.divf %401, %402 : vector<8x128xf32>
    %404 = vector.extract_strided_slice %385 {offsets = [0, 256], sizes = [8, 128], strides = [1, 1]} : vector<8x384xf32> to vector<8x128xf32>
    %405 = vector.extract_strided_slice %387 {offsets = [0, 256], sizes = [8, 128], strides = [1, 1]} : vector<8x384xf32> to vector<8x128xf32>
    %406 = arith.addf %405, %11 : vector<8x128xf32>
    %407 = arith.mulf %395, %406 : vector<8x128xf32>
    %408 = arith.addf %404, %407 : vector<8x128xf32>
    %409 = math.tanh %408 : vector<8x128xf32>
    %cst_110 = arith.constant 1.000000e+00 : f32
    %410 = vector.broadcast %cst_110 : f32 to vector<8x128xf32>
    %411 = arith.subf %410, %403 : vector<8x128xf32>
    %412 = arith.mulf %411, %409 : vector<8x128xf32>
    %413 = arith.mulf %403, %347 : vector<8x128xf32>
    %414 = arith.addf %412, %413 : vector<8x128xf32>
    %415 = arith.index_cast %c6_i32 : i32 to index
    %c0_111 = arith.constant 0 : index
    %c0_112 = arith.constant 0 : index
    %416 = vector.load %arg0[%415, %c0_111, %c0_112] : memref<8x8x8xf32, #tpu.memory_space<vmem>>, vector<1x8x8xf32>
    %417 = vector.shape_cast %416 : vector<1x8x8xf32> to vector<8x8xf32>
    %c0_113 = arith.constant 0 : index
    %c0_114 = arith.constant 0 : index
    %418 = vector.load %arg1[%c0_113, %c0_114] : memref<8x384xf32, #tpu.memory_space<vmem>>, vector<8x384xf32>
    %cst_115 = arith.constant dense<0.000000e+00> : vector<8x384xf32>
    %419 = tpu.matmul %417, %418, %cst_115 {dimension_numbers = #tpu.dot_dimension_numbers<[1], [0], [0], [1], [0, 0, 1, 1], [], []>} : vector<8x8xf32>, vector<8x384xf32>, vector<8x384xf32> -> vector<8x384xf32>
    %420 = arith.addf %419, %2 : vector<8x384xf32>
    %421 = vector.extract_strided_slice %420 {offsets = [0, 0], sizes = [8, 128], strides = [1, 1]} : vector<8x384xf32> to vector<8x128xf32>
    %422 = vector.extract_strided_slice %383 {offsets = [0, 0], sizes = [8, 128], strides = [1, 1]} : vector<8x384xf32> to vector<8x128xf32>
    %423 = arith.addf %421, %422 : vector<8x128xf32>
    %424 = arith.negf %423 : vector<8x128xf32>
    %425 = math.exp %424 : vector<8x128xf32>
    %cst_116 = arith.constant 1.000000e+00 : f32
    %426 = vector.broadcast %cst_116 : f32 to vector<8x128xf32>
    %427 = arith.addf %426, %425 : vector<8x128xf32>
    %428 = arith.divf %426, %427 : vector<8x128xf32>
    %429 = vector.extract_strided_slice %420 {offsets = [0, 128], sizes = [8, 128], strides = [1, 1]} : vector<8x384xf32> to vector<8x128xf32>
    %430 = vector.extract_strided_slice %383 {offsets = [0, 128], sizes = [8, 128], strides = [1, 1]} : vector<8x384xf32> to vector<8x128xf32>
    %431 = arith.addf %429, %430 : vector<8x128xf32>
    %432 = arith.negf %431 : vector<8x128xf32>
    %433 = math.exp %432 : vector<8x128xf32>
    %cst_117 = arith.constant 1.000000e+00 : f32
    %434 = vector.broadcast %cst_117 : f32 to vector<8x128xf32>
    %435 = arith.addf %434, %433 : vector<8x128xf32>
    %436 = arith.divf %434, %435 : vector<8x128xf32>
    %437 = vector.extract_strided_slice %420 {offsets = [0, 256], sizes = [8, 128], strides = [1, 1]} : vector<8x384xf32> to vector<8x128xf32>
    %438 = vector.extract_strided_slice %383 {offsets = [0, 256], sizes = [8, 128], strides = [1, 1]} : vector<8x384xf32> to vector<8x128xf32>
    %439 = arith.addf %438, %8 : vector<8x128xf32>
    %440 = arith.mulf %428, %439 : vector<8x128xf32>
    %441 = arith.addf %437, %440 : vector<8x128xf32>
    %442 = math.tanh %441 : vector<8x128xf32>
    %cst_118 = arith.constant 1.000000e+00 : f32
    %443 = vector.broadcast %cst_118 : f32 to vector<8x128xf32>
    %444 = arith.subf %443, %436 : vector<8x128xf32>
    %445 = arith.mulf %444, %442 : vector<8x128xf32>
    %446 = arith.mulf %436, %380 : vector<8x128xf32>
    %447 = arith.addf %445, %446 : vector<8x128xf32>
    %c7_i32 = arith.constant 7 : i32
    %c0_119 = arith.constant 0 : index
    %c0_120 = arith.constant 0 : index
    %448 = vector.load %arg4[%c0_119, %c0_120] : memref<128x768xf32, #tpu.memory_space<vmem>>, vector<128x768xf32>
    %cst_121 = arith.constant dense<0.000000e+00> : vector<8x768xf32>
    %449 = tpu.matmul %447, %448, %cst_121 {dimension_numbers = #tpu.dot_dimension_numbers<[1], [0], [0], [1], [0, 0, 1, 1], [], []>} : vector<8x128xf32>, vector<128x768xf32>, vector<8x768xf32> -> vector<8x768xf32>
    %450 = vector.extract_strided_slice %449 {offsets = [0, 0], sizes = [8, 384], strides = [1, 1]} : vector<8x768xf32> to vector<8x384xf32>
    %451 = vector.extract_strided_slice %449 {offsets = [0, 384], sizes = [8, 384], strides = [1, 1]} : vector<8x768xf32> to vector<8x384xf32>
    %452 = arith.addf %451, %5 : vector<8x384xf32>
    %c0_122 = arith.constant 0 : index
    %c0_123 = arith.constant 0 : index
    %453 = vector.load %arg5[%c0_122, %c0_123] : memref<128x384xf32, #tpu.memory_space<vmem>>, vector<128x384xf32>
    %cst_124 = arith.constant dense<0.000000e+00> : vector<8x384xf32>
    %454 = tpu.matmul %414, %453, %cst_124 {dimension_numbers = #tpu.dot_dimension_numbers<[1], [0], [0], [1], [0, 0, 1, 1], [], []>} : vector<8x128xf32>, vector<128x384xf32>, vector<8x384xf32> -> vector<8x384xf32>
    %455 = vector.extract_strided_slice %452 {offsets = [0, 0], sizes = [8, 128], strides = [1, 1]} : vector<8x384xf32> to vector<8x128xf32>
    %456 = vector.extract_strided_slice %454 {offsets = [0, 0], sizes = [8, 128], strides = [1, 1]} : vector<8x384xf32> to vector<8x128xf32>
    %457 = arith.addf %455, %456 : vector<8x128xf32>
    %458 = arith.negf %457 : vector<8x128xf32>
    %459 = math.exp %458 : vector<8x128xf32>
    %cst_125 = arith.constant 1.000000e+00 : f32
    %460 = vector.broadcast %cst_125 : f32 to vector<8x128xf32>
    %461 = arith.addf %460, %459 : vector<8x128xf32>
    %462 = arith.divf %460, %461 : vector<8x128xf32>
    %463 = vector.extract_strided_slice %452 {offsets = [0, 128], sizes = [8, 128], strides = [1, 1]} : vector<8x384xf32> to vector<8x128xf32>
    %464 = vector.extract_strided_slice %454 {offsets = [0, 128], sizes = [8, 128], strides = [1, 1]} : vector<8x384xf32> to vector<8x128xf32>
    %465 = arith.addf %463, %464 : vector<8x128xf32>
    %466 = arith.negf %465 : vector<8x128xf32>
    %467 = math.exp %466 : vector<8x128xf32>
    %cst_126 = arith.constant 1.000000e+00 : f32
    %468 = vector.broadcast %cst_126 : f32 to vector<8x128xf32>
    %469 = arith.addf %468, %467 : vector<8x128xf32>
    %470 = arith.divf %468, %469 : vector<8x128xf32>
    %471 = vector.extract_strided_slice %452 {offsets = [0, 256], sizes = [8, 128], strides = [1, 1]} : vector<8x384xf32> to vector<8x128xf32>
    %472 = vector.extract_strided_slice %454 {offsets = [0, 256], sizes = [8, 128], strides = [1, 1]} : vector<8x384xf32> to vector<8x128xf32>
    %473 = arith.addf %472, %11 : vector<8x128xf32>
    %474 = arith.mulf %462, %473 : vector<8x128xf32>
    %475 = arith.addf %471, %474 : vector<8x128xf32>
    %476 = math.tanh %475 : vector<8x128xf32>
    %cst_127 = arith.constant 1.000000e+00 : f32
    %477 = vector.broadcast %cst_127 : f32 to vector<8x128xf32>
    %478 = arith.subf %477, %470 : vector<8x128xf32>
    %479 = arith.mulf %478, %476 : vector<8x128xf32>
    %480 = arith.mulf %470, %414 : vector<8x128xf32>
    %481 = arith.addf %479, %480 : vector<8x128xf32>
    %482 = arith.index_cast %c7_i32 : i32 to index
    %c0_128 = arith.constant 0 : index
    %c0_129 = arith.constant 0 : index
    %483 = vector.load %arg0[%482, %c0_128, %c0_129] : memref<8x8x8xf32, #tpu.memory_space<vmem>>, vector<1x8x8xf32>
    %484 = vector.shape_cast %483 : vector<1x8x8xf32> to vector<8x8xf32>
    %c0_130 = arith.constant 0 : index
    %c0_131 = arith.constant 0 : index
    %485 = vector.load %arg1[%c0_130, %c0_131] : memref<8x384xf32, #tpu.memory_space<vmem>>, vector<8x384xf32>
    %cst_132 = arith.constant dense<0.000000e+00> : vector<8x384xf32>
    %486 = tpu.matmul %484, %485, %cst_132 {dimension_numbers = #tpu.dot_dimension_numbers<[1], [0], [0], [1], [0, 0, 1, 1], [], []>} : vector<8x8xf32>, vector<8x384xf32>, vector<8x384xf32> -> vector<8x384xf32>
    %487 = arith.addf %486, %2 : vector<8x384xf32>
    %488 = vector.extract_strided_slice %487 {offsets = [0, 0], sizes = [8, 128], strides = [1, 1]} : vector<8x384xf32> to vector<8x128xf32>
    %489 = vector.extract_strided_slice %450 {offsets = [0, 0], sizes = [8, 128], strides = [1, 1]} : vector<8x384xf32> to vector<8x128xf32>
    %490 = arith.addf %488, %489 : vector<8x128xf32>
    %491 = arith.negf %490 : vector<8x128xf32>
    %492 = math.exp %491 : vector<8x128xf32>
    %cst_133 = arith.constant 1.000000e+00 : f32
    %493 = vector.broadcast %cst_133 : f32 to vector<8x128xf32>
    %494 = arith.addf %493, %492 : vector<8x128xf32>
    %495 = arith.divf %493, %494 : vector<8x128xf32>
    %496 = vector.extract_strided_slice %487 {offsets = [0, 128], sizes = [8, 128], strides = [1, 1]} : vector<8x384xf32> to vector<8x128xf32>
    %497 = vector.extract_strided_slice %450 {offsets = [0, 128], sizes = [8, 128], strides = [1, 1]} : vector<8x384xf32> to vector<8x128xf32>
    %498 = arith.addf %496, %497 : vector<8x128xf32>
    %499 = arith.negf %498 : vector<8x128xf32>
    %500 = math.exp %499 : vector<8x128xf32>
    %cst_134 = arith.constant 1.000000e+00 : f32
    %501 = vector.broadcast %cst_134 : f32 to vector<8x128xf32>
    %502 = arith.addf %501, %500 : vector<8x128xf32>
    %503 = arith.divf %501, %502 : vector<8x128xf32>
    %504 = vector.extract_strided_slice %487 {offsets = [0, 256], sizes = [8, 128], strides = [1, 1]} : vector<8x384xf32> to vector<8x128xf32>
    %505 = vector.extract_strided_slice %450 {offsets = [0, 256], sizes = [8, 128], strides = [1, 1]} : vector<8x384xf32> to vector<8x128xf32>
    %506 = arith.addf %505, %8 : vector<8x128xf32>
    %507 = arith.mulf %495, %506 : vector<8x128xf32>
    %508 = arith.addf %504, %507 : vector<8x128xf32>
    %509 = math.tanh %508 : vector<8x128xf32>
    %cst_135 = arith.constant 1.000000e+00 : f32
    %510 = vector.broadcast %cst_135 : f32 to vector<8x128xf32>
    %511 = arith.subf %510, %503 : vector<8x128xf32>
    %512 = arith.mulf %511, %509 : vector<8x128xf32>
    %513 = arith.mulf %503, %447 : vector<8x128xf32>
    %514 = arith.addf %512, %513 : vector<8x128xf32>
    %c7_i32_136 = arith.constant 7 : i32
    %c0_137 = arith.constant 0 : index
    %c0_138 = arith.constant 0 : index
    %515 = vector.load %arg4[%c0_137, %c0_138] : memref<128x768xf32, #tpu.memory_space<vmem>>, vector<128x768xf32>
    %cst_139 = arith.constant dense<0.000000e+00> : vector<8x768xf32>
    %516 = tpu.matmul %514, %515, %cst_139 {dimension_numbers = #tpu.dot_dimension_numbers<[1], [0], [0], [1], [0, 0, 1, 1], [], []>} : vector<8x128xf32>, vector<128x768xf32>, vector<8x768xf32> -> vector<8x768xf32>
    %517 = vector.extract_strided_slice %516 {offsets = [0, 384], sizes = [8, 384], strides = [1, 1]} : vector<8x768xf32> to vector<8x384xf32>
    %518 = arith.addf %517, %5 : vector<8x384xf32>
    %c0_140 = arith.constant 0 : index
    %c0_141 = arith.constant 0 : index
    %519 = vector.load %arg5[%c0_140, %c0_141] : memref<128x384xf32, #tpu.memory_space<vmem>>, vector<128x384xf32>
    %cst_142 = arith.constant dense<0.000000e+00> : vector<8x384xf32>
    %520 = tpu.matmul %481, %519, %cst_142 {dimension_numbers = #tpu.dot_dimension_numbers<[1], [0], [0], [1], [0, 0, 1, 1], [], []>} : vector<8x128xf32>, vector<128x384xf32>, vector<8x384xf32> -> vector<8x384xf32>
    %521 = vector.extract_strided_slice %518 {offsets = [0, 0], sizes = [8, 128], strides = [1, 1]} : vector<8x384xf32> to vector<8x128xf32>
    %522 = vector.extract_strided_slice %520 {offsets = [0, 0], sizes = [8, 128], strides = [1, 1]} : vector<8x384xf32> to vector<8x128xf32>
    %523 = arith.addf %521, %522 : vector<8x128xf32>
    %524 = arith.negf %523 : vector<8x128xf32>
    %525 = math.exp %524 : vector<8x128xf32>
    %cst_143 = arith.constant 1.000000e+00 : f32
    %526 = vector.broadcast %cst_143 : f32 to vector<8x128xf32>
    %527 = arith.addf %526, %525 : vector<8x128xf32>
    %528 = arith.divf %526, %527 : vector<8x128xf32>
    %529 = vector.extract_strided_slice %518 {offsets = [0, 128], sizes = [8, 128], strides = [1, 1]} : vector<8x384xf32> to vector<8x128xf32>
    %530 = vector.extract_strided_slice %520 {offsets = [0, 128], sizes = [8, 128], strides = [1, 1]} : vector<8x384xf32> to vector<8x128xf32>
    %531 = arith.addf %529, %530 : vector<8x128xf32>
    %532 = arith.negf %531 : vector<8x128xf32>
    %533 = math.exp %532 : vector<8x128xf32>
    %cst_144 = arith.constant 1.000000e+00 : f32
    %534 = vector.broadcast %cst_144 : f32 to vector<8x128xf32>
    %535 = arith.addf %534, %533 : vector<8x128xf32>
    %536 = arith.divf %534, %535 : vector<8x128xf32>
    %537 = vector.extract_strided_slice %518 {offsets = [0, 256], sizes = [8, 128], strides = [1, 1]} : vector<8x384xf32> to vector<8x128xf32>
    %538 = vector.extract_strided_slice %520 {offsets = [0, 256], sizes = [8, 128], strides = [1, 1]} : vector<8x384xf32> to vector<8x128xf32>
    %539 = arith.addf %538, %11 : vector<8x128xf32>
    %540 = arith.mulf %528, %539 : vector<8x128xf32>
    %541 = arith.addf %537, %540 : vector<8x128xf32>
    %542 = math.tanh %541 : vector<8x128xf32>
    %cst_145 = arith.constant 1.000000e+00 : f32
    %543 = vector.broadcast %cst_145 : f32 to vector<8x128xf32>
    %544 = arith.subf %543, %536 : vector<8x128xf32>
    %545 = arith.mulf %544, %542 : vector<8x128xf32>
    %546 = arith.mulf %536, %481 : vector<8x128xf32>
    %547 = arith.addf %545, %546 : vector<8x128xf32>
    %c0_146 = arith.constant 0 : index
    %c0_147 = arith.constant 0 : index
    %548 = vector.load %arg8[%c0_146, %c0_147] : memref<8x128xf32, #tpu.memory_space<vmem>>, vector<8x128xf32>
    tpu.vector_store %arg8[%c0_146, %c0_147], %547 {strides = array<i32>} : memref<8x128xf32, #tpu.memory_space<vmem>>, vector<8x128xf32>,
    return
  }
}

</mosaic_0001>

<llo_original>
// kernel: gru_model_forward.1
$region0: #{gru_model_forward.1}
  #allocation0 [shape = 'u32[]', space=smem, size = 0x4, offset = 0x4, fixed_abs, tag = 'smem constant byte address 0x4 - core index']
  #allocation1 [shape = 'u32[144,128]{1,0:T(1,128)}', space=vmem, size = 0x12000, scoped, tag = 'internal scratch']
  %s0 = inlined_call_operand.vmem [shape: f32[8,8,8], index: 0, kind: input, shape index: {}]
  %s1 = inlined_call_operand.vmem [shape: f32[8,384], index: 1, kind: input, shape index: {}]
  %s2 = inlined_call_operand.vmem [shape: f32[1,384], index: 2, kind: input, shape index: {}]
  %s3 = inlined_call_operand.vmem [shape: f32[1,128], index: 3, kind: input, shape index: {}]
  %s4 = inlined_call_operand.hbm [shape: f32[128,768], index: 4, kind: input, shape index: {}]
  %s5 = inlined_call_operand.hbm [shape: f32[128,384], index: 5, kind: input, shape index: {}]
  %s6 = inlined_call_operand.vmem [shape: f32[1,384], index: 6, kind: input, shape index: {}]
  %s7 = inlined_call_operand.vmem [shape: f32[1,128], index: 7, kind: input, shape index: {}]
  %s8 = inlined_call_operand.vmem [shape: f32[8,128], index: 8, kind: output, shape index: {}]
  %s9 = sld [smem:[#allocation0]]
  $region50: #{gru_model_forward.1} parent=0
    _
  %s11 = ssub.s32 1, %s9
  %s12 = scalar_select 0, %s11, %s9
  $region1: #{gru_model_forward.1} parent=0
    #allocation2 [shape = 'u8[393216]{0}', space=vmem, size = 0x60000, scoped, tag = 'input window, operand 4, single buffered']
    #allocation3 [shape = 's32[1]{0}', space=sflag, size = 0x4, scoped, tag = 'scoped memory for gru_model_forward.1']
    #allocation4 [shape = 'u8[196608]{0}', space=vmem, size = 0x30000, scoped, tag = 'input window, operand 5, single buffered']
    #allocation5 [shape = 's32[1]{0}', space=sflag, size = 0x4, scoped, tag = 'scoped memory for gru_model_forward.1']
    %13 = vsyncpa [#allocation3], 0
    %14 = vsyncpa [#allocation5], 0
    // Predicated region
    $region2: #{gru_model_forward.1} parent=1 // pred_check
      _
    $region3: #{gru_model_forward.1} parent=1 // pred_check_branch
      %16 = sbr.rel (0) target = $region5
    $region4: #{gru_model_forward.1} parent=1 // pred_region
      _
    $region5: #{gru_model_forward.1} parent=1 // pred_fallthru
      _
    // Predicated region
    $region6: #{gru_model_forward.1} parent=1 // pred_check
      _
    $region7: #{gru_model_forward.1} parent=1 // pred_check_branch
      %18 = sbr.rel (0) target = $region9
    $region8: #{gru_model_forward.1} parent=1 // pred_region
      _
    $region9: #{gru_model_forward.1} parent=1 // pred_fallthru
      _
    // Predicated region
    $region10: #{gru_model_forward.1} parent=1 // pred_check
      _
    $region11: #{gru_model_forward.1} parent=1 // pred_check_branch
      %20 = sbr.rel (0) target = $region13
    $region12: #{gru_model_forward.1} parent=1 // pred_region
      _
    $region13: #{gru_model_forward.1} parent=1 // pred_fallthru
      _
    // Predicated region
    $region14: #{gru_model_forward.1} parent=1 // pred_check
      _
    $region15: #{gru_model_forward.1} parent=1 // pred_check_branch
      %22 = sbr.rel (0) target = $region17
    $region16: #{gru_model_forward.1} parent=1 // pred_region
      _
    $region17: #{gru_model_forward.1} parent=1 // pred_fallthru
      _
    // Predicated region
    $region18: #{gru_model_forward.1} parent=1 // pred_check
      _
    $region19: #{gru_model_forward.1} parent=1 // pred_check_branch
      %24 = sbr.rel (0) target = $region21
    $region20: #{gru_model_forward.1} parent=1 // pred_region
      %s26 = ssub.s32 12288, 12288
      %27 = vsyncadd [#allocation3], %s26
      %s28 = sshll.u32 [#allocation2], 4
      %s29 = int_to_ptr.vmem [resolvable:$true] %s28
      %34 = dma.hbm_to_vmem [thread:$0]  %s4, 12288, %s29, [#allocation3], 768, 768, 48
    $region21: #{gru_model_forward.1} parent=1 // pred_fallthru
      _
    // Predicated region
    $region22: #{gru_model_forward.1} parent=1 // pred_check
      _
    $region23: #{gru_model_forward.1} parent=1 // pred_check_branch
      %36 = sbr.rel (0) target = $region25
    $region24: #{gru_model_forward.1} parent=1 // pred_region
      %s38 = ssub.s32 6144, 6144
      %39 = vsyncadd [#allocation5], %s38
      %s40 = sshll.u32 [#allocation4], 4
      %s41 = int_to_ptr.vmem [resolvable:$true] %s40
      %46 = dma.hbm_to_vmem [thread:$0]  %s5, 6144, %s41, [#allocation5], 384, 384, 24
    $region25: #{gru_model_forward.1} parent=1 // pred_fallthru
      _
    // Predicated region
    $region26: #{gru_model_forward.1} parent=1 // pred_check
      _
    $region27: #{gru_model_forward.1} parent=1 // pred_check_branch
      %48 = sbr.rel (0) target = $region29
    $region28: #{gru_model_forward.1} parent=1 // pred_region
      _
    $region29: #{gru_model_forward.1} parent=1 // pred_fallthru
      _
    // Predicated region
    $region30: #{gru_model_forward.1} parent=1 // pred_check
      _
    $region31: #{gru_model_forward.1} parent=1 // pred_check_branch
      %50 = sbr.rel (0) target = $region33
    $region32: #{gru_model_forward.1} parent=1 // pred_region
      _
    $region33: #{gru_model_forward.1} parent=1 // pred_fallthru
      _
    // Predicated region
    $region34: #{gru_model_forward.1} parent=1 // pred_check
      _
    $region35: #{gru_model_forward.1} parent=1 // pred_check_branch
      %52 = sbr.rel (0) target = $region37
    $region36: #{gru_model_forward.1} parent=1 // pred_region
      %53 = dma.done [#allocation3], 12288
    $region37: #{gru_model_forward.1} parent=1 // pred_fallthru
      _
    // Predicated region
    $region38: #{gru_model_forward.1} parent=1 // pred_check
      _
    $region39: #{gru_model_forward.1} parent=1 // pred_check_branch
      %55 = sbr.rel (0) target = $region41
    $region40: #{gru_model_forward.1} parent=1 // pred_region
      %56 = dma.done [#allocation5], 6144
    $region41: #{gru_model_forward.1} parent=1 // pred_fallthru
      _
    %v57 = vld [vmem:[%s2] sm:$0x7]
    %v59 = vlaneseq
    %v60 = vshrl.u32 %v59, 7
    %v61 = vsub.s32 0, %v60
    %v62 = vrot.slane %v57, %v61
    %v63 = vlaneseq
    %v64 = vshrl.u32 %v63, 7
    %v65 = vsub.s32 1, %v64
    %v66 = vrot.slane %v57, %v65
    %v67 = vlaneseq
    %v68 = vshrl.u32 %v67, 7
    %v69 = vsub.s32 2, %v68
    %v70 = vrot.slane %v57, %v69
    %v74 = vld [vmem:[%s6] sm:$0x7]
    %v76 = vlaneseq
    %v77 = vshrl.u32 %v76, 7
    %v78 = vsub.s32 0, %v77
    %v79 = vrot.slane %v74, %v78
    %v80 = vlaneseq
    %v81 = vshrl.u32 %v80, 7
    %v82 = vsub.s32 1, %v81
    %v83 = vrot.slane %v74, %v82
    %v84 = vlaneseq
    %v85 = vshrl.u32 %v84, 7
    %v86 = vsub.s32 2, %v85
    %v87 = vrot.slane %v74, %v86
    %v91 = vld [vmem:[%s3] sm:$0x1]
    %v93 = vlaneseq
    %v94 = vshrl.u32 %v93, 7
    %v95 = vsub.s32 0, %v94
    %v96 = vrot.slane %v91, %v95
    %v98 = vld [vmem:[%s7] sm:$0x1]
    %v100 = vlaneseq
    %v101 = vshrl.u32 %v100, 7
    %v102 = vsub.s32 0, %v101
    %v103 = vrot.slane %v98, %v102
    %v105 = vld [vmem:[%s0] sm:$0xff]
    %v106 = vld [vmem:[%s1] sm:$0xff]
    %v107 = vld [vmem:[%s1 + $0x8] sm:$0xff]
    %v108 = vld [vmem:[%s1 + $0x10] sm:$0xff]
    %vm109 = vcmask 64512
    %v111 = vsel %vm109, %v105, 0
    %113 = vmatprep.subr.mxu0 %v107
    %114 = vmatpush1.msra.mxu0 %v106
    %115 = vmatprep.subr.mxu0 0.0
    %116 = vmatpush1.msra.mxu0 0.0
    %117 = vmatprep.subr.mxu0 0.0
    %118 = vmatpush1.msra.mxu0 0.0
    %119 = vmatprep.subr.mxu0 0.0
    %120 = vmatpush1.msra.mxu0 0.0
    %121 = vmatprep.subr.mxu0 0.0
    %122 = vmatpush1.msra.mxu0 0.0
    %123 = vmatprep.subr.mxu0 0.0
    %124 = vmatpush1.msra.mxu0 0.0
    %125 = vmatprep.subr.mxu0 0.0
    %126 = vmatpush1.msra.mxu0 0.0
    %127 = vmatprep.subr.mxu0 0.0
    %128 = vmatpush1.msra.mxu0 0.0
    %129 = vmatprep.subr.mxu0 0.0
    %130 = vmatpush1.msra.mxu0 0.0
    %131 = vmatprep.subr.mxu0 0.0
    %132 = vmatpush1.msra.mxu0 0.0
    %133 = vmatprep.subr.mxu0 0.0
    %134 = vmatpush1.msra.mxu0 0.0
    %135 = vmatprep.subr.mxu0 0.0
    %136 = vmatpush1.msra.mxu0 0.0
    %137 = vmatprep.subr.mxu0 0.0
    %138 = vmatpush1.msra.mxu0 0.0
    %139 = vmatprep.subr.mxu0 0.0
    %140 = vmatpush1.msra.mxu0 0.0
    %141 = vmatprep.subr.mxu0 0.0
    %142 = vmatpush1.msra.mxu0 0.0
    %143 = vmatprep.subr.mxu0 0.0
    %144 = vmatpush1.msra.mxu0 0.0
    %145 = vmatprep.subr.mxu0 0.0
    %146 = vmatpush1.msra.mxu0 0.0
    %147 = vmatprep.subr.mxu0 0.0
    %148 = vmatpush1.msra.mxu0 0.0
    %149 = vmatprep.subr.mxu0 0.0
    %150 = vmatpush1.msra.mxu0 0.0
    %151 = vmatprep.subr.mxu0 0.0
    %152 = vmatpush1.msra.mxu0 0.0
    %153 = vmatprep.subr.mxu0 0.0
    %154 = vmatpush1.msra.mxu0 0.0
    %155 = vmatprep.subr.mxu0 0.0
    %156 = vmatpush1.msra.mxu0 0.0
    %157 = vmatprep.subr.mxu0 0.0
    %158 = vmatpush1.msra.mxu0 0.0
    %159 = vmatprep.subr.mxu0 0.0
    %160 = vmatpush1.msra.mxu0 0.0
    %161 = vmatprep.subr.mxu0 0.0
    %162 = vmatpush1.msra.mxu0 0.0
    %163 = vmatprep.subr.mxu0 0.0
    %164 = vmatpush1.msra.mxu0 0.0
    %165 = vmatprep.subr.mxu0 0.0
    %166 = vmatpush1.msra.mxu0 0.0
    %167 = vmatprep.subr.mxu0 0.0
    %168 = vmatpush1.msra.mxu0 0.0
    %169 = vmatprep.subr.mxu0 0.0
    %170 = vmatpush1.msra.mxu0 0.0
    %171 = vmatprep.subr.mxu0 0.0
    %172 = vmatpush1.msra.mxu0 0.0
    %173 = vmatprep.subr.mxu0 0.0
    %174 = vmatpush1.msra.mxu0 0.0
    %175 = vmatprep.subr.mxu0 0.0
    %176 = vmatpush1.msra.mxu0 0.0
    %177 = vmatprep.mubr.f32.mxu0 0.0
    %178 = vmatmul.mubr.f32.gmra.mrb[0].mxu0 %v111
    %v179 = vpop.f32.mrb[0].mxu0
    %v180 = vadd.f32 %v62, %v179
    %v181 = vpop.f32.mrb[0].mxu0
    %v182 = vadd.f32 %v66, %v181
    %183 = vdwg.mxu0
    %184 = vmatprep.subr.mxu0 0.0
    %185 = vmatpush1.msra.mxu0 %v108
    %186 = vmatprep.subr.mxu0 0.0
    %187 = vmatpush1.msra.mxu0 0.0
    %188 = vmatprep.subr.mxu0 0.0
    %189 = vmatpush1.msra.mxu0 0.0
    %190 = vmatprep.subr.mxu0 0.0
    %191 = vmatpush1.msra.mxu0 0.0
    %192 = vmatprep.subr.mxu0 0.0
    %193 = vmatpush1.msra.mxu0 0.0
    %194 = vmatprep.subr.mxu0 0.0
    %195 = vmatpush1.msra.mxu0 0.0
    %196 = vmatprep.subr.mxu0 0.0
    %197 = vmatpush1.msra.mxu0 0.0
    %198 = vmatprep.subr.mxu0 0.0
    %199 = vmatpush1.msra.mxu0 0.0
    %200 = vmatprep.subr.mxu0 0.0
    %201 = vmatpush1.msra.mxu0 0.0
    %202 = vmatprep.subr.mxu0 0.0
    %203 = vmatpush1.msra.mxu0 0.0
    %204 = vmatprep.subr.mxu0 0.0
    %205 = vmatpush1.msra.mxu0 0.0
    %206 = vmatprep.subr.mxu0 0.0
    %207 = vmatpush1.msra.mxu0 0.0
    %208 = vmatprep.subr.mxu0 0.0
    %209 = vmatpush1.msra.mxu0 0.0
    %210 = vmatprep.subr.mxu0 0.0
    %211 = vmatpush1.msra.mxu0 0.0
    %212 = vmatprep.subr.mxu0 0.0
    %213 = vmatpush1.msra.mxu0 0.0
    %214 = vmatprep.subr.mxu0 0.0
    %215 = vmatpush1.msra.mxu0 0.0
    %216 = vmatprep.subr.mxu0 0.0
    %217 = vmatpush1.msra.mxu0 0.0
    %218 = vmatprep.subr.mxu0 0.0
    %219 = vmatpush1.msra.mxu0 0.0
    %220 = vmatprep.subr.mxu0 0.0
    %221 = vmatpush1.msra.mxu0 0.0
    %222 = vmatprep.subr.mxu0 0.0
    %223 = vmatpush1.msra.mxu0 0.0
    %224 = vmatprep.subr.mxu0 0.0
    %225 = vmatpush1.msra.mxu0 0.0
    %226 = vmatprep.subr.mxu0 0.0
    %227 = vmatpush1.msra.mxu0 0.0
    %228 = vmatprep.subr.mxu0 0.0
    %229 = vmatpush1.msra.mxu0 0.0
    %230 = vmatprep.subr.mxu0 0.0
    %231 = vmatpush1.msra.mxu0 0.0
    %232 = vmatprep.subr.mxu0 0.0
    %233 = vmatpush1.msra.mxu0 0.0
    %234 = vmatprep.subr.mxu0 0.0
    %235 = vmatpush1.msra.mxu0 0.0
    %236 = vmatprep.subr.mxu0 0.0
    %237 = vmatpush1.msra.mxu0 0.0
    %238 = vmatprep.subr.mxu0 0.0
    %239 = vmatpush1.msra.mxu0 0.0
    %240 = vmatprep.subr.mxu0 0.0
    %241 = vmatpush1.msra.mxu0 0.0
    %242 = vmatprep.subr.mxu0 0.0
    %243 = vmatpush1.msra.mxu0 0.0
    %244 = vmatprep.subr.mxu0 0.0
    %245 = vmatpush1.msra.mxu0 0.0
    %246 = vmatprep.subr.mxu0 0.0
    %247 = vmatpush1.msra.mxu0 0.0
    %248 = vmatprep.mubr.f32.mxu0 0.0
    %249 = vmatmul.mubr.f32.gmra.mrb[0].mxu0 %v111
    %v250 = vpop.f32.mrb[0].mxu0
    %v251 = vadd.f32 %v70, %v250
    %v252 = vpop.f32.mrb[0].mxu0
    %253 = vdwg.mxu0
    %v254 = vadd.f32 %v180, 0.0
    %v255 = vxor.u32 %v254, 2147483648
    %v256 = vmul.f32 %v255, 1.442695
    %v257 = vpow.pop %v256
    %v258 = vadd.f32 %v257, 1.0
    %v259 = vrcp.pop %v258
    %v260 = vmul.f32 1.0, %v259
    %v261 = vadd.f32 %v182, 0.0
    %v262 = vxor.u32 %v261, 2147483648
    %v263 = vmul.f32 %v262, 1.442695
    %v264 = vpow.pop %v263
    %v265 = vadd.f32 %v264, 1.0
    %v266 = vrcp.pop %v265
    %v267 = vmul.f32 1.0, %v266
    %v268 = vadd.f32 %v96, 0.0
    %v269 = vmul.f32 %v260, %v268
    %v270 = vadd.f32 %v251, %v269
    %v271 = vtanh.pop %v270
    %v272 = vsub.f32 1.0, %v267
    %v273 = vmul.f32 %v272, %v271
    %v274 = vmul.f32 %v267, 0.0
    %v275 = vadd.f32 %v273, %v274
    %v276 = vld [vmem:[#allocation2] sm:$0xff]
    %v277 = vld [vmem:[#allocation2 + $0x8] sm:$0xff]
    %v278 = vld [vmem:[#allocation2 + $0x10] sm:$0xff]
    %v279 = vld [vmem:[#allocation2 + $0x18] sm:$0xff]
    %v280 = vld [vmem:[#allocation2 + $0x20] sm:$0xff]
    %v281 = vld [vmem:[#allocation2 + $0x28] sm:$0xff]
    %v282 = vld [vmem:[#allocation2 + $0x30] sm:$0xff]
    %v283 = vld [vmem:[#allocation2 + $0x38] sm:$0xff]
    %v284 = vld [vmem:[#allocation2 + $0x40] sm:$0xff]
    %v285 = vld [vmem:[#allocation2 + $0x48] sm:$0xff]
    %v286 = vld [vmem:[#allocation2 + $0x50] sm:$0xff]
    %v287 = vld [vmem:[#allocation2 + $0x58] sm:$0xff]
    %v288 = vld [vmem:[#allocation2 + $0x60] sm:$0xff]
    %v289 = vld [vmem:[#allocation2 + $0x68] sm:$0xff]
    %v290 = vld [vmem:[#allocation2 + $0x70] sm:$0xff]
    %v291 = vld [vmem:[#allocation2 + $0x78] sm:$0xff]
    %v292 = vld [vmem:[#allocation2 + $0x80] sm:$0xff]
    %v293 = vld [vmem:[#allocation2 + $0x88] sm:$0xff]
    %v294 = vld [vmem:[#allocation2 + $0x90] sm:$0xff]
    %v295 = vld [vmem:[#allocation2 + $0x98] sm:$0xff]
    %v296 = vld [vmem:[#allocation2 + $0xa0] sm:$0xff]
    %v297 = vld [vmem:[#allocation2 + $0xa8] sm:$0xff]
    %v298 = vld [vmem:[#allocation2 + $0xb0] sm:$0xff]
    %v299 = vld [vmem:[#allocation2 + $0xb8] sm:$0xff]
    %v300 = vld [vmem:[#allocation2 + $0xc0] sm:$0xff]
    %v301 = vld [vmem:[#allocation2 + $0xc8] sm:$0xff]
    %v302 = vld [vmem:[#allocation2 + $0xd0] sm:$0xff]
    %v303 = vld [vmem:[#allocation2 + $0xd8] sm:$0xff]
    %v304 = vld [vmem:[#allocation2 + $0xe0] sm:$0xff]
    %v305 = vld [vmem:[#allocation2 + $0xe8] sm:$0xff]
    %v306 = vld [vmem:[#allocation2 + $0xf0] sm:$0xff]
    %v307 = vld [vmem:[#allocation2 + $0xf8] sm:$0xff]
    %v308 = vld [vmem:[#allocation2 + $0x100] sm:$0xff]
    %v309 = vld [vmem:[#allocation2 + $0x108] sm:$0xff]
    %v310 = vld [vmem:[#allocation2 + $0x110] sm:$0xff]
    %v311 = vld [vmem:[#allocation2 + $0x118] sm:$0xff]
    %v312 = vld [vmem:[#allocation2 + $0x120] sm:$0xff]
    %v313 = vld [vmem:[#allocation2 + $0x128] sm:$0xff]
    %v314 = vld [vmem:[#allocation2 + $0x130] sm:$0xff]
    %v315 = vld [vmem:[#allocation2 + $0x138] sm:$0xff]
    %v316 = vld [vmem:[#allocation2 + $0x140] sm:$0xff]
    %v317 = vld [vmem:[#allocation2 + $0x148] sm:$0xff]
    %v318 = vld [vmem:[#allocation2 + $0x150] sm:$0xff]
    %v319 = vld [vmem:[#allocation2 + $0x158] sm:$0xff]
    %v320 = vld [vmem:[#allocation2 + $0x160] sm:$0xff]
    %v321 = vld [vmem:[#allocation2 + $0x168] sm:$0xff]
    %v322 = vld [vmem:[#allocation2 + $0x170] sm:$0xff]
    %v323 = vld [vmem:[#allocation2 + $0x178] sm:$0xff]
    %v324 = vld [vmem:[#allocation2 + $0x180] sm:$0xff]
    %v325 = vld [vmem:[#allocation2 + $0x188] sm:$0xff]
    %v326 = vld [vmem:[#allocation2 + $0x190] sm:$0xff]
    %v327 = vld [vmem:[#allocation2 + $0x198] sm:$0xff]
    %v328 = vld [vmem:[#allocation2 + $0x1a0] sm:$0xff]
    %v329 = vld [vmem:[#allocation2 + $0x1a8] sm:$0xff]
    %v330 = vld [vmem:[#allocation2 + $0x1b0] sm:$0xff]
    %v331 = vld [vmem:[#allocation2 + $0x1b8] sm:$0xff]
    %v332 = vld [vmem:[#allocation2 + $0x1c0] sm:$0xff]
    %v333 = vld [vmem:[#allocation2 + $0x1c8] sm:$0xff]
    %v334 = vld [vmem:[#allocation2 + $0x1d0] sm:$0xff]
    %v335 = vld [vmem:[#allocation2 + $0x1d8] sm:$0xff]
    %v336 = vld [vmem:[#allocation2 + $0x1e0] sm:$0xff]
    %v337 = vld [vmem:[#allocation2 + $0x1e8] sm:$0xff]
    %v338 = vld [vmem:[#allocation2 + $0x1f0] sm:$0xff]
    %v339 = vld [vmem:[#allocation2 + $0x1f8] sm:$0xff]
    %v340 = vld [vmem:[#allocation2 + $0x200] sm:$0xff]
    %v341 = vld [vmem:[#allocation2 + $0x208] sm:$0xff]
    %v342 = vld [vmem:[#allocation2 + $0x210] sm:$0xff]
    %v343 = vld [vmem:[#allocation2 + $0x218] sm:$0xff]
    %v344 = vld [vmem:[#allocation2 + $0x220] sm:$0xff]
    %v345 = vld [vmem:[#allocation2 + $0x228] sm:$0xff]
    %v346 = vld [vmem:[#allocation2 + $0x230] sm:$0xff]
    %v347 = vld [vmem:[#allocation2 + $0x238] sm:$0xff]
    %v348 = vld [vmem:[#allocation2 + $0x240] sm:$0xff]
    %v349 = vld [vmem:[#allocation2 + $0x248] sm:$0xff]
    %v350 = vld [vmem:[#allocation2 + $0x250] sm:$0xff]
    %v351 = vld [vmem:[#allocation2 + $0x258] sm:$0xff]
    %v352 = vld [vmem:[#allocation2 + $0x260] sm:$0xff]
    %v353 = vld [vmem:[#allocation2 + $0x268] sm:$0xff]
    %v354 = vld [vmem:[#allocation2 + $0x270] sm:$0xff]
    %v355 = vld [vmem:[#allocation2 + $0x278] sm:$0xff]
    %v356 = vld [vmem:[#allocation2 + $0x280] sm:$0xff]
    %v357 = vld [vmem:[#allocation2 + $0x288] sm:$0xff]
    %v358 = vld [vmem:[#allocation2 + $0x290] sm:$0xff]
    %v359 = vld [vmem:[#allocation2 + $0x298] sm:$0xff]
    %v360 = vld [vmem:[#allocation2 + $0x2a0] sm:$0xff]
    %v361 = vld [vmem:[#allocation2 + $0x2a8] sm:$0xff]
    %v362 = vld [vmem:[#allocation2 + $0x2b0] sm:$0xff]
    %v363 = vld [vmem:[#allocation2 + $0x2b8] sm:$0xff]
    %v364 = vld [vmem:[#allocation2 + $0x2c0] sm:$0xff]
    %v365 = vld [vmem:[#allocation2 + $0x2c8] sm:$0xff]
    %v366 = vld [vmem:[#allocation2 + $0x2d0] sm:$0xff]
    %v367 = vld [vmem:[#allocation2 + $0x2d8] sm:$0xff]
    %v368 = vld [vmem:[#allocation2 + $0x2e0] sm:$0xff]
    %v369 = vld [vmem:[#allocation2 + $0x2e8] sm:$0xff]
    %v370 = vld [vmem:[#allocation2 + $0x2f0] sm:$0xff]
    %v371 = vld [vmem:[#allocation2 + $0x2f8] sm:$0xff]
    %372 = vmatprep.subr.mxu0 %v277
    %373 = vmatpush1.msra.mxu0 %v276
    %374 = vmatprep.subr.mxu0 %v283
    %375 = vmatpush1.msra.mxu0 %v282
    %376 = vmatprep.subr.mxu0 %v289
    %377 = vmatpush1.msra.mxu0 %v288
    %378 = vmatprep.subr.mxu0 %v295
    %379 = vmatpush1.msra.mxu0 %v294
    %380 = vmatprep.subr.mxu0 %v301
    %381 = vmatpush1.msra.mxu0 %v300
    %382 = vmatprep.subr.mxu0 %v307
    %383 = vmatpush1.msra.mxu0 %v306
    %384 = vmatprep.subr.mxu0 %v313
    %385 = vmatpush1.msra.mxu0 %v312
    %386 = vmatprep.subr.mxu0 %v319
    %387 = vmatpush1.msra.mxu0 %v318
    %388 = vmatprep.subr.mxu0 %v325
    %389 = vmatpush1.msra.mxu0 %v324
    %390 = vmatprep.subr.mxu0 %v331
    %391 = vmatpush1.msra.mxu0 %v330
    %392 = vmatprep.subr.mxu0 %v337
    %393 = vmatpush1.msra.mxu0 %v336
    %394 = vmatprep.subr.mxu0 %v343
    %395 = vmatpush1.msra.mxu0 %v342
    %396 = vmatprep.subr.mxu0 %v349
    %397 = vmatpush1.msra.mxu0 %v348
    %398 = vmatprep.subr.mxu0 %v355
    %399 = vmatpush1.msra.mxu0 %v354
    %400 = vmatprep.subr.mxu0 %v361
    %401 = vmatpush1.msra.mxu0 %v360
    %402 = vmatprep.subr.mxu0 %v367
    %403 = vmatpush1.msra.mxu0 %v366
    %404 = vmatprep.subr.mxu0 0.0
    %405 = vmatpush1.msra.mxu0 0.0
    %406 = vmatprep.subr.mxu0 0.0
    %407 = vmatpush1.msra.mxu0 0.0
    %408 = vmatprep.subr.mxu0 0.0
    %409 = vmatpush1.msra.mxu0 0.0
    %410 = vmatprep.subr.mxu0 0.0
    %411 = vmatpush1.msra.mxu0 0.0
    %412 = vmatprep.subr.mxu0 0.0
    %413 = vmatpush1.msra.mxu0 0.0
    %414 = vmatprep.subr.mxu0 0.0
    %415 = vmatpush1.msra.mxu0 0.0
    %416 = vmatprep.subr.mxu0 0.0
    %417 = vmatpush1.msra.mxu0 0.0
    %418 = vmatprep.subr.mxu0 0.0
    %419 = vmatpush1.msra.mxu0 0.0
    %420 = vmatprep.subr.mxu0 0.0
    %421 = vmatpush1.msra.mxu0 0.0
    %422 = vmatprep.subr.mxu0 0.0
    %423 = vmatpush1.msra.mxu0 0.0
    %424 = vmatprep.subr.mxu0 0.0
    %425 = vmatpush1.msra.mxu0 0.0
    %426 = vmatprep.subr.mxu0 0.0
    %427 = vmatpush1.msra.mxu0 0.0
    %428 = vmatprep.subr.mxu0 0.0
    %429 = vmatpush1.msra.mxu0 0.0
    %430 = vmatprep.subr.mxu0 0.0
    %431 = vmatpush1.msra.mxu0 0.0
    %432 = vmatprep.subr.mxu0 0.0
    %433 = vmatpush1.msra.mxu0 0.0
    %434 = vmatprep.subr.mxu0 0.0
    %435 = vmatpush1.msra.mxu0 0.0
    %436 = vmatprep.mubr.f32.mxu0 0.0
    %437 = vmatmul.mubr.f32.gmra.mrb[0].mxu0 %v275
    %v438 = vpop.f32.mrb[0].mxu0
    %v439 = vadd.f32 0.0, %v438
    %v440 = vpop.f32.mrb[0].mxu0
    %v441 = vadd.f32 0.0, %v440
    %442 = vdwg.mxu0
    %443 = vmatprep.subr.mxu0 %v279
    %444 = vmatpush1.msra.mxu0 %v278
    %445 = vmatprep.subr.mxu0 %v285
    %446 = vmatpush1.msra.mxu0 %v284
    %447 = vmatprep.subr.mxu0 %v291
    %448 = vmatpush1.msra.mxu0 %v290
    %449 = vmatprep.subr.mxu0 %v297
    %450 = vmatpush1.msra.mxu0 %v296
    %451 = vmatprep.subr.mxu0 %v303
    %452 = vmatpush1.msra.mxu0 %v302
    %453 = vmatprep.subr.mxu0 %v309
    %454 = vmatpush1.msra.mxu0 %v308
    %455 = vmatprep.subr.mxu0 %v315
    %456 = vmatpush1.msra.mxu0 %v314
    %457 = vmatprep.subr.mxu0 %v321
    %458 = vmatpush1.msra.mxu0 %v320
    %459 = vmatprep.subr.mxu0 %v327
    %460 = vmatpush1.msra.mxu0 %v326
    %461 = vmatprep.subr.mxu0 %v333
    %462 = vmatpush1.msra.mxu0 %v332
    %463 = vmatprep.subr.mxu0 %v339
    %464 = vmatpush1.msra.mxu0 %v338
    %465 = vmatprep.subr.mxu0 %v345
    %466 = vmatpush1.msra.mxu0 %v344
    %467 = vmatprep.subr.mxu0 %v351
    %468 = vmatpush1.msra.mxu0 %v350
    %469 = vmatprep.subr.mxu0 %v357
    %470 = vmatpush1.msra.mxu0 %v356
    %471 = vmatprep.subr.mxu0 %v363
    %472 = vmatpush1.msra.mxu0 %v362
    %473 = vmatprep.subr.mxu0 %v369
    %474 = vmatpush1.msra.mxu0 %v368
    %475 = vmatprep.subr.mxu0 0.0
    %476 = vmatpush1.msra.mxu0 0.0
    %477 = vmatprep.subr.mxu0 0.0
    %478 = vmatpush1.msra.mxu0 0.0
    %479 = vmatprep.subr.mxu0 0.0
    %480 = vmatpush1.msra.mxu0 0.0
    %481 = vmatprep.subr.mxu0 0.0
    %482 = vmatpush1.msra.mxu0 0.0
    %483 = vmatprep.subr.mxu0 0.0
    %484 = vmatpush1.msra.mxu0 0.0
    %485 = vmatprep.subr.mxu0 0.0
    %486 = vmatpush1.msra.mxu0 0.0
    %487 = vmatprep.subr.mxu0 0.0
    %488 = vmatpush1.msra.mxu0 0.0
    %489 = vmatprep.subr.mxu0 0.0
    %490 = vmatpush1.msra.mxu0 0.0
    %491 = vmatprep.subr.mxu0 0.0
    %492 = vmatpush1.msra.mxu0 0.0
    %493 = vmatprep.subr.mxu0 0.0
    %494 = vmatpush1.msra.mxu0 0.0
    %495 = vmatprep.subr.mxu0 0.0
    %496 = vmatpush1.msra.mxu0 0.0
    %497 = vmatprep.subr.mxu0 0.0
    %498 = vmatpush1.msra.mxu0 0.0
    %499 = vmatprep.subr.mxu0 0.0
    %500 = vmatpush1.msra.mxu0 0.0
    %501 = vmatprep.subr.mxu0 0.0
    %502 = vmatpush1.msra.mxu0 0.0
    %503 = vmatprep.subr.mxu0 0.0
    %504 = vmatpush1.msra.mxu0 0.0
    %505 = vmatprep.subr.mxu0 0.0
    %506 = vmatpush1.msra.mxu0 0.0
    %507 = vmatprep.mubr.f32.mxu0 0.0
    %508 = vmatmul.mubr.f32.gmra.mrb[0].mxu0 %v275
    %v509 = vpop.f32.mrb[0].mxu0
    %v510 = vadd.f32 0.0, %v509
    %v511 = vpop.f32.mrb[0].mxu0
    %v512 = vadd.f32 0.0, %v511
    %513 = vdwg.mxu0
    %514 = vmatprep.subr.mxu0 %v281
    %515 = vmatpush1.msra.mxu0 %v280
    %516 = vmatprep.subr.mxu0 %v287
    %517 = vmatpush1.msra.mxu0 %v286
    %518 = vmatprep.subr.mxu0 %v293
    %519 = vmatpush1.msra.mxu0 %v292
    %520 = vmatprep.subr.mxu0 %v299
    %521 = vmatpush1.msra.mxu0 %v298
    %522 = vmatprep.subr.mxu0 %v305
    %523 = vmatpush1.msra.mxu0 %v304
    %524 = vmatprep.subr.mxu0 %v311
    %525 = vmatpush1.msra.mxu0 %v310
    %526 = vmatprep.subr.mxu0 %v317
    %527 = vmatpush1.msra.mxu0 %v316
    %528 = vmatprep.subr.mxu0 %v323
    %529 = vmatpush1.msra.mxu0 %v322
    %530 = vmatprep.subr.mxu0 %v329
    %531 = vmatpush1.msra.mxu0 %v328
    %532 = vmatprep.subr.mxu0 %v335
    %533 = vmatpush1.msra.mxu0 %v334
    %534 = vmatprep.subr.mxu0 %v341
    %535 = vmatpush1.msra.mxu0 %v340
    %536 = vmatprep.subr.mxu0 %v347
    %537 = vmatpush1.msra.mxu0 %v346
    %538 = vmatprep.subr.mxu0 %v353
    %539 = vmatpush1.msra.mxu0 %v352
    %540 = vmatprep.subr.mxu0 %v359
    %541 = vmatpush1.msra.mxu0 %v358
    %542 = vmatprep.subr.mxu0 %v365
    %543 = vmatpush1.msra.mxu0 %v364
    %544 = vmatprep.subr.mxu0 %v371
    %545 = vmatpush1.msra.mxu0 %v370
    %546 = vmatprep.subr.mxu0 0.0
    %547 = vmatpush1.msra.mxu0 0.0
    %548 = vmatprep.subr.mxu0 0.0
    %549 = vmatpush1.msra.mxu0 0.0
    %550 = vmatprep.subr.mxu0 0.0
    %551 = vmatpush1.msra.mxu0 0.0
    %552 = vmatprep.subr.mxu0 0.0
    %553 = vmatpush1.msra.mxu0 0.0
    %554 = vmatprep.subr.mxu0 0.0
    %555 = vmatpush1.msra.mxu0 0.0
    %556 = vmatprep.subr.mxu0 0.0
    %557 = vmatpush1.msra.mxu0 0.0
    %558 = vmatprep.subr.mxu0 0.0
    %559 = vmatpush1.msra.mxu0 0.0
    %560 = vmatprep.subr.mxu0 0.0
    %561 = vmatpush1.msra.mxu0 0.0
    %562 = vmatprep.subr.mxu0 0.0
    %563 = vmatpush1.msra.mxu0 0.0
    %564 = vmatprep.subr.mxu0 0.0
    %565 = vmatpush1.msra.mxu0 0.0
    %566 = vmatprep.subr.mxu0 0.0
    %567 = vmatpush1.msra.mxu0 0.0
    %568 = vmatprep.subr.mxu0 0.0
    %569 = vmatpush1.msra.mxu0 0.0
    %570 = vmatprep.subr.mxu0 0.0
    %571 = vmatpush1.msra.mxu0 0.0
    %572 = vmatprep.subr.mxu0 0.0
    %573 = vmatpush1.msra.mxu0 0.0
    %574 = vmatprep.subr.mxu0 0.0
    %575 = vmatpush1.msra.mxu0 0.0
    %576 = vmatprep.subr.mxu0 0.0
    %577 = vmatpush1.msra.mxu0 0.0
    %578 = vmatprep.mubr.f32.mxu0 0.0
    %579 = vmatmul.mubr.f32.gmra.mrb[0].mxu0 %v275
    %v580 = vpop.f32.mrb[0].mxu0
    %v581 = vadd.f32 0.0, %v580
    %v582 = vpop.f32.mrb[0].mxu0
    %v583 = vadd.f32 0.0, %v582
    %584 = vdwg.mxu0
    %v585 = vadd.f32 %v512, %v79
    %v586 = vadd.f32 %v581, %v83
    %v587 = vadd.f32 %v583, %v87
    %v588 = vld [vmem:[#allocation4] sm:$0xff]
    %v589 = vld [vmem:[#allocation4 + $0x8] sm:$0xff]
    %v590 = vld [vmem:[#allocation4 + $0x10] sm:$0xff]
    %v591 = vld [vmem:[#allocation4 + $0x18] sm:$0xff]
    %v592 = vld [vmem:[#allocation4 + $0x20] sm:$0xff]
    %v593 = vld [vmem:[#allocation4 + $0x28] sm:$0xff]
    %v594 = vld [vmem:[#allocation4 + $0x30] sm:$0xff]
    %v595 = vld [vmem:[#allocation4 + $0x38] sm:$0xff]
    %v596 = vld [vmem:[#allocation4 + $0x40] sm:$0xff]
    %v597 = vld [vmem:[#allocation4 + $0x48] sm:$0xff]
    %v598 = vld [vmem:[#allocation4 + $0x50] sm:$0xff]
    %v599 = vld [vmem:[#allocation4 + $0x58] sm:$0xff]
    %v600 = vld [vmem:[#allocation4 + $0x60] sm:$0xff]
    %v601 = vld [vmem:[#allocation4 + $0x68] sm:$0xff]
    %v602 = vld [vmem:[#allocation4 + $0x70] sm:$0xff]
    %v603 = vld [vmem:[#allocation4 + $0x78] sm:$0xff]
    %v604 = vld [vmem:[#allocation4 + $0x80] sm:$0xff]
    %v605 = vld [vmem:[#allocation4 + $0x88] sm:$0xff]
    %v606 = vld [vmem:[#allocation4 + $0x90] sm:$0xff]
    %v607 = vld [vmem:[#allocation4 + $0x98] sm:$0xff]
    %v608 = vld [vmem:[#allocation4 + $0xa0] sm:$0xff]
    %v609 = vld [vmem:[#allocation4 + $0xa8] sm:$0xff]
    %v610 = vld [vmem:[#allocation4 + $0xb0] sm:$0xff]
    %v611 = vld [vmem:[#allocation4 + $0xb8] sm:$0xff]
    %v612 = vld [vmem:[#allocation4 + $0xc0] sm:$0xff]
    %v613 = vld [vmem:[#allocation4 + $0xc8] sm:$0xff]
    %v614 = vld [vmem:[#allocation4 + $0xd0] sm:$0xff]
    %v615 = vld [vmem:[#allocation4 + $0xd8] sm:$0xff]
    %v616 = vld [vmem:[#allocation4 + $0xe0] sm:$0xff]
    %v617 = vld [vmem:[#allocation4 + $0xe8] sm:$0xff]
    %v618 = vld [vmem:[#allocation4 + $0xf0] sm:$0xff]
    %v619 = vld [vmem:[#allocation4 + $0xf8] sm:$0xff]
    %v620 = vld [vmem:[#allocation4 + $0x100] sm:$0xff]
    %v621 = vld [vmem:[#allocation4 + $0x108] sm:$0xff]
    %v622 = vld [vmem:[#allocation4 + $0x110] sm:$0xff]
    %v623 = vld [vmem:[#allocation4 + $0x118] sm:$0xff]
    %v624 = vld [vmem:[#allocation4 + $0x120] sm:$0xff]
    %v625 = vld [vmem:[#allocation4 + $0x128] sm:$0xff]
    %v626 = vld [vmem:[#allocation4 + $0x130] sm:$0xff]
    %v627 = vld [vmem:[#allocation4 + $0x138] sm:$0xff]
    %v628 = vld [vmem:[#allocation4 + $0x140] sm:$0xff]
    %v629 = vld [vmem:[#allocation4 + $0x148] sm:$0xff]
    %v630 = vld [vmem:[#allocation4 + $0x150] sm:$0xff]
    %v631 = vld [vmem:[#allocation4 + $0x158] sm:$0xff]
    %v632 = vld [vmem:[#allocation4 + $0x160] sm:$0xff]
    %v633 = vld [vmem:[#allocation4 + $0x168] sm:$0xff]
    %v634 = vld [vmem:[#allocation4 + $0x170] sm:$0xff]
    %v635 = vld [vmem:[#allocation4 + $0x178] sm:$0xff]
    %636 = vmatprep.subr.mxu0 %v589
    %637 = vmatpush1.msra.mxu0 %v588
    %638 = vmatprep.subr.mxu0 %v592
    %639 = vmatpush1.msra.mxu0 %v591
    %640 = vmatprep.subr.mxu0 %v595
    %641 = vmatpush1.msra.mxu0 %v594
    %642 = vmatprep.subr.mxu0 %v598
    %643 = vmatpush1.msra.mxu0 %v597
    %644 = vmatprep.subr.mxu0 %v601
    %645 = vmatpush1.msra.mxu0 %v600
    %646 = vmatprep.subr.mxu0 %v604
    %647 = vmatpush1.msra.mxu0 %v603
    %648 = vmatprep.subr.mxu0 %v607
    %649 = vmatpush1.msra.mxu0 %v606
    %650 = vmatprep.subr.mxu0 %v610
    %651 = vmatpush1.msra.mxu0 %v609
    %652 = vmatprep.subr.mxu0 %v613
    %653 = vmatpush1.msra.mxu0 %v612
    %654 = vmatprep.subr.mxu0 %v616
    %655 = vmatpush1.msra.mxu0 %v615
    %656 = vmatprep.subr.mxu0 %v619
    %657 = vmatpush1.msra.mxu0 %v618
    %658 = vmatprep.subr.mxu0 %v622
    %659 = vmatpush1.msra.mxu0 %v621
    %660 = vmatprep.subr.mxu0 %v625
    %661 = vmatpush1.msra.mxu0 %v624
    %662 = vmatprep.subr.mxu0 %v628
    %663 = vmatpush1.msra.mxu0 %v627
    %664 = vmatprep.subr.mxu0 %v631
    %665 = vmatpush1.msra.mxu0 %v630
    %666 = vmatprep.subr.mxu0 %v634
    %667 = vmatpush1.msra.mxu0 %v633
    %668 = vmatprep.subr.mxu0 0.0
    %669 = vmatpush1.msra.mxu0 0.0
    %670 = vmatprep.subr.mxu0 0.0
    %671 = vmatpush1.msra.mxu0 0.0
    %672 = vmatprep.subr.mxu0 0.0
    %673 = vmatpush1.msra.mxu0 0.0
    %674 = vmatprep.subr.mxu0 0.0
    %675 = vmatpush1.msra.mxu0 0.0
    %676 = vmatprep.subr.mxu0 0.0
    %677 = vmatpush1.msra.mxu0 0.0
    %678 = vmatprep.subr.mxu0 0.0
    %679 = vmatpush1.msra.mxu0 0.0
    %680 = vmatprep.subr.mxu0 0.0
    %681 = vmatpush1.msra.mxu0 0.0
    %682 = vmatprep.subr.mxu0 0.0
    %683 = vmatpush1.msra.mxu0 0.0
    %684 = vmatprep.subr.mxu0 0.0
    %685 = vmatpush1.msra.mxu0 0.0
    %686 = vmatprep.subr.mxu0 0.0
    %687 = vmatpush1.msra.mxu0 0.0
    %688 = vmatprep.subr.mxu0 0.0
    %689 = vmatpush1.msra.mxu0 0.0
    %690 = vmatprep.subr.mxu0 0.0
    %691 = vmatpush1.msra.mxu0 0.0
    %692 = vmatprep.subr.mxu0 0.0
    %693 = vmatpush1.msra.mxu0 0.0
    %694 = vmatprep.subr.mxu0 0.0
    %695 = vmatpush1.msra.mxu0 0.0
    %696 = vmatprep.subr.mxu0 0.0
    %697 = vmatpush1.msra.mxu0 0.0
    %698 = vmatprep.subr.mxu0 0.0
    %699 = vmatpush1.msra.mxu0 0.0
    %700 = vmatprep.mubr.f32.mxu0 0.0
    %701 = vmatmul.mubr.f32.gmra.mrb[0].mxu0 0.0
    %v702 = vpop.f32.mrb[0].mxu0
    %v703 = vadd.f32 0.0, %v702
    %v704 = vpop.f32.mrb[0].mxu0
    %v705 = vadd.f32 0.0, %v704
    %706 = vdwg.mxu0
    %707 = vmatprep.subr.mxu0 0.0
    %708 = vmatpush1.msra.mxu0 %v590
    %709 = vmatprep.subr.mxu0 0.0
    %710 = vmatpush1.msra.mxu0 %v593
    %711 = vmatprep.subr.mxu0 0.0
    %712 = vmatpush1.msra.mxu0 %v596
    %713 = vmatprep.subr.mxu0 0.0
    %714 = vmatpush1.msra.mxu0 %v599
    %715 = vmatprep.subr.mxu0 0.0
    %716 = vmatpush1.msra.mxu0 %v602
    %717 = vmatprep.subr.mxu0 0.0
    %718 = vmatpush1.msra.mxu0 %v605
    %719 = vmatprep.subr.mxu0 0.0
    %720 = vmatpush1.msra.mxu0 %v608
    %721 = vmatprep.subr.mxu0 0.0
    %722 = vmatpush1.msra.mxu0 %v611
    %723 = vmatprep.subr.mxu0 0.0
    %724 = vmatpush1.msra.mxu0 %v614
    %725 = vmatprep.subr.mxu0 0.0
    %726 = vmatpush1.msra.mxu0 %v617
    %727 = vmatprep.subr.mxu0 0.0
    %728 = vmatpush1.msra.mxu0 %v620
    %729 = vmatprep.subr.mxu0 0.0
    %730 = vmatpush1.msra.mxu0 %v623
    %731 = vmatprep.subr.mxu0 0.0
    %732 = vmatpush1.msra.mxu0 %v626
    %733 = vmatprep.subr.mxu0 0.0
    %734 = vmatpush1.msra.mxu0 %v629
    %735 = vmatprep.subr.mxu0 0.0
    %736 = vmatpush1.msra.mxu0 %v632
    %737 = vmatprep.subr.mxu0 0.0
    %738 = vmatpush1.msra.mxu0 %v635
    %739 = vmatprep.subr.mxu0 0.0
    %740 = vmatpush1.msra.mxu0 0.0
    %741 = vmatprep.subr.mxu0 0.0
    %742 = vmatpush1.msra.mxu0 0.0
    %743 = vmatprep.subr.mxu0 0.0
    %744 = vmatpush1.msra.mxu0 0.0
    %745 = vmatprep.subr.mxu0 0.0
    %746 = vmatpush1.msra.mxu0 0.0
    %747 = vmatprep.subr.mxu0 0.0
    %748 = vmatpush1.msra.mxu0 0.0
    %749 = vmatprep.subr.mxu0 0.0
    %750 = vmatpush1.msra.mxu0 0.0
    %751 = vmatprep.subr.mxu0 0.0
    %752 = vmatpush1.msra.mxu0 0.0
    %753 = vmatprep.subr.mxu0 0.0
    %754 = vmatpush1.msra.mxu0 0.0
    %755 = vmatprep.subr.mxu0 0.0
    %756 = vmatpush1.msra.mxu0 0.0
    %757 = vmatprep.subr.mxu0 0.0
    %758 = vmatpush1.msra.mxu0 0.0
    %759 = vmatprep.subr.mxu0 0.0
    %760 = vmatpush1.msra.mxu0 0.0
    %761 = vmatprep.subr.mxu0 0.0
    %762 = vmatpush1.msra.mxu0 0.0
    %763 = vmatprep.subr.mxu0 0.0
    %764 = vmatpush1.msra.mxu0 0.0
    %765 = vmatprep.subr.mxu0 0.0
    %766 = vmatpush1.msra.mxu0 0.0
    %767 = vmatprep.subr.mxu0 0.0
    %768 = vmatpush1.msra.mxu0 0.0
    %769 = vmatprep.subr.mxu0 0.0
    %770 = vmatpush1.msra.mxu0 0.0
    %771 = vmatprep.mubr.f32.mxu0 0.0
    %772 = vmatmul.mubr.f32.gmra.mrb[0].mxu0 0.0
    %v773 = vpop.f32.mrb[0].mxu0
    %v774 = vadd.f32 0.0, %v773
    %v775 = vpop.f32.mrb[0].mxu0
    %776 = vdwg.mxu0
    %v777 = vadd.f32 %v585, %v703
    %v778 = vxor.u32 %v777, 2147483648
    %v779 = vmul.f32 %v778, 1.442695
    %v780 = vpow.pop %v779
    %v781 = vadd.f32 %v780, 1.0
    %v782 = vrcp.pop %v781
    %v783 = vmul.f32 1.0, %v782
    %v784 = vadd.f32 %v586, %v705
    %v785 = vxor.u32 %v784, 2147483648
    %v786 = vmul.f32 %v785, 1.442695
    %v787 = vpow.pop %v786
    %v788 = vadd.f32 %v787, 1.0
    %v789 = vrcp.pop %v788
    %v790 = vmul.f32 1.0, %v789
    %v791 = vadd.f32 %v774, %v103
    %v792 = vmul.f32 %v783, %v791
    %v793 = vadd.f32 %v587, %v792
    %v794 = vtanh.pop %v793
    %v795 = vsub.f32 1.0, %v790
    %v796 = vmul.f32 %v795, %v794
    %v797 = vmul.f32 %v790, 0.0
    %v798 = vadd.f32 %v796, %v797
    %s799 = scalar_lea.vmem %s0, 8
    %v800 = vld [vmem:[%s799] sm:$0xff]
    %v802 = vsel %vm109, %v800, 0
    %804 = vmatprep.subr.mxu0 %v107
    %805 = vmatpush1.msra.mxu0 %v106
    %806 = vmatprep.subr.mxu0 0.0
    %807 = vmatpush1.msra.mxu0 0.0
    %808 = vmatprep.subr.mxu0 0.0
    %809 = vmatpush1.msra.mxu0 0.0
    %810 = vmatprep.subr.mxu0 0.0
    %811 = vmatpush1.msra.mxu0 0.0
    %812 = vmatprep.subr.mxu0 0.0
    %813 = vmatpush1.msra.mxu0 0.0
    %814 = vmatprep.subr.mxu0 0.0
    %815 = vmatpush1.msra.mxu0 0.0
    %816 = vmatprep.subr.mxu0 0.0
    %817 = vmatpush1.msra.mxu0 0.0
    %818 = vmatprep.subr.mxu0 0.0
    %819 = vmatpush1.msra.mxu0 0.0
    %820 = vmatprep.subr.mxu0 0.0
    %821 = vmatpush1.msra.mxu0 0.0
    %822 = vmatprep.subr.mxu0 0.0
    %823 = vmatpush1.msra.mxu0 0.0
    %824 = vmatprep.subr.mxu0 0.0
    %825 = vmatpush1.msra.mxu0 0.0
    %826 = vmatprep.subr.mxu0 0.0
    %827 = vmatpush1.msra.mxu0 0.0
    %828 = vmatprep.subr.mxu0 0.0
    %829 = vmatpush1.msra.mxu0 0.0
    %830 = vmatprep.subr.mxu0 0.0
    %831 = vmatpush1.msra.mxu0 0.0
    %832 = vmatprep.subr.mxu0 0.0
    %833 = vmatpush1.msra.mxu0 0.0
    %834 = vmatprep.subr.mxu0 0.0
    %835 = vmatpush1.msra.mxu0 0.0
    %836 = vmatprep.subr.mxu0 0.0
    %837 = vmatpush1.msra.mxu0 0.0
    %838 = vmatprep.subr.mxu0 0.0
    %839 = vmatpush1.msra.mxu0 0.0
    %840 = vmatprep.subr.mxu0 0.0
    %841 = vmatpush1.msra.mxu0 0.0
    %842 = vmatprep.subr.mxu0 0.0
    %843 = vmatpush1.msra.mxu0 0.0
    %844 = vmatprep.subr.mxu0 0.0
    %845 = vmatpush1.msra.mxu0 0.0
    %846 = vmatprep.subr.mxu0 0.0
    %847 = vmatpush1.msra.mxu0 0.0
    %848 = vmatprep.subr.mxu0 0.0
    %849 = vmatpush1.msra.mxu0 0.0
    %850 = vmatprep.subr.mxu0 0.0
    %851 = vmatpush1.msra.mxu0 0.0
    %852 = vmatprep.subr.mxu0 0.0
    %853 = vmatpush1.msra.mxu0 0.0
    %854 = vmatprep.subr.mxu0 0.0
    %855 = vmatpush1.msra.mxu0 0.0
    %856 = vmatprep.subr.mxu0 0.0
    %857 = vmatpush1.msra.mxu0 0.0
    %858 = vmatprep.subr.mxu0 0.0
    %859 = vmatpush1.msra.mxu0 0.0
    %860 = vmatprep.subr.mxu0 0.0
    %861 = vmatpush1.msra.mxu0 0.0
    %862 = vmatprep.subr.mxu0 0.0
    %863 = vmatpush1.msra.mxu0 0.0
    %864 = vmatprep.subr.mxu0 0.0
    %865 = vmatpush1.msra.mxu0 0.0
    %866 = vmatprep.subr.mxu0 0.0
    %867 = vmatpush1.msra.mxu0 0.0
    %868 = vmatprep.mubr.f32.mxu0 0.0
    %869 = vmatmul.mubr.f32.gmra.mrb[0].mxu0 %v802
    %v870 = vpop.f32.mrb[0].mxu0
    %v871 = vadd.f32 %v62, %v870
    %v872 = vpop.f32.mrb[0].mxu0
    %v873 = vadd.f32 %v66, %v872
    %874 = vdwg.mxu0
    %875 = vmatprep.subr.mxu0 0.0
    %876 = vmatpush1.msra.mxu0 %v108
    %877 = vmatprep.subr.mxu0 0.0
    %878 = vmatpush1.msra.mxu0 0.0
    %879 = vmatprep.subr.mxu0 0.0
    %880 = vmatpush1.msra.mxu0 0.0
    %881 = vmatprep.subr.mxu0 0.0
    %882 = vmatpush1.msra.mxu0 0.0
    %883 = vmatprep.subr.mxu0 0.0
    %884 = vmatpush1.msra.mxu0 0.0
    %885 = vmatprep.subr.mxu0 0.0
    %886 = vmatpush1.msra.mxu0 0.0
    %887 = vmatprep.subr.mxu0 0.0
    %888 = vmatpush1.msra.mxu0 0.0
    %889 = vmatprep.subr.mxu0 0.0
    %890 = vmatpush1.msra.mxu0 0.0
    %891 = vmatprep.subr.mxu0 0.0
    %892 = vmatpush1.msra.mxu0 0.0
    %893 = vmatprep.subr.mxu0 0.0
    %894 = vmatpush1.msra.mxu0 0.0
    %895 = vmatprep.subr.mxu0 0.0
    %896 = vmatpush1.msra.mxu0 0.0
    %897 = vmatprep.subr.mxu0 0.0
    %898 = vmatpush1.msra.mxu0 0.0
    %899 = vmatprep.subr.mxu0 0.0
    %900 = vmatpush1.msra.mxu0 0.0
    %901 = vmatprep.subr.mxu0 0.0
    %902 = vmatpush1.msra.mxu0 0.0
    %903 = vmatprep.subr.mxu0 0.0
    %904 = vmatpush1.msra.mxu0 0.0
    %905 = vmatprep.subr.mxu0 0.0
    %906 = vmatpush1.msra.mxu0 0.0
    %907 = vmatprep.subr.mxu0 0.0
    %908 = vmatpush1.msra.mxu0 0.0
    %909 = vmatprep.subr.mxu0 0.0
    %910 = vmatpush1.msra.mxu0 0.0
    %911 = vmatprep.subr.mxu0 0.0
    %912 = vmatpush1.msra.mxu0 0.0
    %913 = vmatprep.subr.mxu0 0.0
    %914 = vmatpush1.msra.mxu0 0.0
    %915 = vmatprep.subr.mxu0 0.0
    %916 = vmatpush1.msra.mxu0 0.0
    %917 = vmatprep.subr.mxu0 0.0
    %918 = vmatpush1.msra.mxu0 0.0
    %919 = vmatprep.subr.mxu0 0.0
    %920 = vmatpush1.msra.mxu0 0.0
    %921 = vmatprep.subr.mxu0 0.0
    %922 = vmatpush1.msra.mxu0 0.0
    %923 = vmatprep.subr.mxu0 0.0
    %924 = vmatpush1.msra.mxu0 0.0
    %925 = vmatprep.subr.mxu0 0.0
    %926 = vmatpush1.msra.mxu0 0.0
    %927 = vmatprep.subr.mxu0 0.0
    %928 = vmatpush1.msra.mxu0 0.0
    %929 = vmatprep.subr.mxu0 0.0
    %930 = vmatpush1.msra.mxu0 0.0
    %931 = vmatprep.subr.mxu0 0.0
    %932 = vmatpush1.msra.mxu0 0.0
    %933 = vmatprep.subr.mxu0 0.0
    %934 = vmatpush1.msra.mxu0 0.0
    %935 = vmatprep.subr.mxu0 0.0
    %936 = vmatpush1.msra.mxu0 0.0
    %937 = vmatprep.subr.mxu0 0.0
    %938 = vmatpush1.msra.mxu0 0.0
    %939 = vmatprep.mubr.f32.mxu0 0.0
    %940 = vmatmul.mubr.f32.gmra.mrb[0].mxu0 %v802
    %v941 = vpop.f32.mrb[0].mxu0
    %v942 = vadd.f32 %v70, %v941
    %v943 = vpop.f32.mrb[0].mxu0
    %944 = vdwg.mxu0
    %v945 = vadd.f32 %v871, %v439
    %v946 = vxor.u32 %v945, 2147483648
    %v947 = vmul.f32 %v946, 1.442695
    %v948 = vpow.pop %v947
    %v949 = vadd.f32 %v948, 1.0
    %v950 = vrcp.pop %v949
    %v951 = vmul.f32 1.0, %v950
    %v952 = vadd.f32 %v873, %v441
    %v953 = vxor.u32 %v952, 2147483648
    %v954 = vmul.f32 %v953, 1.442695
    %v955 = vpow.pop %v954
    %v956 = vadd.f32 %v955, 1.0
    %v957 = vrcp.pop %v956
    %v958 = vmul.f32 1.0, %v957
    %v959 = vadd.f32 %v510, %v96
    %v960 = vmul.f32 %v951, %v959
    %v961 = vadd.f32 %v942, %v960
    %v962 = vtanh.pop %v961
    %v963 = vsub.f32 1.0, %v958
    %v964 = vmul.f32 %v963, %v962
    %v965 = vmul.f32 %v958, %v275
    %v966 = vadd.f32 %v964, %v965
    %967 = vmatprep.subr.mxu0 %v277
    %968 = vmatpush1.msra.mxu0 %v276
    %969 = vmatprep.subr.mxu0 %v283
    %970 = vmatpush1.msra.mxu0 %v282
    %971 = vmatprep.subr.mxu0 %v289
    %972 = vmatpush1.msra.mxu0 %v288
    %973 = vmatprep.subr.mxu0 %v295
    %974 = vmatpush1.msra.mxu0 %v294
    %975 = vmatprep.subr.mxu0 %v301
    %976 = vmatpush1.msra.mxu0 %v300
    %977 = vmatprep.subr.mxu0 %v307
    %978 = vmatpush1.msra.mxu0 %v306
    %979 = vmatprep.subr.mxu0 %v313
    %980 = vmatpush1.msra.mxu0 %v312
    %981 = vmatprep.subr.mxu0 %v319
    %982 = vmatpush1.msra.mxu0 %v318
    %983 = vmatprep.subr.mxu0 %v325
    %984 = vmatpush1.msra.mxu0 %v324
    %985 = vmatprep.subr.mxu0 %v331
    %986 = vmatpush1.msra.mxu0 %v330
    %987 = vmatprep.subr.mxu0 %v337
    %988 = vmatpush1.msra.mxu0 %v336
    %989 = vmatprep.subr.mxu0 %v343
    %990 = vmatpush1.msra.mxu0 %v342
    %991 = vmatprep.subr.mxu0 %v349
    %992 = vmatpush1.msra.mxu0 %v348
    %993 = vmatprep.subr.mxu0 %v355
    %994 = vmatpush1.msra.mxu0 %v354
    %995 = vmatprep.subr.mxu0 %v361
    %996 = vmatpush1.msra.mxu0 %v360
    %997 = vmatprep.subr.mxu0 %v367
    %998 = vmatpush1.msra.mxu0 %v366
    %999 = vmatprep.subr.mxu0 0.0
    %1000 = vmatpush1.msra.mxu0 0.0
    %1001 = vmatprep.subr.mxu0 0.0
    %1002 = vmatpush1.msra.mxu0 0.0
    %1003 = vmatprep.subr.mxu0 0.0
    %1004 = vmatpush1.msra.mxu0 0.0
    %1005 = vmatprep.subr.mxu0 0.0
    %1006 = vmatpush1.msra.mxu0 0.0
    %1007 = vmatprep.subr.mxu0 0.0
    %1008 = vmatpush1.msra.mxu0 0.0
    %1009 = vmatprep.subr.mxu0 0.0
    %1010 = vmatpush1.msra.mxu0 0.0
    %1011 = vmatprep.subr.mxu0 0.0
    %1012 = vmatpush1.msra.mxu0 0.0
    %1013 = vmatprep.subr.mxu0 0.0
    %1014 = vmatpush1.msra.mxu0 0.0
    %1015 = vmatprep.subr.mxu0 0.0
    %1016 = vmatpush1.msra.mxu0 0.0
    %1017 = vmatprep.subr.mxu0 0.0
    %1018 = vmatpush1.msra.mxu0 0.0
    %1019 = vmatprep.subr.mxu0 0.0
    %1020 = vmatpush1.msra.mxu0 0.0
    %1021 = vmatprep.subr.mxu0 0.0
    %1022 = vmatpush1.msra.mxu0 0.0
    %1023 = vmatprep.subr.mxu0 0.0
    %1024 = vmatpush1.msra.mxu0 0.0
    %1025 = vmatprep.subr.mxu0 0.0
    %1026 = vmatpush1.msra.mxu0 0.0
    %1027 = vmatprep.subr.mxu0 0.0
    %1028 = vmatpush1.msra.mxu0 0.0
    %1029 = vmatprep.subr.mxu0 0.0
    %1030 = vmatpush1.msra.mxu0 0.0
    %1031 = vmatprep.mubr.f32.mxu0 0.0
    %1032 = vmatmul.mubr.f32.gmra.mrb[0].mxu0 %v966
    %v1033 = vpop.f32.mrb[0].mxu0
    %v1034 = vadd.f32 0.0, %v1033
    %v1035 = vpop.f32.mrb[0].mxu0
    %v1036 = vadd.f32 0.0, %v1035
    %1037 = vdwg.mxu0
    %1038 = vmatprep.subr.mxu0 %v279
    %1039 = vmatpush1.msra.mxu0 %v278
    %1040 = vmatprep.subr.mxu0 %v285
    %1041 = vmatpush1.msra.mxu0 %v284
    %1042 = vmatprep.subr.mxu0 %v291
    %1043 = vmatpush1.msra.mxu0 %v290
    %1044 = vmatprep.subr.mxu0 %v297
    %1045 = vmatpush1.msra.mxu0 %v296
    %1046 = vmatprep.subr.mxu0 %v303
    %1047 = vmatpush1.msra.mxu0 %v302
    %1048 = vmatprep.subr.mxu0 %v309
    %1049 = vmatpush1.msra.mxu0 %v308
    %1050 = vmatprep.subr.mxu0 %v315
    %1051 = vmatpush1.msra.mxu0 %v314
    %1052 = vmatprep.subr.mxu0 %v321
    %1053 = vmatpush1.msra.mxu0 %v320
    %1054 = vmatprep.subr.mxu0 %v327
    %1055 = vmatpush1.msra.mxu0 %v326
    %1056 = vmatprep.subr.mxu0 %v333
    %1057 = vmatpush1.msra.mxu0 %v332
    %1058 = vmatprep.subr.mxu0 %v339
    %1059 = vmatpush1.msra.mxu0 %v338
    %1060 = vmatprep.subr.mxu0 %v345
    %1061 = vmatpush1.msra.mxu0 %v344
    %1062 = vmatprep.subr.mxu0 %v351
    %1063 = vmatpush1.msra.mxu0 %v350
    %1064 = vmatprep.subr.mxu0 %v357
    %1065 = vmatpush1.msra.mxu0 %v356
    %1066 = vmatprep.subr.mxu0 %v363
    %1067 = vmatpush1.msra.mxu0 %v362
    %1068 = vmatprep.subr.mxu0 %v369
    %1069 = vmatpush1.msra.mxu0 %v368
    %1070 = vmatprep.subr.mxu0 0.0
    %1071 = vmatpush1.msra.mxu0 0.0
    %1072 = vmatprep.subr.mxu0 0.0
    %1073 = vmatpush1.msra.mxu0 0.0
    %1074 = vmatprep.subr.mxu0 0.0
    %1075 = vmatpush1.msra.mxu0 0.0
    %1076 = vmatprep.subr.mxu0 0.0
    %1077 = vmatpush1.msra.mxu0 0.0
    %1078 = vmatprep.subr.mxu0 0.0
    %1079 = vmatpush1.msra.mxu0 0.0
    %1080 = vmatprep.subr.mxu0 0.0
    %1081 = vmatpush1.msra.mxu0 0.0
    %1082 = vmatprep.subr.mxu0 0.0
    %1083 = vmatpush1.msra.mxu0 0.0
    %1084 = vmatprep.subr.mxu0 0.0
    %1085 = vmatpush1.msra.mxu0 0.0
    %1086 = vmatprep.subr.mxu0 0.0
    %1087 = vmatpush1.msra.mxu0 0.0
    %1088 = vmatprep.subr.mxu0 0.0
    %1089 = vmatpush1.msra.mxu0 0.0
    %1090 = vmatprep.subr.mxu0 0.0
    %1091 = vmatpush1.msra.mxu0 0.0
    %1092 = vmatprep.subr.mxu0 0.0
    %1093 = vmatpush1.msra.mxu0 0.0
    %1094 = vmatprep.subr.mxu0 0.0
    %1095 = vmatpush1.msra.mxu0 0.0
    %1096 = vmatprep.subr.mxu0 0.0
    %1097 = vmatpush1.msra.mxu0 0.0
    %1098 = vmatprep.subr.mxu0 0.0
    %1099 = vmatpush1.msra.mxu0 0.0
    %1100 = vmatprep.subr.mxu0 0.0
    %1101 = vmatpush1.msra.mxu0 0.0
    %1102 = vmatprep.mubr.f32.mxu0 0.0
    %1103 = vmatmul.mubr.f32.gmra.mrb[0].mxu0 %v966
    %v1104 = vpop.f32.mrb[0].mxu0
    %v1105 = vadd.f32 0.0, %v1104
    %v1106 = vpop.f32.mrb[0].mxu0
    %v1107 = vadd.f32 0.0, %v1106
    %1108 = vdwg.mxu0
    %1109 = vmatprep.subr.mxu0 %v281
    %1110 = vmatpush1.msra.mxu0 %v280
    %1111 = vmatprep.subr.mxu0 %v287
    %1112 = vmatpush1.msra.mxu0 %v286
    %1113 = vmatprep.subr.mxu0 %v293
    %1114 = vmatpush1.msra.mxu0 %v292
    %1115 = vmatprep.subr.mxu0 %v299
    %1116 = vmatpush1.msra.mxu0 %v298
    %1117 = vmatprep.subr.mxu0 %v305
    %1118 = vmatpush1.msra.mxu0 %v304
    %1119 = vmatprep.subr.mxu0 %v311
    %1120 = vmatpush1.msra.mxu0 %v310
    %1121 = vmatprep.subr.mxu0 %v317
    %1122 = vmatpush1.msra.mxu0 %v316
    %1123 = vmatprep.subr.mxu0 %v323
    %1124 = vmatpush1.msra.mxu0 %v322
    %1125 = vmatprep.subr.mxu0 %v329
    %1126 = vmatpush1.msra.mxu0 %v328
    %1127 = vmatprep.subr.mxu0 %v335
    %1128 = vmatpush1.msra.mxu0 %v334
    %1129 = vmatprep.subr.mxu0 %v341
    %1130 = vmatpush1.msra.mxu0 %v340
    %1131 = vmatprep.subr.mxu0 %v347
    %1132 = vmatpush1.msra.mxu0 %v346
    %1133 = vmatprep.subr.mxu0 %v353
    %1134 = vmatpush1.msra.mxu0 %v352
    %1135 = vmatprep.subr.mxu0 %v359
    %1136 = vmatpush1.msra.mxu0 %v358
    %1137 = vmatprep.subr.mxu0 %v365
    %1138 = vmatpush1.msra.mxu0 %v364
    %1139 = vmatprep.subr.mxu0 %v371
    %1140 = vmatpush1.msra.mxu0 %v370
    %1141 = vmatprep.subr.mxu0 0.0
    %1142 = vmatpush1.msra.mxu0 0.0
    %1143 = vmatprep.subr.mxu0 0.0
    %1144 = vmatpush1.msra.mxu0 0.0
    %1145 = vmatprep.subr.mxu0 0.0
    %1146 = vmatpush1.msra.mxu0 0.0
    %1147 = vmatprep.subr.mxu0 0.0
    %1148 = vmatpush1.msra.mxu0 0.0
    %1149 = vmatprep.subr.mxu0 0.0
    %1150 = vmatpush1.msra.mxu0 0.0
    %1151 = vmatprep.subr.mxu0 0.0
    %1152 = vmatpush1.msra.mxu0 0.0
    %1153 = vmatprep.subr.mxu0 0.0
    %1154 = vmatpush1.msra.mxu0 0.0
    %1155 = vmatprep.subr.mxu0 0.0
    %1156 = vmatpush1.msra.mxu0 0.0
    %1157 = vmatprep.subr.mxu0 0.0
    %1158 = vmatpush1.msra.mxu0 0.0
    %1159 = vmatprep.subr.mxu0 0.0
    %1160 = vmatpush1.msra.mxu0 0.0
    %1161 = vmatprep.subr.mxu0 0.0
    %1162 = vmatpush1.msra.mxu0 0.0
    %1163 = vmatprep.subr.mxu0 0.0
    %1164 = vmatpush1.msra.mxu0 0.0
    %1165 = vmatprep.subr.mxu0 0.0
    %1166 = vmatpush1.msra.mxu0 0.0
    %1167 = vmatprep.subr.mxu0 0.0
    %1168 = vmatpush1.msra.mxu0 0.0
    %1169 = vmatprep.subr.mxu0 0.0
    %1170 = vmatpush1.msra.mxu0 0.0
    %1171 = vmatprep.subr.mxu0 0.0
    %1172 = vmatpush1.msra.mxu0 0.0
    %1173 = vmatprep.mubr.f32.mxu0 0.0
    %1174 = vmatmul.mubr.f32.gmra.mrb[0].mxu0 %v966
    %v1175 = vpop.f32.mrb[0].mxu0
    %v1176 = vadd.f32 0.0, %v1175
    %v1177 = vpop.f32.mrb[0].mxu0
    %v1178 = vadd.f32 0.0, %v1177
    %1179 = vdwg.mxu0
    %v1180 = vadd.f32 %v1107, %v79
    %v1181 = vadd.f32 %v1176, %v83
    %v1182 = vadd.f32 %v1178, %v87
    %1183 = vmatprep.subr.mxu0 %v589
    %1184 = vmatpush1.msra.mxu0 %v588
    %1185 = vmatprep.subr.mxu0 %v592
    %1186 = vmatpush1.msra.mxu0 %v591
    %1187 = vmatprep.subr.mxu0 %v595
    %1188 = vmatpush1.msra.mxu0 %v594
    %1189 = vmatprep.subr.mxu0 %v598
    %1190 = vmatpush1.msra.mxu0 %v597
    %1191 = vmatprep.subr.mxu0 %v601
    %1192 = vmatpush1.msra.mxu0 %v600
    %1193 = vmatprep.subr.mxu0 %v604
    %1194 = vmatpush1.msra.mxu0 %v603
    %1195 = vmatprep.subr.mxu0 %v607
    %1196 = vmatpush1.msra.mxu0 %v606
    %1197 = vmatprep.subr.mxu0 %v610
    %1198 = vmatpush1.msra.mxu0 %v609
    %1199 = vmatprep.subr.mxu0 %v613
    %1200 = vmatpush1.msra.mxu0 %v612
    %1201 = vmatprep.subr.mxu0 %v616
    %1202 = vmatpush1.msra.mxu0 %v615
    %1203 = vmatprep.subr.mxu0 %v619
    %1204 = vmatpush1.msra.mxu0 %v618
    %1205 = vmatprep.subr.mxu0 %v622
    %1206 = vmatpush1.msra.mxu0 %v621
    %1207 = vmatprep.subr.mxu0 %v625
    %1208 = vmatpush1.msra.mxu0 %v624
    %1209 = vmatprep.subr.mxu0 %v628
    %1210 = vmatpush1.msra.mxu0 %v627
    %1211 = vmatprep.subr.mxu0 %v631
    %1212 = vmatpush1.msra.mxu0 %v630
    %1213 = vmatprep.subr.mxu0 %v634
    %1214 = vmatpush1.msra.mxu0 %v633
    %1215 = vmatprep.subr.mxu0 0.0
    %1216 = vmatpush1.msra.mxu0 0.0
    %1217 = vmatprep.subr.mxu0 0.0
    %1218 = vmatpush1.msra.mxu0 0.0
    %1219 = vmatprep.subr.mxu0 0.0
    %1220 = vmatpush1.msra.mxu0 0.0
    %1221 = vmatprep.subr.mxu0 0.0
    %1222 = vmatpush1.msra.mxu0 0.0
    %1223 = vmatprep.subr.mxu0 0.0
    %1224 = vmatpush1.msra.mxu0 0.0
    %1225 = vmatprep.subr.mxu0 0.0
    %1226 = vmatpush1.msra.mxu0 0.0
    %1227 = vmatprep.subr.mxu0 0.0
    %1228 = vmatpush1.msra.mxu0 0.0
    %1229 = vmatprep.subr.mxu0 0.0
    %1230 = vmatpush1.msra.mxu0 0.0
    %1231 = vmatprep.subr.mxu0 0.0
    %1232 = vmatpush1.msra.mxu0 0.0
    %1233 = vmatprep.subr.mxu0 0.0
    %1234 = vmatpush1.msra.mxu0 0.0
    %1235 = vmatprep.subr.mxu0 0.0
    %1236 = vmatpush1.msra.mxu0 0.0
    %1237 = vmatprep.subr.mxu0 0.0
    %1238 = vmatpush1.msra.mxu0 0.0
    %1239 = vmatprep.subr.mxu0 0.0
    %1240 = vmatpush1.msra.mxu0 0.0
    %1241 = vmatprep.subr.mxu0 0.0
    %1242 = vmatpush1.msra.mxu0 0.0
    %1243 = vmatprep.subr.mxu0 0.0
    %1244 = vmatpush1.msra.mxu0 0.0
    %1245 = vmatprep.subr.mxu0 0.0
    %1246 = vmatpush1.msra.mxu0 0.0
    %1247 = vmatprep.mubr.f32.mxu0 0.0
    %1248 = vmatmul.mubr.f32.gmra.mrb[0].mxu0 %v798
    %v1249 = vpop.f32.mrb[0].mxu0
    %v1250 = vadd.f32 0.0, %v1249
    %v1251 = vpop.f32.mrb[0].mxu0
    %v1252 = vadd.f32 0.0, %v1251
    %1253 = vdwg.mxu0
    %1254 = vmatprep.subr.mxu0 0.0
    %1255 = vmatpush1.msra.mxu0 %v590
    %1256 = vmatprep.subr.mxu0 0.0
    %1257 = vmatpush1.msra.mxu0 %v593
    %1258 = vmatprep.subr.mxu0 0.0
    %1259 = vmatpush1.msra.mxu0 %v596
    %1260 = vmatprep.subr.mxu0 0.0
    %1261 = vmatpush1.msra.mxu0 %v599
    %1262 = vmatprep.subr.mxu0 0.0
    %1263 = vmatpush1.msra.mxu0 %v602
    %1264 = vmatprep.subr.mxu0 0.0
    %1265 = vmatpush1.msra.mxu0 %v605
    %1266 = vmatprep.subr.mxu0 0.0
    %1267 = vmatpush1.msra.mxu0 %v608
    %1268 = vmatprep.subr.mxu0 0.0
    %1269 = vmatpush1.msra.mxu0 %v611
    %1270 = vmatprep.subr.mxu0 0.0
    %1271 = vmatpush1.msra.mxu0 %v614
    %1272 = vmatprep.subr.mxu0 0.0
    %1273 = vmatpush1.msra.mxu0 %v617
    %1274 = vmatprep.subr.mxu0 0.0
    %1275 = vmatpush1.msra.mxu0 %v620
    %1276 = vmatprep.subr.mxu0 0.0
    %1277 = vmatpush1.msra.mxu0 %v623
    %1278 = vmatprep.subr.mxu0 0.0
    %1279 = vmatpush1.msra.mxu0 %v626
    %1280 = vmatprep.subr.mxu0 0.0
    %1281 = vmatpush1.msra.mxu0 %v629
    %1282 = vmatprep.subr.mxu0 0.0
    %1283 = vmatpush1.msra.mxu0 %v632
    %1284 = vmatprep.subr.mxu0 0.0
    %1285 = vmatpush1.msra.mxu0 %v635
    %1286 = vmatprep.subr.mxu0 0.0
    %1287 = vmatpush1.msra.mxu0 0.0
    %1288 = vmatprep.subr.mxu0 0.0
    %1289 = vmatpush1.msra.mxu0 0.0
    %1290 = vmatprep.subr.mxu0 0.0
    %1291 = vmatpush1.msra.mxu0 0.0
    %1292 = vmatprep.subr.mxu0 0.0
    %1293 = vmatpush1.msra.mxu0 0.0
    %1294 = vmatprep.subr.mxu0 0.0
    %1295 = vmatpush1.msra.mxu0 0.0
    %1296 = vmatprep.subr.mxu0 0.0
    %1297 = vmatpush1.msra.mxu0 0.0
    %1298 = vmatprep.subr.mxu0 0.0
    %1299 = vmatpush1.msra.mxu0 0.0
    %1300 = vmatprep.subr.mxu0 0.0
    %1301 = vmatpush1.msra.mxu0 0.0
    %1302 = vmatprep.subr.mxu0 0.0
    %1303 = vmatpush1.msra.mxu0 0.0
    %1304 = vmatprep.subr.mxu0 0.0
    %1305 = vmatpush1.msra.mxu0 0.0
    %1306 = vmatprep.subr.mxu0 0.0
    %1307 = vmatpush1.msra.mxu0 0.0
    %1308 = vmatprep.subr.mxu0 0.0
    %1309 = vmatpush1.msra.mxu0 0.0
    %1310 = vmatprep.subr.mxu0 0.0
    %1311 = vmatpush1.msra.mxu0 0.0
    %1312 = vmatprep.subr.mxu0 0.0
    %1313 = vmatpush1.msra.mxu0 0.0
    %1314 = vmatprep.subr.mxu0 0.0
    %1315 = vmatpush1.msra.mxu0 0.0
    %1316 = vmatprep.subr.mxu0 0.0
    %1317 = vmatpush1.msra.mxu0 0.0
    %1318 = vmatprep.mubr.f32.mxu0 0.0
    %1319 = vmatmul.mubr.f32.gmra.mrb[0].mxu0 %v798
    %v1320 = vpop.f32.mrb[0].mxu0
    %v1321 = vadd.f32 0.0, %v1320
    %v1322 = vpop.f32.mrb[0].mxu0
    %1323 = vdwg.mxu0
    %v1324 = vadd.f32 %v1180, %v1250
    %v1325 = vxor.u32 %v1324, 2147483648
    %v1326 = vmul.f32 %v1325, 1.442695
    %v1327 = vpow.pop %v1326
    %v1328 = vadd.f32 %v1327, 1.0
    %v1329 = vrcp.pop %v1328
    %v1330 = vmul.f32 1.0, %v1329
    %v1331 = vadd.f32 %v1181, %v1252
    %v1332 = vxor.u32 %v1331, 2147483648
    %v1333 = vmul.f32 %v1332, 1.442695
    %v1334 = vpow.pop %v1333
    %v1335 = vadd.f32 %v1334, 1.0
    %v1336 = vrcp.pop %v1335
    %v1337 = vmul.f32 1.0, %v1336
    %v1338 = vadd.f32 %v1321, %v103
    %v1339 = vmul.f32 %v1330, %v1338
    %v1340 = vadd.f32 %v1182, %v1339
    %v1341 = vtanh.pop %v1340
    %v1342 = vsub.f32 1.0, %v1337
    %v1343 = vmul.f32 %v1342, %v1341
    %v1344 = vmul.f32 %v1337, %v798
    %v1345 = vadd.f32 %v1343, %v1344
    %s1346 = scalar_lea.vmem %s0, 16
    %v1347 = vld [vmem:[%s1346] sm:$0xff]
    %v1349 = vsel %vm109, %v1347, 0
    %1351 = vmatprep.subr.mxu0 %v107
    %1352 = vmatpush1.msra.mxu0 %v106
    %1353 = vmatprep.subr.mxu0 0.0
    %1354 = vmatpush1.msra.mxu0 0.0
    %1355 = vmatprep.subr.mxu0 0.0
    %1356 = vmatpush1.msra.mxu0 0.0
    %1357 = vmatprep.subr.mxu0 0.0
    %1358 = vmatpush1.msra.mxu0 0.0
    %1359 = vmatprep.subr.mxu0 0.0
    %1360 = vmatpush1.msra.mxu0 0.0
    %1361 = vmatprep.subr.mxu0 0.0
    %1362 = vmatpush1.msra.mxu0 0.0
    %1363 = vmatprep.subr.mxu0 0.0
    %1364 = vmatpush1.msra.mxu0 0.0
    %1365 = vmatprep.subr.mxu0 0.0
    %1366 = vmatpush1.msra.mxu0 0.0
    %1367 = vmatprep.subr.mxu0 0.0
    %1368 = vmatpush1.msra.mxu0 0.0
    %1369 = vmatprep.subr.mxu0 0.0
    %1370 = vmatpush1.msra.mxu0 0.0
    %1371 = vmatprep.subr.mxu0 0.0
    %1372 = vmatpush1.msra.mxu0 0.0
    %1373 = vmatprep.subr.mxu0 0.0
    %1374 = vmatpush1.msra.mxu0 0.0
    %1375 = vmatprep.subr.mxu0 0.0
    %1376 = vmatpush1.msra.mxu0 0.0
    %1377 = vmatprep.subr.mxu0 0.0
    %1378 = vmatpush1.msra.mxu0 0.0
    %1379 = vmatprep.subr.mxu0 0.0
    %1380 = vmatpush1.msra.mxu0 0.0
    %1381 = vmatprep.subr.mxu0 0.0
    %1382 = vmatpush1.msra.mxu0 0.0
    %1383 = vmatprep.subr.mxu0 0.0
    %1384 = vmatpush1.msra.mxu0 0.0
    %1385 = vmatprep.subr.mxu0 0.0
    %1386 = vmatpush1.msra.mxu0 0.0
    %1387 = vmatprep.subr.mxu0 0.0
    %1388 = vmatpush1.msra.mxu0 0.0
    %1389 = vmatprep.subr.mxu0 0.0
    %1390 = vmatpush1.msra.mxu0 0.0
    %1391 = vmatprep.subr.mxu0 0.0
    %1392 = vmatpush1.msra.mxu0 0.0
    %1393 = vmatprep.subr.mxu0 0.0
    %1394 = vmatpush1.msra.mxu0 0.0
    %1395 = vmatprep.subr.mxu0 0.0
    %1396 = vmatpush1.msra.mxu0 0.0
    %1397 = vmatprep.subr.mxu0 0.0
    %1398 = vmatpush1.msra.mxu0 0.0
    %1399 = vmatprep.subr.mxu0 0.0
    %1400 = vmatpush1.msra.mxu0 0.0
    %1401 = vmatprep.subr.mxu0 0.0
    %1402 = vmatpush1.msra.mxu0 0.0
    %1403 = vmatprep.subr.mxu0 0.0
    %1404 = vmatpush1.msra.mxu0 0.0
    %1405 = vmatprep.subr.mxu0 0.0
    %1406 = vmatpush1.msra.mxu0 0.0
    %1407 = vmatprep.subr.mxu0 0.0
    %1408 = vmatpush1.msra.mxu0 0.0
    %1409 = vmatprep.subr.mxu0 0.0
    %1410 = vmatpush1.msra.mxu0 0.0
    %1411 = vmatprep.subr.mxu0 0.0
    %1412 = vmatpush1.msra.mxu0 0.0
    %1413 = vmatprep.subr.mxu0 0.0
    %1414 = vmatpush1.msra.mxu0 0.0
    %1415 = vmatprep.mubr.f32.mxu0 0.0
    %1416 = vmatmul.mubr.f32.gmra.mrb[0].mxu0 %v1349
    %v1417 = vpop.f32.mrb[0].mxu0
    %v1418 = vadd.f32 %v62, %v1417
    %v1419 = vpop.f32.mrb[0].mxu0
    %v1420 = vadd.f32 %v66, %v1419
    %1421 = vdwg.mxu0
    %1422 = vmatprep.subr.mxu0 0.0
    %1423 = vmatpush1.msra.mxu0 %v108
    %1424 = vmatprep.subr.mxu0 0.0
    %1425 = vmatpush1.msra.mxu0 0.0
    %1426 = vmatprep.subr.mxu0 0.0
    %1427 = vmatpush1.msra.mxu0 0.0
    %1428 = vmatprep.subr.mxu0 0.0
    %1429 = vmatpush1.msra.mxu0 0.0
    %1430 = vmatprep.subr.mxu0 0.0
    %1431 = vmatpush1.msra.mxu0 0.0
    %1432 = vmatprep.subr.mxu0 0.0
    %1433 = vmatpush1.msra.mxu0 0.0
    %1434 = vmatprep.subr.mxu0 0.0
    %1435 = vmatpush1.msra.mxu0 0.0
    %1436 = vmatprep.subr.mxu0 0.0
    %1437 = vmatpush1.msra.mxu0 0.0
    %1438 = vmatprep.subr.mxu0 0.0
    %1439 = vmatpush1.msra.mxu0 0.0
    %1440 = vmatprep.subr.mxu0 0.0
    %1441 = vmatpush1.msra.mxu0 0.0
    %1442 = vmatprep.subr.mxu0 0.0
    %1443 = vmatpush1.msra.mxu0 0.0
    %1444 = vmatprep.subr.mxu0 0.0
    %1445 = vmatpush1.msra.mxu0 0.0
    %1446 = vmatprep.subr.mxu0 0.0
    %1447 = vmatpush1.msra.mxu0 0.0
    %1448 = vmatprep.subr.mxu0 0.0
    %1449 = vmatpush1.msra.mxu0 0.0
    %1450 = vmatprep.subr.mxu0 0.0
    %1451 = vmatpush1.msra.mxu0 0.0
    %1452 = vmatprep.subr.mxu0 0.0
    %1453 = vmatpush1.msra.mxu0 0.0
    %1454 = vmatprep.subr.mxu0 0.0
    %1455 = vmatpush1.msra.mxu0 0.0
    %1456 = vmatprep.subr.mxu0 0.0
    %1457 = vmatpush1.msra.mxu0 0.0
    %1458 = vmatprep.subr.mxu0 0.0
    %1459 = vmatpush1.msra.mxu0 0.0
    %1460 = vmatprep.subr.mxu0 0.0
    %1461 = vmatpush1.msra.mxu0 0.0
    %1462 = vmatprep.subr.mxu0 0.0
    %1463 = vmatpush1.msra.mxu0 0.0
    %1464 = vmatprep.subr.mxu0 0.0
    %1465 = vmatpush1.msra.mxu0 0.0
    %1466 = vmatprep.subr.mxu0 0.0
    %1467 = vmatpush1.msra.mxu0 0.0
    %1468 = vmatprep.subr.mxu0 0.0
    %1469 = vmatpush1.msra.mxu0 0.0
    %1470 = vmatprep.subr.mxu0 0.0
    %1471 = vmatpush1.msra.mxu0 0.0
    %1472 = vmatprep.subr.mxu0 0.0
    %1473 = vmatpush1.msra.mxu0 0.0
    %1474 = vmatprep.subr.mxu0 0.0
    %1475 = vmatpush1.msra.mxu0 0.0
    %1476 = vmatprep.subr.mxu0 0.0
    %1477 = vmatpush1.msra.mxu0 0.0
    %1478 = vmatprep.subr.mxu0 0.0
    %1479 = vmatpush1.msra.mxu0 0.0
    %1480 = vmatprep.subr.mxu0 0.0
    %1481 = vmatpush1.msra.mxu0 0.0
    %1482 = vmatprep.subr.mxu0 0.0
    %1483 = vmatpush1.msra.mxu0 0.0
    %1484 = vmatprep.subr.mxu0 0.0
    %1485 = vmatpush1.msra.mxu0 0.0
    %1486 = vmatprep.mubr.f32.mxu0 0.0
    %1487 = vmatmul.mubr.f32.gmra.mrb[0].mxu0 %v1349
    %v1488 = vpop.f32.mrb[0].mxu0
    %v1489 = vadd.f32 %v70, %v1488
    %v1490 = vpop.f32.mrb[0].mxu0
    %1491 = vdwg.mxu0
    %v1492 = vadd.f32 %v1418, %v1034
    %v1493 = vxor.u32 %v1492, 2147483648
    %v1494 = vmul.f32 %v1493, 1.442695
    %v1495 = vpow.pop %v1494
    %v1496 = vadd.f32 %v1495, 1.0
    %v1497 = vrcp.pop %v1496
    %v1498 = vmul.f32 1.0, %v1497
    %v1499 = vadd.f32 %v1420, %v1036
    %v1500 = vxor.u32 %v1499, 2147483648
    %v1501 = vmul.f32 %v1500, 1.442695
    %v1502 = vpow.pop %v1501
    %v1503 = vadd.f32 %v1502, 1.0
    %v1504 = vrcp.pop %v1503
    %v1505 = vmul.f32 1.0, %v1504
    %v1506 = vadd.f32 %v1105, %v96
    %v1507 = vmul.f32 %v1498, %v1506
    %v1508 = vadd.f32 %v1489, %v1507
    %v1509 = vtanh.pop %v1508
    %v1510 = vsub.f32 1.0, %v1505
    %v1511 = vmul.f32 %v1510, %v1509
    %v1512 = vmul.f32 %v1505, %v966
    %v1513 = vadd.f32 %v1511, %v1512
    %1514 = vmatprep.subr.mxu0 %v277
    %1515 = vmatpush1.msra.mxu0 %v276
    %1516 = vmatprep.subr.mxu0 %v283
    %1517 = vmatpush1.msra.mxu0 %v282
    %1518 = vmatprep.subr.mxu0 %v289
    %1519 = vmatpush1.msra.mxu0 %v288
    %1520 = vmatprep.subr.mxu0 %v295
    %1521 = vmatpush1.msra.mxu0 %v294
    %1522 = vmatprep.subr.mxu0 %v301
    %1523 = vmatpush1.msra.mxu0 %v300
    %1524 = vmatprep.subr.mxu0 %v307
    %1525 = vmatpush1.msra.mxu0 %v306
    %1526 = vmatprep.subr.mxu0 %v313
    %1527 = vmatpush1.msra.mxu0 %v312
    %1528 = vmatprep.subr.mxu0 %v319
    %1529 = vmatpush1.msra.mxu0 %v318
    %1530 = vmatprep.subr.mxu0 %v325
    %1531 = vmatpush1.msra.mxu0 %v324
    %1532 = vmatprep.subr.mxu0 %v331
    %1533 = vmatpush1.msra.mxu0 %v330
    %1534 = vmatprep.subr.mxu0 %v337
    %1535 = vmatpush1.msra.mxu0 %v336
    %1536 = vmatprep.subr.mxu0 %v343
    %1537 = vmatpush1.msra.mxu0 %v342
    %1538 = vmatprep.subr.mxu0 %v349
    %1539 = vmatpush1.msra.mxu0 %v348
    %1540 = vmatprep.subr.mxu0 %v355
    %1541 = vmatpush1.msra.mxu0 %v354
    %1542 = vmatprep.subr.mxu0 %v361
    %1543 = vmatpush1.msra.mxu0 %v360
    %1544 = vmatprep.subr.mxu0 %v367
    %1545 = vmatpush1.msra.mxu0 %v366
    %1546 = vmatprep.subr.mxu0 0.0
    %1547 = vmatpush1.msra.mxu0 0.0
    %1548 = vmatprep.subr.mxu0 0.0
    %1549 = vmatpush1.msra.mxu0 0.0
    %1550 = vmatprep.subr.mxu0 0.0
    %1551 = vmatpush1.msra.mxu0 0.0
    %1552 = vmatprep.subr.mxu0 0.0
    %1553 = vmatpush1.msra.mxu0 0.0
    %1554 = vmatprep.subr.mxu0 0.0
    %1555 = vmatpush1.msra.mxu0 0.0
    %1556 = vmatprep.subr.mxu0 0.0
    %1557 = vmatpush1.msra.mxu0 0.0
    %1558 = vmatprep.subr.mxu0 0.0
    %1559 = vmatpush1.msra.mxu0 0.0
    %1560 = vmatprep.subr.mxu0 0.0
    %1561 = vmatpush1.msra.mxu0 0.0
    %1562 = vmatprep.subr.mxu0 0.0
    %1563 = vmatpush1.msra.mxu0 0.0
    %1564 = vmatprep.subr.mxu0 0.0
    %1565 = vmatpush1.msra.mxu0 0.0
    %1566 = vmatprep.subr.mxu0 0.0
    %1567 = vmatpush1.msra.mxu0 0.0
    %1568 = vmatprep.subr.mxu0 0.0
    %1569 = vmatpush1.msra.mxu0 0.0
    %1570 = vmatprep.subr.mxu0 0.0
    %1571 = vmatpush1.msra.mxu0 0.0
    %1572 = vmatprep.subr.mxu0 0.0
    %1573 = vmatpush1.msra.mxu0 0.0
    %1574 = vmatprep.subr.mxu0 0.0
    %1575 = vmatpush1.msra.mxu0 0.0
    %1576 = vmatprep.subr.mxu0 0.0
    %1577 = vmatpush1.msra.mxu0 0.0
    %1578 = vmatprep.mubr.f32.mxu0 0.0
    %1579 = vmatmul.mubr.f32.gmra.mrb[0].mxu0 %v1513
    %v1580 = vpop.f32.mrb[0].mxu0
    %v1581 = vadd.f32 0.0, %v1580
    %v1582 = vpop.f32.mrb[0].mxu0
    %v1583 = vadd.f32 0.0, %v1582
    %1584 = vdwg.mxu0
    %1585 = vmatprep.subr.mxu0 %v279
    %1586 = vmatpush1.msra.mxu0 %v278
    %1587 = vmatprep.subr.mxu0 %v285
    %1588 = vmatpush1.msra.mxu0 %v284
    %1589 = vmatprep.subr.mxu0 %v291
    %1590 = vmatpush1.msra.mxu0 %v290
    %1591 = vmatprep.subr.mxu0 %v297
    %1592 = vmatpush1.msra.mxu0 %v296
    %1593 = vmatprep.subr.mxu0 %v303
    %1594 = vmatpush1.msra.mxu0 %v302
    %1595 = vmatprep.subr.mxu0 %v309
    %1596 = vmatpush1.msra.mxu0 %v308
    %1597 = vmatprep.subr.mxu0 %v315
    %1598 = vmatpush1.msra.mxu0 %v314
    %1599 = vmatprep.subr.mxu0 %v321
    %1600 = vmatpush1.msra.mxu0 %v320
    %1601 = vmatprep.subr.mxu0 %v327
    %1602 = vmatpush1.msra.mxu0 %v326
    %1603 = vmatprep.subr.mxu0 %v333
    %1604 = vmatpush1.msra.mxu0 %v332
    %1605 = vmatprep.subr.mxu0 %v339
    %1606 = vmatpush1.msra.mxu0 %v338
    %1607 = vmatprep.subr.mxu0 %v345
    %1608 = vmatpush1.msra.mxu0 %v344
    %1609 = vmatprep.subr.mxu0 %v351
    %1610 = vmatpush1.msra.mxu0 %v350
    %1611 = vmatprep.subr.mxu0 %v357
    %1612 = vmatpush1.msra.mxu0 %v356
    %1613 = vmatprep.subr.mxu0 %v363
    %1614 = vmatpush1.msra.mxu0 %v362
    %1615 = vmatprep.subr.mxu0 %v369
    %1616 = vmatpush1.msra.mxu0 %v368
    %1617 = vmatprep.subr.mxu0 0.0
    %1618 = vmatpush1.msra.mxu0 0.0
    %1619 = vmatprep.subr.mxu0 0.0
    %1620 = vmatpush1.msra.mxu0 0.0
    %1621 = vmatprep.subr.mxu0 0.0
    %1622 = vmatpush1.msra.mxu0 0.0
    %1623 = vmatprep.subr.mxu0 0.0
    %1624 = vmatpush1.msra.mxu0 0.0
    %1625 = vmatprep.subr.mxu0 0.0
    %1626 = vmatpush1.msra.mxu0 0.0
    %1627 = vmatprep.subr.mxu0 0.0
    %1628 = vmatpush1.msra.mxu0 0.0
    %1629 = vmatprep.subr.mxu0 0.0
    %1630 = vmatpush1.msra.mxu0 0.0
    %1631 = vmatprep.subr.mxu0 0.0
    %1632 = vmatpush1.msra.mxu0 0.0
    %1633 = vmatprep.subr.mxu0 0.0
    %1634 = vmatpush1.msra.mxu0 0.0
    %1635 = vmatprep.subr.mxu0 0.0
    %1636 = vmatpush1.msra.mxu0 0.0
    %1637 = vmatprep.subr.mxu0 0.0
    %1638 = vmatpush1.msra.mxu0 0.0
    %1639 = vmatprep.subr.mxu0 0.0
    %1640 = vmatpush1.msra.mxu0 0.0
    %1641 = vmatprep.subr.mxu0 0.0
    %1642 = vmatpush1.msra.mxu0 0.0
    %1643 = vmatprep.subr.mxu0 0.0
    %1644 = vmatpush1.msra.mxu0 0.0
    %1645 = vmatprep.subr.mxu0 0.0
    %1646 = vmatpush1.msra.mxu0 0.0
    %1647 = vmatprep.subr.mxu0 0.0
    %1648 = vmatpush1.msra.mxu0 0.0
    %1649 = vmatprep.mubr.f32.mxu0 0.0
    %1650 = vmatmul.mubr.f32.gmra.mrb[0].mxu0 %v1513
    %v1651 = vpop.f32.mrb[0].mxu0
    %v1652 = vadd.f32 0.0, %v1651
    %v1653 = vpop.f32.mrb[0].mxu0
    %v1654 = vadd.f32 0.0, %v1653
    %1655 = vdwg.mxu0
    %1656 = vmatprep.subr.mxu0 %v281
    %1657 = vmatpush1.msra.mxu0 %v280
    %1658 = vmatprep.subr.mxu0 %v287
    %1659 = vmatpush1.msra.mxu0 %v286
    %1660 = vmatprep.subr.mxu0 %v293
    %1661 = vmatpush1.msra.mxu0 %v292
    %1662 = vmatprep.subr.mxu0 %v299
    %1663 = vmatpush1.msra.mxu0 %v298
    %1664 = vmatprep.subr.mxu0 %v305
    %1665 = vmatpush1.msra.mxu0 %v304
    %1666 = vmatprep.subr.mxu0 %v311
    %1667 = vmatpush1.msra.mxu0 %v310
    %1668 = vmatprep.subr.mxu0 %v317
    %1669 = vmatpush1.msra.mxu0 %v316
    %1670 = vmatprep.subr.mxu0 %v323
    %1671 = vmatpush1.msra.mxu0 %v322
    %1672 = vmatprep.subr.mxu0 %v329
    %1673 = vmatpush1.msra.mxu0 %v328
    %1674 = vmatprep.subr.mxu0 %v335
    %1675 = vmatpush1.msra.mxu0 %v334
    %1676 = vmatprep.subr.mxu0 %v341
    %1677 = vmatpush1.msra.mxu0 %v340
    %1678 = vmatprep.subr.mxu0 %v347
    %1679 = vmatpush1.msra.mxu0 %v346
    %1680 = vmatprep.subr.mxu0 %v353
    %1681 = vmatpush1.msra.mxu0 %v352
    %1682 = vmatprep.subr.mxu0 %v359
    %1683 = vmatpush1.msra.mxu0 %v358
    %1684 = vmatprep.subr.mxu0 %v365
    %1685 = vmatpush1.msra.mxu0 %v364
    %1686 = vmatprep.subr.mxu0 %v371
    %1687 = vmatpush1.msra.mxu0 %v370
    %1688 = vmatprep.subr.mxu0 0.0
    %1689 = vmatpush1.msra.mxu0 0.0
    %1690 = vmatprep.subr.mxu0 0.0
    %1691 = vmatpush1.msra.mxu0 0.0
    %1692 = vmatprep.subr.mxu0 0.0
    %1693 = vmatpush1.msra.mxu0 0.0
    %1694 = vmatprep.subr.mxu0 0.0
    %1695 = vmatpush1.msra.mxu0 0.0
    %1696 = vmatprep.subr.mxu0 0.0
    %1697 = vmatpush1.msra.mxu0 0.0
    %1698 = vmatprep.subr.mxu0 0.0
    %1699 = vmatpush1.msra.mxu0 0.0
    %1700 = vmatprep.subr.mxu0 0.0
    %1701 = vmatpush1.msra.mxu0 0.0
    %1702 = vmatprep.subr.mxu0 0.0
    %1703 = vmatpush1.msra.mxu0 0.0
    %1704 = vmatprep.subr.mxu0 0.0
    %1705 = vmatpush1.msra.mxu0 0.0
    %1706 = vmatprep.subr.mxu0 0.0
    %1707 = vmatpush1.msra.mxu0 0.0
    %1708 = vmatprep.subr.mxu0 0.0
    %1709 = vmatpush1.msra.mxu0 0.0
    %1710 = vmatprep.subr.mxu0 0.0
    %1711 = vmatpush1.msra.mxu0 0.0
    %1712 = vmatprep.subr.mxu0 0.0
    %1713 = vmatpush1.msra.mxu0 0.0
    %1714 = vmatprep.subr.mxu0 0.0
    %1715 = vmatpush1.msra.mxu0 0.0
    %1716 = vmatprep.subr.mxu0 0.0
    %1717 = vmatpush1.msra.mxu0 0.0
    %1718 = vmatprep.subr.mxu0 0.0
    %1719 = vmatpush1.msra.mxu0 0.0
    %1720 = vmatprep.mubr.f32.mxu0 0.0
    %1721 = vmatmul.mubr.f32.gmra.mrb[0].mxu0 %v1513
    %v1722 = vpop.f32.mrb[0].mxu0
    %v1723 = vadd.f32 0.0, %v1722
    %v1724 = vpop.f32.mrb[0].mxu0
    %v1725 = vadd.f32 0.0, %v1724
    %1726 = vdwg.mxu0
    %v1727 = vadd.f32 %v1654, %v79
    %v1728 = vadd.f32 %v1723, %v83
    %v1729 = vadd.f32 %v1725, %v87
    %1730 = vmatprep.subr.mxu0 %v589
    %1731 = vmatpush1.msra.mxu0 %v588
    %1732 = vmatprep.subr.mxu0 %v592
    %1733 = vmatpush1.msra.mxu0 %v591
    %1734 = vmatprep.subr.mxu0 %v595
    %1735 = vmatpush1.msra.mxu0 %v594
    %1736 = vmatprep.subr.mxu0 %v598
    %1737 = vmatpush1.msra.mxu0 %v597
    %1738 = vmatprep.subr.mxu0 %v601
    %1739 = vmatpush1.msra.mxu0 %v600
    %1740 = vmatprep.subr.mxu0 %v604
    %1741 = vmatpush1.msra.mxu0 %v603
    %1742 = vmatprep.subr.mxu0 %v607
    %1743 = vmatpush1.msra.mxu0 %v606
    %1744 = vmatprep.subr.mxu0 %v610
    %1745 = vmatpush1.msra.mxu0 %v609
    %1746 = vmatprep.subr.mxu0 %v613
    %1747 = vmatpush1.msra.mxu0 %v612
    %1748 = vmatprep.subr.mxu0 %v616
    %1749 = vmatpush1.msra.mxu0 %v615
    %1750 = vmatprep.subr.mxu0 %v619
    %1751 = vmatpush1.msra.mxu0 %v618
    %1752 = vmatprep.subr.mxu0 %v622
    %1753 = vmatpush1.msra.mxu0 %v621
    %1754 = vmatprep.subr.mxu0 %v625
    %1755 = vmatpush1.msra.mxu0 %v624
    %1756 = vmatprep.subr.mxu0 %v628
    %1757 = vmatpush1.msra.mxu0 %v627
    %1758 = vmatprep.subr.mxu0 %v631
    %1759 = vmatpush1.msra.mxu0 %v630
    %1760 = vmatprep.subr.mxu0 %v634
    %1761 = vmatpush1.msra.mxu0 %v633
    %1762 = vmatprep.subr.mxu0 0.0
    %1763 = vmatpush1.msra.mxu0 0.0
    %1764 = vmatprep.subr.mxu0 0.0
    %1765 = vmatpush1.msra.mxu0 0.0
    %1766 = vmatprep.subr.mxu0 0.0
    %1767 = vmatpush1.msra.mxu0 0.0
    %1768 = vmatprep.subr.mxu0 0.0
    %1769 = vmatpush1.msra.mxu0 0.0
    %1770 = vmatprep.subr.mxu0 0.0
    %1771 = vmatpush1.msra.mxu0 0.0
    %1772 = vmatprep.subr.mxu0 0.0
    %1773 = vmatpush1.msra.mxu0 0.0
    %1774 = vmatprep.subr.mxu0 0.0
    %1775 = vmatpush1.msra.mxu0 0.0
    %1776 = vmatprep.subr.mxu0 0.0
    %1777 = vmatpush1.msra.mxu0 0.0
    %1778 = vmatprep.subr.mxu0 0.0
    %1779 = vmatpush1.msra.mxu0 0.0
    %1780 = vmatprep.subr.mxu0 0.0
    %1781 = vmatpush1.msra.mxu0 0.0
    %1782 = vmatprep.subr.mxu0 0.0
    %1783 = vmatpush1.msra.mxu0 0.0
    %1784 = vmatprep.subr.mxu0 0.0
    %1785 = vmatpush1.msra.mxu0 0.0
    %1786 = vmatprep.subr.mxu0 0.0
    %1787 = vmatpush1.msra.mxu0 0.0
    %1788 = vmatprep.subr.mxu0 0.0
    %1789 = vmatpush1.msra.mxu0 0.0
    %1790 = vmatprep.subr.mxu0 0.0
    %1791 = vmatpush1.msra.mxu0 0.0
    %1792 = vmatprep.subr.mxu0 0.0
    %1793 = vmatpush1.msra.mxu0 0.0
    %1794 = vmatprep.mubr.f32.mxu0 0.0
    %1795 = vmatmul.mubr.f32.gmra.mrb[0].mxu0 %v1345
    %v1796 = vpop.f32.mrb[0].mxu0
    %v1797 = vadd.f32 0.0, %v1796
    %v1798 = vpop.f32.mrb[0].mxu0
    %v1799 = vadd.f32 0.0, %v1798
    %1800 = vdwg.mxu0
    %1801 = vmatprep.subr.mxu0 0.0
    %1802 = vmatpush1.msra.mxu0 %v590
    %1803 = vmatprep.subr.mxu0 0.0
    %1804 = vmatpush1.msra.mxu0 %v593
    %1805 = vmatprep.subr.mxu0 0.0
    %1806 = vmatpush1.msra.mxu0 %v596
    %1807 = vmatprep.subr.mxu0 0.0
    %1808 = vmatpush1.msra.mxu0 %v599
    %1809 = vmatprep.subr.mxu0 0.0
    %1810 = vmatpush1.msra.mxu0 %v602
    %1811 = vmatprep.subr.mxu0 0.0
    %1812 = vmatpush1.msra.mxu0 %v605
    %1813 = vmatprep.subr.mxu0 0.0
    %1814 = vmatpush1.msra.mxu0 %v608
    %1815 = vmatprep.subr.mxu0 0.0
    %1816 = vmatpush1.msra.mxu0 %v611
    %1817 = vmatprep.subr.mxu0 0.0
    %1818 = vmatpush1.msra.mxu0 %v614
    %1819 = vmatprep.subr.mxu0 0.0
    %1820 = vmatpush1.msra.mxu0 %v617
    %1821 = vmatprep.subr.mxu0 0.0
    %1822 = vmatpush1.msra.mxu0 %v620
    %1823 = vmatprep.subr.mxu0 0.0
    %1824 = vmatpush1.msra.mxu0 %v623
    %1825 = vmatprep.subr.mxu0 0.0
    %1826 = vmatpush1.msra.mxu0 %v626
    %1827 = vmatprep.subr.mxu0 0.0
    %1828 = vmatpush1.msra.mxu0 %v629
    %1829 = vmatprep.subr.mxu0 0.0
    %1830 = vmatpush1.msra.mxu0 %v632
    %1831 = vmatprep.subr.mxu0 0.0
    %1832 = vmatpush1.msra.mxu0 %v635
    %1833 = vmatprep.subr.mxu0 0.0
    %1834 = vmatpush1.msra.mxu0 0.0
    %1835 = vmatprep.subr.mxu0 0.0
    %1836 = vmatpush1.msra.mxu0 0.0
    %1837 = vmatprep.subr.mxu0 0.0
    %1838 = vmatpush1.msra.mxu0 0.0
    %1839 = vmatprep.subr.mxu0 0.0
    %1840 = vmatpush1.msra.mxu0 0.0
    %1841 = vmatprep.subr.mxu0 0.0
    %1842 = vmatpush1.msra.mxu0 0.0
    %1843 = vmatprep.subr.mxu0 0.0
    %1844 = vmatpush1.msra.mxu0 0.0
    %1845 = vmatprep.subr.mxu0 0.0
    %1846 = vmatpush1.msra.mxu0 0.0
    %1847 = vmatprep.subr.mxu0 0.0
    %1848 = vmatpush1.msra.mxu0 0.0
    %1849 = vmatprep.subr.mxu0 0.0
    %1850 = vmatpush1.msra.mxu0 0.0
    %1851 = vmatprep.subr.mxu0 0.0
    %1852 = vmatpush1.msra.mxu0 0.0
    %1853 = vmatprep.subr.mxu0 0.0
    %1854 = vmatpush1.msra.mxu0 0.0
    %1855 = vmatprep.subr.mxu0 0.0
    %1856 = vmatpush1.msra.mxu0 0.0
    %1857 = vmatprep.subr.mxu0 0.0
    %1858 = vmatpush1.msra.mxu0 0.0
    %1859 = vmatprep.subr.mxu0 0.0
    %1860 = vmatpush1.msra.mxu0 0.0
    %1861 = vmatprep.subr.mxu0 0.0
    %1862 = vmatpush1.msra.mxu0 0.0
    %1863 = vmatprep.subr.mxu0 0.0
    %1864 = vmatpush1.msra.mxu0 0.0
    %1865 = vmatprep.mubr.f32.mxu0 0.0
    %1866 = vmatmul.mubr.f32.gmra.mrb[0].mxu0 %v1345
    %v1867 = vpop.f32.mrb[0].mxu0
    %v1868 = vadd.f32 0.0, %v1867
    %v1869 = vpop.f32.mrb[0].mxu0
    %1870 = vdwg.mxu0
    %v1871 = vadd.f32 %v1727, %v1797
    %v1872 = vxor.u32 %v1871, 2147483648
    %v1873 = vmul.f32 %v1872, 1.442695
    %v1874 = vpow.pop %v1873
    %v1875 = vadd.f32 %v1874, 1.0
    %v1876 = vrcp.pop %v1875
    %v1877 = vmul.f32 1.0, %v1876
    %v1878 = vadd.f32 %v1728, %v1799
    %v1879 = vxor.u32 %v1878, 2147483648
    %v1880 = vmul.f32 %v1879, 1.442695
    %v1881 = vpow.pop %v1880
    %v1882 = vadd.f32 %v1881, 1.0
    %v1883 = vrcp.pop %v1882
    %v1884 = vmul.f32 1.0, %v1883
    %v1885 = vadd.f32 %v1868, %v103
    %v1886 = vmul.f32 %v1877, %v1885
    %v1887 = vadd.f32 %v1729, %v1886
    %v1888 = vtanh.pop %v1887
    %v1889 = vsub.f32 1.0, %v1884
    %v1890 = vmul.f32 %v1889, %v1888
    %v1891 = vmul.f32 %v1884, %v1345
    %v1892 = vadd.f32 %v1890, %v1891
    %s1893 = scalar_lea.vmem %s0, 24
    %v1894 = vld [vmem:[%s1893] sm:$0xff]
    %v1896 = vsel %vm109, %v1894, 0
    %1898 = vmatprep.subr.mxu0 %v107
    %1899 = vmatpush1.msra.mxu0 %v106
    %1900 = vmatprep.subr.mxu0 0.0
    %1901 = vmatpush1.msra.mxu0 0.0
    %1902 = vmatprep.subr.mxu0 0.0
    %1903 = vmatpush1.msra.mxu0 0.0
    %1904 = vmatprep.subr.mxu0 0.0
    %1905 = vmatpush1.msra.mxu0 0.0
    %1906 = vmatprep.subr.mxu0 0.0
    %1907 = vmatpush1.msra.mxu0 0.0
    %1908 = vmatprep.subr.mxu0 0.0
    %1909 = vmatpush1.msra.mxu0 0.0
    %1910 = vmatprep.subr.mxu0 0.0
    %1911 = vmatpush1.msra.mxu0 0.0
    %1912 = vmatprep.subr.mxu0 0.0
    %1913 = vmatpush1.msra.mxu0 0.0
    %1914 = vmatprep.subr.mxu0 0.0
    %1915 = vmatpush1.msra.mxu0 0.0
    %1916 = vmatprep.subr.mxu0 0.0
    %1917 = vmatpush1.msra.mxu0 0.0
    %1918 = vmatprep.subr.mxu0 0.0
    %1919 = vmatpush1.msra.mxu0 0.0
    %1920 = vmatprep.subr.mxu0 0.0
    %1921 = vmatpush1.msra.mxu0 0.0
    %1922 = vmatprep.subr.mxu0 0.0
    %1923 = vmatpush1.msra.mxu0 0.0
    %1924 = vmatprep.subr.mxu0 0.0
    %1925 = vmatpush1.msra.mxu0 0.0
    %1926 = vmatprep.subr.mxu0 0.0
    %1927 = vmatpush1.msra.mxu0 0.0
    %1928 = vmatprep.subr.mxu0 0.0
    %1929 = vmatpush1.msra.mxu0 0.0
    %1930 = vmatprep.subr.mxu0 0.0
    %1931 = vmatpush1.msra.mxu0 0.0
    %1932 = vmatprep.subr.mxu0 0.0
    %1933 = vmatpush1.msra.mxu0 0.0
    %1934 = vmatprep.subr.mxu0 0.0
    %1935 = vmatpush1.msra.mxu0 0.0
    %1936 = vmatprep.subr.mxu0 0.0
    %1937 = vmatpush1.msra.mxu0 0.0
    %1938 = vmatprep.subr.mxu0 0.0
    %1939 = vmatpush1.msra.mxu0 0.0
    %1940 = vmatprep.subr.mxu0 0.0
    %1941 = vmatpush1.msra.mxu0 0.0
    %1942 = vmatprep.subr.mxu0 0.0
    %1943 = vmatpush1.msra.mxu0 0.0
    %1944 = vmatprep.subr.mxu0 0.0
    %1945 = vmatpush1.msra.mxu0 0.0
    %1946 = vmatprep.subr.mxu0 0.0
    %1947 = vmatpush1.msra.mxu0 0.0
    %1948 = vmatprep.subr.mxu0 0.0
    %1949 = vmatpush1.msra.mxu0 0.0
    %1950 = vmatprep.subr.mxu0 0.0
    %1951 = vmatpush1.msra.mxu0 0.0
    %1952 = vmatprep.subr.mxu0 0.0
    %1953 = vmatpush1.msra.mxu0 0.0
    %1954 = vmatprep.subr.mxu0 0.0
    %1955 = vmatpush1.msra.mxu0 0.0
    %1956 = vmatprep.subr.mxu0 0.0
    %1957 = vmatpush1.msra.mxu0 0.0
    %1958 = vmatprep.subr.mxu0 0.0
    %1959 = vmatpush1.msra.mxu0 0.0
    %1960 = vmatprep.subr.mxu0 0.0
    %1961 = vmatpush1.msra.mxu0 0.0
    %1962 = vmatprep.mubr.f32.mxu0 0.0
    %1963 = vmatmul.mubr.f32.gmra.mrb[0].mxu0 %v1896
    %v1964 = vpop.f32.mrb[0].mxu0
    %v1965 = vadd.f32 %v62, %v1964
    %v1966 = vpop.f32.mrb[0].mxu0
    %v1967 = vadd.f32 %v66, %v1966
    %1968 = vdwg.mxu0
    %1969 = vmatprep.subr.mxu0 0.0
    %1970 = vmatpush1.msra.mxu0 %v108
    %1971 = vmatprep.subr.mxu0 0.0
    %1972 = vmatpush1.msra.mxu0 0.0
    %1973 = vmatprep.subr.mxu0 0.0
    %1974 = vmatpush1.msra.mxu0 0.0
    %1975 = vmatprep.subr.mxu0 0.0
    %1976 = vmatpush1.msra.mxu0 0.0
    %1977 = vmatprep.subr.mxu0 0.0
    %1978 = vmatpush1.msra.mxu0 0.0
    %1979 = vmatprep.subr.mxu0 0.0
    %1980 = vmatpush1.msra.mxu0 0.0
    %1981 = vmatprep.subr.mxu0 0.0
    %1982 = vmatpush1.msra.mxu0 0.0
    %1983 = vmatprep.subr.mxu0 0.0
    %1984 = vmatpush1.msra.mxu0 0.0
    %1985 = vmatprep.subr.mxu0 0.0
    %1986 = vmatpush1.msra.mxu0 0.0
    %1987 = vmatprep.subr.mxu0 0.0
    %1988 = vmatpush1.msra.mxu0 0.0
    %1989 = vmatprep.subr.mxu0 0.0
    %1990 = vmatpush1.msra.mxu0 0.0
    %1991 = vmatprep.subr.mxu0 0.0
    %1992 = vmatpush1.msra.mxu0 0.0
    %1993 = vmatprep.subr.mxu0 0.0
    %1994 = vmatpush1.msra.mxu0 0.0
    %1995 = vmatprep.subr.mxu0 0.0
    %1996 = vmatpush1.msra.mxu0 0.0
    %1997 = vmatprep.subr.mxu0 0.0
    %1998 = vmatpush1.msra.mxu0 0.0
    %1999 = vmatprep.subr.mxu0 0.0
    %2000 = vmatpush1.msra.mxu0 0.0
    %2001 = vmatprep.subr.mxu0 0.0
    %2002 = vmatpush1.msra.mxu0 0.0
    %2003 = vmatprep.subr.mxu0 0.0
    %2004 = vmatpush1.msra.mxu0 0.0
    %2005 = vmatprep.subr.mxu0 0.0
    %2006 = vmatpush1.msra.mxu0 0.0
    %2007 = vmatprep.subr.mxu0 0.0
    %2008 = vmatpush1.msra.mxu0 0.0
    %2009 = vmatprep.subr.mxu0 0.0
    %2010 = vmatpush1.msra.mxu0 0.0
    %2011 = vmatprep.subr.mxu0 0.0
    %2012 = vmatpush1.msra.mxu0 0.0
    %2013 = vmatprep.subr.mxu0 0.0
    %2014 = vmatpush1.msra.mxu0 0.0
    %2015 = vmatprep.subr.mxu0 0.0
    %2016 = vmatpush1.msra.mxu0 0.0
    %2017 = vmatprep.subr.mxu0 0.0
    %2018 = vmatpush1.msra.mxu0 0.0
    %2019 = vmatprep.subr.mxu0 0.0
    %2020 = vmatpush1.msra.mxu0 0.0
    %2021 = vmatprep.subr.mxu0 0.0
    %2022 = vmatpush1.msra.mxu0 0.0
    %2023 = vmatprep.subr.mxu0 0.0
    %2024 = vmatpush1.msra.mxu0 0.0
    %2025 = vmatprep.subr.mxu0 0.0
    %2026 = vmatpush1.msra.mxu0 0.0
    %2027 = vmatprep.subr.mxu0 0.0
    %2028 = vmatpush1.msra.mxu0 0.0
    %2029 = vmatprep.subr.mxu0 0.0
    %2030 = vmatpush1.msra.mxu0 0.0
    %2031 = vmatprep.subr.mxu0 0.0
    %2032 = vmatpush1.msra.mxu0 0.0
    %2033 = vmatprep.mubr.f32.mxu0 0.0
    %2034 = vmatmul.mubr.f32.gmra.mrb[0].mxu0 %v1896
    %v2035 = vpop.f32.mrb[0].mxu0
    %v2036 = vadd.f32 %v70, %v2035
    %v2037 = vpop.f32.mrb[0].mxu0
    %2038 = vdwg.mxu0
    %v2039 = vadd.f32 %v1965, %v1581
    %v2040 = vxor.u32 %v2039, 2147483648
    %v2041 = vmul.f32 %v2040, 1.442695
    %v2042 = vpow.pop %v2041
    %v2043 = vadd.f32 %v2042, 1.0
    %v2044 = vrcp.pop %v2043
    %v2045 = vmul.f32 1.0, %v2044
    %v2046 = vadd.f32 %v1967, %v1583
    %v2047 = vxor.u32 %v2046, 2147483648
    %v2048 = vmul.f32 %v2047, 1.442695
    %v2049 = vpow.pop %v2048
    %v2050 = vadd.f32 %v2049, 1.0
    %v2051 = vrcp.pop %v2050
    %v2052 = vmul.f32 1.0, %v2051
    %v2053 = vadd.f32 %v1652, %v96
    %v2054 = vmul.f32 %v2045, %v2053
    %v2055 = vadd.f32 %v2036, %v2054
    %v2056 = vtanh.pop %v2055
    %v2057 = vsub.f32 1.0, %v2052
    %v2058 = vmul.f32 %v2057, %v2056
    %v2059 = vmul.f32 %v2052, %v1513
    %v2060 = vadd.f32 %v2058, %v2059
    %2061 = vmatprep.subr.mxu0 %v277
    %2062 = vmatpush1.msra.mxu0 %v276
    %2063 = vmatprep.subr.mxu0 %v283
    %2064 = vmatpush1.msra.mxu0 %v282
    %2065 = vmatprep.subr.mxu0 %v289
    %2066 = vmatpush1.msra.mxu0 %v288
    %2067 = vmatprep.subr.mxu0 %v295
    %2068 = vmatpush1.msra.mxu0 %v294
    %2069 = vmatprep.subr.mxu0 %v301
    %2070 = vmatpush1.msra.mxu0 %v300
    %2071 = vmatprep.subr.mxu0 %v307
    %2072 = vmatpush1.msra.mxu0 %v306
    %2073 = vmatprep.subr.mxu0 %v313
    %2074 = vmatpush1.msra.mxu0 %v312
    %2075 = vmatprep.subr.mxu0 %v319
    %2076 = vmatpush1.msra.mxu0 %v318
    %2077 = vmatprep.subr.mxu0 %v325
    %2078 = vmatpush1.msra.mxu0 %v324
    %2079 = vmatprep.subr.mxu0 %v331
    %2080 = vmatpush1.msra.mxu0 %v330
    %2081 = vmatprep.subr.mxu0 %v337
    %2082 = vmatpush1.msra.mxu0 %v336
    %2083 = vmatprep.subr.mxu0 %v343
    %2084 = vmatpush1.msra.mxu0 %v342
    %2085 = vmatprep.subr.mxu0 %v349
    %2086 = vmatpush1.msra.mxu0 %v348
    %2087 = vmatprep.subr.mxu0 %v355
    %2088 = vmatpush1.msra.mxu0 %v354
    %2089 = vmatprep.subr.mxu0 %v361
    %2090 = vmatpush1.msra.mxu0 %v360
    %2091 = vmatprep.subr.mxu0 %v367
    %2092 = vmatpush1.msra.mxu0 %v366
    %2093 = vmatprep.subr.mxu0 0.0
    %2094 = vmatpush1.msra.mxu0 0.0
    %2095 = vmatprep.subr.mxu0 0.0
    %2096 = vmatpush1.msra.mxu0 0.0
    %2097 = vmatprep.subr.mxu0 0.0
    %2098 = vmatpush1.msra.mxu0 0.0
    %2099 = vmatprep.subr.mxu0 0.0
    %2100 = vmatpush1.msra.mxu0 0.0
    %2101 = vmatprep.subr.mxu0 0.0
    %2102 = vmatpush1.msra.mxu0 0.0
    %2103 = vmatprep.subr.mxu0 0.0
    %2104 = vmatpush1.msra.mxu0 0.0
    %2105 = vmatprep.subr.mxu0 0.0
    %2106 = vmatpush1.msra.mxu0 0.0
    %2107 = vmatprep.subr.mxu0 0.0
    %2108 = vmatpush1.msra.mxu0 0.0
    %2109 = vmatprep.subr.mxu0 0.0
    %2110 = vmatpush1.msra.mxu0 0.0
    %2111 = vmatprep.subr.mxu0 0.0
    %2112 = vmatpush1.msra.mxu0 0.0
    %2113 = vmatprep.subr.mxu0 0.0
    %2114 = vmatpush1.msra.mxu0 0.0
    %2115 = vmatprep.subr.mxu0 0.0
    %2116 = vmatpush1.msra.mxu0 0.0
    %2117 = vmatprep.subr.mxu0 0.0
    %2118 = vmatpush1.msra.mxu0 0.0
    %2119 = vmatprep.subr.mxu0 0.0
    %2120 = vmatpush1.msra.mxu0 0.0
    %2121 = vmatprep.subr.mxu0 0.0
    %2122 = vmatpush1.msra.mxu0 0.0
    %2123 = vmatprep.subr.mxu0 0.0
    %2124 = vmatpush1.msra.mxu0 0.0
    %2125 = vmatprep.mubr.f32.mxu0 0.0
    %2126 = vmatmul.mubr.f32.gmra.mrb[0].mxu0 %v2060
    %v2127 = vpop.f32.mrb[0].mxu0
    %v2128 = vadd.f32 0.0, %v2127
    %v2129 = vpop.f32.mrb[0].mxu0
    %v2130 = vadd.f32 0.0, %v2129
    %2131 = vdwg.mxu0
    %2132 = vmatprep.subr.mxu0 %v279
    %2133 = vmatpush1.msra.mxu0 %v278
    %2134 = vmatprep.subr.mxu0 %v285
    %2135 = vmatpush1.msra.mxu0 %v284
    %2136 = vmatprep.subr.mxu0 %v291
    %2137 = vmatpush1.msra.mxu0 %v290
    %2138 = vmatprep.subr.mxu0 %v297
    %2139 = vmatpush1.msra.mxu0 %v296
    %2140 = vmatprep.subr.mxu0 %v303
    %2141 = vmatpush1.msra.mxu0 %v302
    %2142 = vmatprep.subr.mxu0 %v309
    %2143 = vmatpush1.msra.mxu0 %v308
    %2144 = vmatprep.subr.mxu0 %v315
    %2145 = vmatpush1.msra.mxu0 %v314
    %2146 = vmatprep.subr.mxu0 %v321
    %2147 = vmatpush1.msra.mxu0 %v320
    %2148 = vmatprep.subr.mxu0 %v327
    %2149 = vmatpush1.msra.mxu0 %v326
    %2150 = vmatprep.subr.mxu0 %v333
    %2151 = vmatpush1.msra.mxu0 %v332
    %2152 = vmatprep.subr.mxu0 %v339
    %2153 = vmatpush1.msra.mxu0 %v338
    %2154 = vmatprep.subr.mxu0 %v345
    %2155 = vmatpush1.msra.mxu0 %v344
    %2156 = vmatprep.subr.mxu0 %v351
    %2157 = vmatpush1.msra.mxu0 %v350
    %2158 = vmatprep.subr.mxu0 %v357
    %2159 = vmatpush1.msra.mxu0 %v356
    %2160 = vmatprep.subr.mxu0 %v363
    %2161 = vmatpush1.msra.mxu0 %v362
    %2162 = vmatprep.subr.mxu0 %v369
    %2163 = vmatpush1.msra.mxu0 %v368
    %2164 = vmatprep.subr.mxu0 0.0
    %2165 = vmatpush1.msra.mxu0 0.0
    %2166 = vmatprep.subr.mxu0 0.0
    %2167 = vmatpush1.msra.mxu0 0.0
    %2168 = vmatprep.subr.mxu0 0.0
    %2169 = vmatpush1.msra.mxu0 0.0
    %2170 = vmatprep.subr.mxu0 0.0
    %2171 = vmatpush1.msra.mxu0 0.0
    %2172 = vmatprep.subr.mxu0 0.0
    %2173 = vmatpush1.msra.mxu0 0.0
    %2174 = vmatprep.subr.mxu0 0.0
    %2175 = vmatpush1.msra.mxu0 0.0
    %2176 = vmatprep.subr.mxu0 0.0
    %2177 = vmatpush1.msra.mxu0 0.0
    %2178 = vmatprep.subr.mxu0 0.0
    %2179 = vmatpush1.msra.mxu0 0.0
    %2180 = vmatprep.subr.mxu0 0.0
    %2181 = vmatpush1.msra.mxu0 0.0
    %2182 = vmatprep.subr.mxu0 0.0
    %2183 = vmatpush1.msra.mxu0 0.0
    %2184 = vmatprep.subr.mxu0 0.0
    %2185 = vmatpush1.msra.mxu0 0.0
    %2186 = vmatprep.subr.mxu0 0.0
    %2187 = vmatpush1.msra.mxu0 0.0
    %2188 = vmatprep.subr.mxu0 0.0
    %2189 = vmatpush1.msra.mxu0 0.0
    %2190 = vmatprep.subr.mxu0 0.0
    %2191 = vmatpush1.msra.mxu0 0.0
    %2192 = vmatprep.subr.mxu0 0.0
    %2193 = vmatpush1.msra.mxu0 0.0
    %2194 = vmatprep.subr.mxu0 0.0
    %2195 = vmatpush1.msra.mxu0 0.0
    %2196 = vmatprep.mubr.f32.mxu0 0.0
    %2197 = vmatmul.mubr.f32.gmra.mrb[0].mxu0 %v2060
    %v2198 = vpop.f32.mrb[0].mxu0
    %v2199 = vadd.f32 0.0, %v2198
    %v2200 = vpop.f32.mrb[0].mxu0
    %v2201 = vadd.f32 0.0, %v2200
    %2202 = vdwg.mxu0
    %2203 = vmatprep.subr.mxu0 %v281
    %2204 = vmatpush1.msra.mxu0 %v280
    %2205 = vmatprep.subr.mxu0 %v287
    %2206 = vmatpush1.msra.mxu0 %v286
    %2207 = vmatprep.subr.mxu0 %v293
    %2208 = vmatpush1.msra.mxu0 %v292
    %2209 = vmatprep.subr.mxu0 %v299
    %2210 = vmatpush1.msra.mxu0 %v298
    %2211 = vmatprep.subr.mxu0 %v305
    %2212 = vmatpush1.msra.mxu0 %v304
    %2213 = vmatprep.subr.mxu0 %v311
    %2214 = vmatpush1.msra.mxu0 %v310
    %2215 = vmatprep.subr.mxu0 %v317
    %2216 = vmatpush1.msra.mxu0 %v316
    %2217 = vmatprep.subr.mxu0 %v323
    %2218 = vmatpush1.msra.mxu0 %v322
    %2219 = vmatprep.subr.mxu0 %v329
    %2220 = vmatpush1.msra.mxu0 %v328
    %2221 = vmatprep.subr.mxu0 %v335
    %2222 = vmatpush1.msra.mxu0 %v334
    %2223 = vmatprep.subr.mxu0 %v341
    %2224 = vmatpush1.msra.mxu0 %v340
    %2225 = vmatprep.subr.mxu0 %v347
    %2226 = vmatpush1.msra.mxu0 %v346
    %2227 = vmatprep.subr.mxu0 %v353
    %2228 = vmatpush1.msra.mxu0 %v352
    %2229 = vmatprep.subr.mxu0 %v359
    %2230 = vmatpush1.msra.mxu0 %v358
    %2231 = vmatprep.subr.mxu0 %v365
    %2232 = vmatpush1.msra.mxu0 %v364
    %2233 = vmatprep.subr.mxu0 %v371
    %2234 = vmatpush1.msra.mxu0 %v370
    %2235 = vmatprep.subr.mxu0 0.0
    %2236 = vmatpush1.msra.mxu0 0.0
    %2237 = vmatprep.subr.mxu0 0.0
    %2238 = vmatpush1.msra.mxu0 0.0
    %2239 = vmatprep.subr.mxu0 0.0
    %2240 = vmatpush1.msra.mxu0 0.0
    %2241 = vmatprep.subr.mxu0 0.0
    %2242 = vmatpush1.msra.mxu0 0.0
    %2243 = vmatprep.subr.mxu0 0.0
    %2244 = vmatpush1.msra.mxu0 0.0
    %2245 = vmatprep.subr.mxu0 0.0
    %2246 = vmatpush1.msra.mxu0 0.0
    %2247 = vmatprep.subr.mxu0 0.0
    %2248 = vmatpush1.msra.mxu0 0.0
    %2249 = vmatprep.subr.mxu0 0.0
    %2250 = vmatpush1.msra.mxu0 0.0
    %2251 = vmatprep.subr.mxu0 0.0
    %2252 = vmatpush1.msra.mxu0 0.0
    %2253 = vmatprep.subr.mxu0 0.0
    %2254 = vmatpush1.msra.mxu0 0.0
    %2255 = vmatprep.subr.mxu0 0.0
    %2256 = vmatpush1.msra.mxu0 0.0
    %2257 = vmatprep.subr.mxu0 0.0
    %2258 = vmatpush1.msra.mxu0 0.0
    %2259 = vmatprep.subr.mxu0 0.0
    %2260 = vmatpush1.msra.mxu0 0.0
    %2261 = vmatprep.subr.mxu0 0.0
    %2262 = vmatpush1.msra.mxu0 0.0
    %2263 = vmatprep.subr.mxu0 0.0
    %2264 = vmatpush1.msra.mxu0 0.0
    %2265 = vmatprep.subr.mxu0 0.0
    %2266 = vmatpush1.msra.mxu0 0.0
    %2267 = vmatprep.mubr.f32.mxu0 0.0
    %2268 = vmatmul.mubr.f32.gmra.mrb[0].mxu0 %v2060
    %v2269 = vpop.f32.mrb[0].mxu0
    %v2270 = vadd.f32 0.0, %v2269
    %v2271 = vpop.f32.mrb[0].mxu0
    %v2272 = vadd.f32 0.0, %v2271
    %2273 = vdwg.mxu0
    %v2274 = vadd.f32 %v2201, %v79
    %v2275 = vadd.f32 %v2270, %v83
    %v2276 = vadd.f32 %v2272, %v87
    %2277 = vmatprep.subr.mxu0 %v589
    %2278 = vmatpush1.msra.mxu0 %v588
    %2279 = vmatprep.subr.mxu0 %v592
    %2280 = vmatpush1.msra.mxu0 %v591
    %2281 = vmatprep.subr.mxu0 %v595
    %2282 = vmatpush1.msra.mxu0 %v594
    %2283 = vmatprep.subr.mxu0 %v598
    %2284 = vmatpush1.msra.mxu0 %v597
    %2285 = vmatprep.subr.mxu0 %v601
    %2286 = vmatpush1.msra.mxu0 %v600
    %2287 = vmatprep.subr.mxu0 %v604
    %2288 = vmatpush1.msra.mxu0 %v603
    %2289 = vmatprep.subr.mxu0 %v607
    %2290 = vmatpush1.msra.mxu0 %v606
    %2291 = vmatprep.subr.mxu0 %v610
    %2292 = vmatpush1.msra.mxu0 %v609
    %2293 = vmatprep.subr.mxu0 %v613
    %2294 = vmatpush1.msra.mxu0 %v612
    %2295 = vmatprep.subr.mxu0 %v616
    %2296 = vmatpush1.msra.mxu0 %v615
    %2297 = vmatprep.subr.mxu0 %v619
    %2298 = vmatpush1.msra.mxu0 %v618
    %2299 = vmatprep.subr.mxu0 %v622
    %2300 = vmatpush1.msra.mxu0 %v621
    %2301 = vmatprep.subr.mxu0 %v625
    %2302 = vmatpush1.msra.mxu0 %v624
    %2303 = vmatprep.subr.mxu0 %v628
    %2304 = vmatpush1.msra.mxu0 %v627
    %2305 = vmatprep.subr.mxu0 %v631
    %2306 = vmatpush1.msra.mxu0 %v630
    %2307 = vmatprep.subr.mxu0 %v634
    %2308 = vmatpush1.msra.mxu0 %v633
    %2309 = vmatprep.subr.mxu0 0.0
    %2310 = vmatpush1.msra.mxu0 0.0
    %2311 = vmatprep.subr.mxu0 0.0
    %2312 = vmatpush1.msra.mxu0 0.0
    %2313 = vmatprep.subr.mxu0 0.0
    %2314 = vmatpush1.msra.mxu0 0.0
    %2315 = vmatprep.subr.mxu0 0.0
    %2316 = vmatpush1.msra.mxu0 0.0
    %2317 = vmatprep.subr.mxu0 0.0
    %2318 = vmatpush1.msra.mxu0 0.0
    %2319 = vmatprep.subr.mxu0 0.0
    %2320 = vmatpush1.msra.mxu0 0.0
    %2321 = vmatprep.subr.mxu0 0.0
    %2322 = vmatpush1.msra.mxu0 0.0
    %2323 = vmatprep.subr.mxu0 0.0
    %2324 = vmatpush1.msra.mxu0 0.0
    %2325 = vmatprep.subr.mxu0 0.0
    %2326 = vmatpush1.msra.mxu0 0.0
    %2327 = vmatprep.subr.mxu0 0.0
    %2328 = vmatpush1.msra.mxu0 0.0
    %2329 = vmatprep.subr.mxu0 0.0
    %2330 = vmatpush1.msra.mxu0 0.0
    %2331 = vmatprep.subr.mxu0 0.0
    %2332 = vmatpush1.msra.mxu0 0.0
    %2333 = vmatprep.subr.mxu0 0.0
    %2334 = vmatpush1.msra.mxu0 0.0
    %2335 = vmatprep.subr.mxu0 0.0
    %2336 = vmatpush1.msra.mxu0 0.0
    %2337 = vmatprep.subr.mxu0 0.0
    %2338 = vmatpush1.msra.mxu0 0.0
    %2339 = vmatprep.subr.mxu0 0.0
    %2340 = vmatpush1.msra.mxu0 0.0
    %2341 = vmatprep.mubr.f32.mxu0 0.0
    %2342 = vmatmul.mubr.f32.gmra.mrb[0].mxu0 %v1892
    %v2343 = vpop.f32.mrb[0].mxu0
    %v2344 = vadd.f32 0.0, %v2343
    %v2345 = vpop.f32.mrb[0].mxu0
    %v2346 = vadd.f32 0.0, %v2345
    %2347 = vdwg.mxu0
    %2348 = vmatprep.subr.mxu0 0.0
    %2349 = vmatpush1.msra.mxu0 %v590
    %2350 = vmatprep.subr.mxu0 0.0
    %2351 = vmatpush1.msra.mxu0 %v593
    %2352 = vmatprep.subr.mxu0 0.0
    %2353 = vmatpush1.msra.mxu0 %v596
    %2354 = vmatprep.subr.mxu0 0.0
    %2355 = vmatpush1.msra.mxu0 %v599
    %2356 = vmatprep.subr.mxu0 0.0
    %2357 = vmatpush1.msra.mxu0 %v602
    %2358 = vmatprep.subr.mxu0 0.0
    %2359 = vmatpush1.msra.mxu0 %v605
    %2360 = vmatprep.subr.mxu0 0.0
    %2361 = vmatpush1.msra.mxu0 %v608
    %2362 = vmatprep.subr.mxu0 0.0
    %2363 = vmatpush1.msra.mxu0 %v611
    %2364 = vmatprep.subr.mxu0 0.0
    %2365 = vmatpush1.msra.mxu0 %v614
    %2366 = vmatprep.subr.mxu0 0.0
    %2367 = vmatpush1.msra.mxu0 %v617
    %2368 = vmatprep.subr.mxu0 0.0
    %2369 = vmatpush1.msra.mxu0 %v620
    %2370 = vmatprep.subr.mxu0 0.0
    %2371 = vmatpush1.msra.mxu0 %v623
    %2372 = vmatprep.subr.mxu0 0.0
    %2373 = vmatpush1.msra.mxu0 %v626
    %2374 = vmatprep.subr.mxu0 0.0
    %2375 = vmatpush1.msra.mxu0 %v629
    %2376 = vmatprep.subr.mxu0 0.0
    %2377 = vmatpush1.msra.mxu0 %v632
    %2378 = vmatprep.subr.mxu0 0.0
    %2379 = vmatpush1.msra.mxu0 %v635
    %2380 = vmatprep.subr.mxu0 0.0
    %2381 = vmatpush1.msra.mxu0 0.0
    %2382 = vmatprep.subr.mxu0 0.0
    %2383 = vmatpush1.msra.mxu0 0.0
    %2384 = vmatprep.subr.mxu0 0.0
    %2385 = vmatpush1.msra.mxu0 0.0
    %2386 = vmatprep.subr.mxu0 0.0
    %2387 = vmatpush1.msra.mxu0 0.0
    %2388 = vmatprep.subr.mxu0 0.0
    %2389 = vmatpush1.msra.mxu0 0.0
    %2390 = vmatprep.subr.mxu0 0.0
    %2391 = vmatpush1.msra.mxu0 0.0
    %2392 = vmatprep.subr.mxu0 0.0
    %2393 = vmatpush1.msra.mxu0 0.0
    %2394 = vmatprep.subr.mxu0 0.0
    %2395 = vmatpush1.msra.mxu0 0.0
    %2396 = vmatprep.subr.mxu0 0.0
    %2397 = vmatpush1.msra.mxu0 0.0
    %2398 = vmatprep.subr.mxu0 0.0
    %2399 = vmatpush1.msra.mxu0 0.0
    %2400 = vmatprep.subr.mxu0 0.0
    %2401 = vmatpush1.msra.mxu0 0.0
    %2402 = vmatprep.subr.mxu0 0.0
    %2403 = vmatpush1.msra.mxu0 0.0
    %2404 = vmatprep.subr.mxu0 0.0
    %2405 = vmatpush1.msra.mxu0 0.0
    %2406 = vmatprep.subr.mxu0 0.0
    %2407 = vmatpush1.msra.mxu0 0.0
    %2408 = vmatprep.subr.mxu0 0.0
    %2409 = vmatpush1.msra.mxu0 0.0
    %2410 = vmatprep.subr.mxu0 0.0
    %2411 = vmatpush1.msra.mxu0 0.0
    %2412 = vmatprep.mubr.f32.mxu0 0.0
    %2413 = vmatmul.mubr.f32.gmra.mrb[0].mxu0 %v1892
    %v2414 = vpop.f32.mrb[0].mxu0
    %v2415 = vadd.f32 0.0, %v2414
    %v2416 = vpop.f32.mrb[0].mxu0
    %2417 = vdwg.mxu0
    %v2418 = vadd.f32 %v2274, %v2344
    %v2419 = vxor.u32 %v2418, 2147483648
    %v2420 = vmul.f32 %v2419, 1.442695
    %v2421 = vpow.pop %v2420
    %v2422 = vadd.f32 %v2421, 1.0
    %v2423 = vrcp.pop %v2422
    %v2424 = vmul.f32 1.0, %v2423
    %v2425 = vadd.f32 %v2275, %v2346
    %v2426 = vxor.u32 %v2425, 2147483648
    %v2427 = vmul.f32 %v2426, 1.442695
    %v2428 = vpow.pop %v2427
    %v2429 = vadd.f32 %v2428, 1.0
    %v2430 = vrcp.pop %v2429
    %v2431 = vmul.f32 1.0, %v2430
    %v2432 = vadd.f32 %v2415, %v103
    %v2433 = vmul.f32 %v2424, %v2432
    %v2434 = vadd.f32 %v2276, %v2433
    %v2435 = vtanh.pop %v2434
    %v2436 = vsub.f32 1.0, %v2431
    %v2437 = vmul.f32 %v2436, %v2435
    %v2438 = vmul.f32 %v2431, %v1892
    %v2439 = vadd.f32 %v2437, %v2438
    %s2440 = scalar_lea.vmem %s0, 32
    %v2441 = vld [vmem:[%s2440] sm:$0xff]
    %v2443 = vsel %vm109, %v2441, 0
    %2445 = vmatprep.subr.mxu0 %v107
    %2446 = vmatpush1.msra.mxu0 %v106
    %2447 = vmatprep.subr.mxu0 0.0
    %2448 = vmatpush1.msra.mxu0 0.0
    %2449 = vmatprep.subr.mxu0 0.0
    %2450 = vmatpush1.msra.mxu0 0.0
    %2451 = vmatprep.subr.mxu0 0.0
    %2452 = vmatpush1.msra.mxu0 0.0
    %2453 = vmatprep.subr.mxu0 0.0
    %2454 = vmatpush1.msra.mxu0 0.0
    %2455 = vmatprep.subr.mxu0 0.0
    %2456 = vmatpush1.msra.mxu0 0.0
    %2457 = vmatprep.subr.mxu0 0.0
    %2458 = vmatpush1.msra.mxu0 0.0
    %2459 = vmatprep.subr.mxu0 0.0
    %2460 = vmatpush1.msra.mxu0 0.0
    %2461 = vmatprep.subr.mxu0 0.0
    %2462 = vmatpush1.msra.mxu0 0.0
    %2463 = vmatprep.subr.mxu0 0.0
    %2464 = vmatpush1.msra.mxu0 0.0
    %2465 = vmatprep.subr.mxu0 0.0
    %2466 = vmatpush1.msra.mxu0 0.0
    %2467 = vmatprep.subr.mxu0 0.0
    %2468 = vmatpush1.msra.mxu0 0.0
    %2469 = vmatprep.subr.mxu0 0.0
    %2470 = vmatpush1.msra.mxu0 0.0
    %2471 = vmatprep.subr.mxu0 0.0
    %2472 = vmatpush1.msra.mxu0 0.0
    %2473 = vmatprep.subr.mxu0 0.0
    %2474 = vmatpush1.msra.mxu0 0.0
    %2475 = vmatprep.subr.mxu0 0.0
    %2476 = vmatpush1.msra.mxu0 0.0
    %2477 = vmatprep.subr.mxu0 0.0
    %2478 = vmatpush1.msra.mxu0 0.0
    %2479 = vmatprep.subr.mxu0 0.0
    %2480 = vmatpush1.msra.mxu0 0.0
    %2481 = vmatprep.subr.mxu0 0.0
    %2482 = vmatpush1.msra.mxu0 0.0
    %2483 = vmatprep.subr.mxu0 0.0
    %2484 = vmatpush1.msra.mxu0 0.0
    %2485 = vmatprep.subr.mxu0 0.0
    %2486 = vmatpush1.msra.mxu0 0.0
    %2487 = vmatprep.subr.mxu0 0.0
    %2488 = vmatpush1.msra.mxu0 0.0
    %2489 = vmatprep.subr.mxu0 0.0
    %2490 = vmatpush1.msra.mxu0 0.0
    %2491 = vmatprep.subr.mxu0 0.0
    %2492 = vmatpush1.msra.mxu0 0.0
    %2493 = vmatprep.subr.mxu0 0.0
    %2494 = vmatpush1.msra.mxu0 0.0
    %2495 = vmatprep.subr.mxu0 0.0
    %2496 = vmatpush1.msra.mxu0 0.0
    %2497 = vmatprep.subr.mxu0 0.0
    %2498 = vmatpush1.msra.mxu0 0.0
    %2499 = vmatprep.subr.mxu0 0.0
    %2500 = vmatpush1.msra.mxu0 0.0
    %2501 = vmatprep.subr.mxu0 0.0
    %2502 = vmatpush1.msra.mxu0 0.0
    %2503 = vmatprep.subr.mxu0 0.0
    %2504 = vmatpush1.msra.mxu0 0.0
    %2505 = vmatprep.subr.mxu0 0.0
    %2506 = vmatpush1.msra.mxu0 0.0
    %2507 = vmatprep.subr.mxu0 0.0
    %2508 = vmatpush1.msra.mxu0 0.0
    %2509 = vmatprep.mubr.f32.mxu0 0.0
    %2510 = vmatmul.mubr.f32.gmra.mrb[0].mxu0 %v2443
    %v2511 = vpop.f32.mrb[0].mxu0
    %v2512 = vadd.f32 %v62, %v2511
    %v2513 = vpop.f32.mrb[0].mxu0
    %v2514 = vadd.f32 %v66, %v2513
    %2515 = vdwg.mxu0
    %2516 = vmatprep.subr.mxu0 0.0
    %2517 = vmatpush1.msra.mxu0 %v108
    %2518 = vmatprep.subr.mxu0 0.0
    %2519 = vmatpush1.msra.mxu0 0.0
    %2520 = vmatprep.subr.mxu0 0.0
    %2521 = vmatpush1.msra.mxu0 0.0
    %2522 = vmatprep.subr.mxu0 0.0
    %2523 = vmatpush1.msra.mxu0 0.0
    %2524 = vmatprep.subr.mxu0 0.0
    %2525 = vmatpush1.msra.mxu0 0.0
    %2526 = vmatprep.subr.mxu0 0.0
    %2527 = vmatpush1.msra.mxu0 0.0
    %2528 = vmatprep.subr.mxu0 0.0
    %2529 = vmatpush1.msra.mxu0 0.0
    %2530 = vmatprep.subr.mxu0 0.0
    %2531 = vmatpush1.msra.mxu0 0.0
    %2532 = vmatprep.subr.mxu0 0.0
    %2533 = vmatpush1.msra.mxu0 0.0
    %2534 = vmatprep.subr.mxu0 0.0
    %2535 = vmatpush1.msra.mxu0 0.0
    %2536 = vmatprep.subr.mxu0 0.0
    %2537 = vmatpush1.msra.mxu0 0.0
    %2538 = vmatprep.subr.mxu0 0.0
    %2539 = vmatpush1.msra.mxu0 0.0
    %2540 = vmatprep.subr.mxu0 0.0
    %2541 = vmatpush1.msra.mxu0 0.0
    %2542 = vmatprep.subr.mxu0 0.0
    %2543 = vmatpush1.msra.mxu0 0.0
    %2544 = vmatprep.subr.mxu0 0.0
    %2545 = vmatpush1.msra.mxu0 0.0
    %2546 = vmatprep.subr.mxu0 0.0
    %2547 = vmatpush1.msra.mxu0 0.0
    %2548 = vmatprep.subr.mxu0 0.0
    %2549 = vmatpush1.msra.mxu0 0.0
    %2550 = vmatprep.subr.mxu0 0.0
    %2551 = vmatpush1.msra.mxu0 0.0
    %2552 = vmatprep.subr.mxu0 0.0
    %2553 = vmatpush1.msra.mxu0 0.0
    %2554 = vmatprep.subr.mxu0 0.0
    %2555 = vmatpush1.msra.mxu0 0.0
    %2556 = vmatprep.subr.mxu0 0.0
    %2557 = vmatpush1.msra.mxu0 0.0
    %2558 = vmatprep.subr.mxu0 0.0
    %2559 = vmatpush1.msra.mxu0 0.0
    %2560 = vmatprep.subr.mxu0 0.0
    %2561 = vmatpush1.msra.mxu0 0.0
    %2562 = vmatprep.subr.mxu0 0.0
    %2563 = vmatpush1.msra.mxu0 0.0
    %2564 = vmatprep.subr.mxu0 0.0
    %2565 = vmatpush1.msra.mxu0 0.0
    %2566 = vmatprep.subr.mxu0 0.0
    %2567 = vmatpush1.msra.mxu0 0.0
    %2568 = vmatprep.subr.mxu0 0.0
    %2569 = vmatpush1.msra.mxu0 0.0
    %2570 = vmatprep.subr.mxu0 0.0
    %2571 = vmatpush1.msra.mxu0 0.0
    %2572 = vmatprep.subr.mxu0 0.0
    %2573 = vmatpush1.msra.mxu0 0.0
    %2574 = vmatprep.subr.mxu0 0.0
    %2575 = vmatpush1.msra.mxu0 0.0
    %2576 = vmatprep.subr.mxu0 0.0
    %2577 = vmatpush1.msra.mxu0 0.0
    %2578 = vmatprep.subr.mxu0 0.0
    %2579 = vmatpush1.msra.mxu0 0.0
    %2580 = vmatprep.mubr.f32.mxu0 0.0
    %2581 = vmatmul.mubr.f32.gmra.mrb[0].mxu0 %v2443
    %v2582 = vpop.f32.mrb[0].mxu0
    %v2583 = vadd.f32 %v70, %v2582
    %v2584 = vpop.f32.mrb[0].mxu0
    %2585 = vdwg.mxu0
    %v2586 = vadd.f32 %v2512, %v2128
    %v2587 = vxor.u32 %v2586, 2147483648
    %v2588 = vmul.f32 %v2587, 1.442695
    %v2589 = vpow.pop %v2588
    %v2590 = vadd.f32 %v2589, 1.0
    %v2591 = vrcp.pop %v2590
    %v2592 = vmul.f32 1.0, %v2591
    %v2593 = vadd.f32 %v2514, %v2130
    %v2594 = vxor.u32 %v2593, 2147483648
    %v2595 = vmul.f32 %v2594, 1.442695
    %v2596 = vpow.pop %v2595
    %v2597 = vadd.f32 %v2596, 1.0
    %v2598 = vrcp.pop %v2597
    %v2599 = vmul.f32 1.0, %v2598
    %v2600 = vadd.f32 %v2199, %v96
    %v2601 = vmul.f32 %v2592, %v2600
    %v2602 = vadd.f32 %v2583, %v2601
    %v2603 = vtanh.pop %v2602
    %v2604 = vsub.f32 1.0, %v2599
    %v2605 = vmul.f32 %v2604, %v2603
    %v2606 = vmul.f32 %v2599, %v2060
    %v2607 = vadd.f32 %v2605, %v2606
    %2608 = vmatprep.subr.mxu0 %v277
    %2609 = vmatpush1.msra.mxu0 %v276
    %2610 = vmatprep.subr.mxu0 %v283
    %2611 = vmatpush1.msra.mxu0 %v282
    %2612 = vmatprep.subr.mxu0 %v289
    %2613 = vmatpush1.msra.mxu0 %v288
    %2614 = vmatprep.subr.mxu0 %v295
    %2615 = vmatpush1.msra.mxu0 %v294
    %2616 = vmatprep.subr.mxu0 %v301
    %2617 = vmatpush1.msra.mxu0 %v300
    %2618 = vmatprep.subr.mxu0 %v307
    %2619 = vmatpush1.msra.mxu0 %v306
    %2620 = vmatprep.subr.mxu0 %v313
    %2621 = vmatpush1.msra.mxu0 %v312
    %2622 = vmatprep.subr.mxu0 %v319
    %2623 = vmatpush1.msra.mxu0 %v318
    %2624 = vmatprep.subr.mxu0 %v325
    %2625 = vmatpush1.msra.mxu0 %v324
    %2626 = vmatprep.subr.mxu0 %v331
    %2627 = vmatpush1.msra.mxu0 %v330
    %2628 = vmatprep.subr.mxu0 %v337
    %2629 = vmatpush1.msra.mxu0 %v336
    %2630 = vmatprep.subr.mxu0 %v343
    %2631 = vmatpush1.msra.mxu0 %v342
    %2632 = vmatprep.subr.mxu0 %v349
    %2633 = vmatpush1.msra.mxu0 %v348
    %2634 = vmatprep.subr.mxu0 %v355
    %2635 = vmatpush1.msra.mxu0 %v354
    %2636 = vmatprep.subr.mxu0 %v361
    %2637 = vmatpush1.msra.mxu0 %v360
    %2638 = vmatprep.subr.mxu0 %v367
    %2639 = vmatpush1.msra.mxu0 %v366
    %2640 = vmatprep.subr.mxu0 0.0
    %2641 = vmatpush1.msra.mxu0 0.0
    %2642 = vmatprep.subr.mxu0 0.0
    %2643 = vmatpush1.msra.mxu0 0.0
    %2644 = vmatprep.subr.mxu0 0.0
    %2645 = vmatpush1.msra.mxu0 0.0
    %2646 = vmatprep.subr.mxu0 0.0
    %2647 = vmatpush1.msra.mxu0 0.0
    %2648 = vmatprep.subr.mxu0 0.0
    %2649 = vmatpush1.msra.mxu0 0.0
    %2650 = vmatprep.subr.mxu0 0.0
    %2651 = vmatpush1.msra.mxu0 0.0
    %2652 = vmatprep.subr.mxu0 0.0
    %2653 = vmatpush1.msra.mxu0 0.0
    %2654 = vmatprep.subr.mxu0 0.0
    %2655 = vmatpush1.msra.mxu0 0.0
    %2656 = vmatprep.subr.mxu0 0.0
    %2657 = vmatpush1.msra.mxu0 0.0
    %2658 = vmatprep.subr.mxu0 0.0
    %2659 = vmatpush1.msra.mxu0 0.0
    %2660 = vmatprep.subr.mxu0 0.0
    %2661 = vmatpush1.msra.mxu0 0.0
    %2662 = vmatprep.subr.mxu0 0.0
    %2663 = vmatpush1.msra.mxu0 0.0
    %2664 = vmatprep.subr.mxu0 0.0
    %2665 = vmatpush1.msra.mxu0 0.0
    %2666 = vmatprep.subr.mxu0 0.0
    %2667 = vmatpush1.msra.mxu0 0.0
    %2668 = vmatprep.subr.mxu0 0.0
    %2669 = vmatpush1.msra.mxu0 0.0
    %2670 = vmatprep.subr.mxu0 0.0
    %2671 = vmatpush1.msra.mxu0 0.0
    %2672 = vmatprep.mubr.f32.mxu0 0.0
    %2673 = vmatmul.mubr.f32.gmra.mrb[0].mxu0 %v2607
    %v2674 = vpop.f32.mrb[0].mxu0
    %v2675 = vadd.f32 0.0, %v2674
    %v2676 = vpop.f32.mrb[0].mxu0
    %v2677 = vadd.f32 0.0, %v2676
    %2678 = vdwg.mxu0
    %2679 = vmatprep.subr.mxu0 %v279
    %2680 = vmatpush1.msra.mxu0 %v278
    %2681 = vmatprep.subr.mxu0 %v285
    %2682 = vmatpush1.msra.mxu0 %v284
    %2683 = vmatprep.subr.mxu0 %v291
    %2684 = vmatpush1.msra.mxu0 %v290
    %2685 = vmatprep.subr.mxu0 %v297
    %2686 = vmatpush1.msra.mxu0 %v296
    %2687 = vmatprep.subr.mxu0 %v303
    %2688 = vmatpush1.msra.mxu0 %v302
    %2689 = vmatprep.subr.mxu0 %v309
    %2690 = vmatpush1.msra.mxu0 %v308
    %2691 = vmatprep.subr.mxu0 %v315
    %2692 = vmatpush1.msra.mxu0 %v314
    %2693 = vmatprep.subr.mxu0 %v321
    %2694 = vmatpush1.msra.mxu0 %v320
    %2695 = vmatprep.subr.mxu0 %v327
    %2696 = vmatpush1.msra.mxu0 %v326
    %2697 = vmatprep.subr.mxu0 %v333
    %2698 = vmatpush1.msra.mxu0 %v332
    %2699 = vmatprep.subr.mxu0 %v339
    %2700 = vmatpush1.msra.mxu0 %v338
    %2701 = vmatprep.subr.mxu0 %v345
    %2702 = vmatpush1.msra.mxu0 %v344
    %2703 = vmatprep.subr.mxu0 %v351
    %2704 = vmatpush1.msra.mxu0 %v350
    %2705 = vmatprep.subr.mxu0 %v357
    %2706 = vmatpush1.msra.mxu0 %v356
    %2707 = vmatprep.subr.mxu0 %v363
    %2708 = vmatpush1.msra.mxu0 %v362
    %2709 = vmatprep.subr.mxu0 %v369
    %2710 = vmatpush1.msra.mxu0 %v368
    %2711 = vmatprep.subr.mxu0 0.0
    %2712 = vmatpush1.msra.mxu0 0.0
    %2713 = vmatprep.subr.mxu0 0.0
    %2714 = vmatpush1.msra.mxu0 0.0
    %2715 = vmatprep.subr.mxu0 0.0
    %2716 = vmatpush1.msra.mxu0 0.0
    %2717 = vmatprep.subr.mxu0 0.0
    %2718 = vmatpush1.msra.mxu0 0.0
    %2719 = vmatprep.subr.mxu0 0.0
    %2720 = vmatpush1.msra.mxu0 0.0
    %2721 = vmatprep.subr.mxu0 0.0
    %2722 = vmatpush1.msra.mxu0 0.0
    %2723 = vmatprep.subr.mxu0 0.0
    %2724 = vmatpush1.msra.mxu0 0.0
    %2725 = vmatprep.subr.mxu0 0.0
    %2726 = vmatpush1.msra.mxu0 0.0
    %2727 = vmatprep.subr.mxu0 0.0
    %2728 = vmatpush1.msra.mxu0 0.0
    %2729 = vmatprep.subr.mxu0 0.0
    %2730 = vmatpush1.msra.mxu0 0.0
    %2731 = vmatprep.subr.mxu0 0.0
    %2732 = vmatpush1.msra.mxu0 0.0
    %2733 = vmatprep.subr.mxu0 0.0
    %2734 = vmatpush1.msra.mxu0 0.0
    %2735 = vmatprep.subr.mxu0 0.0
    %2736 = vmatpush1.msra.mxu0 0.0
    %2737 = vmatprep.subr.mxu0 0.0
    %2738 = vmatpush1.msra.mxu0 0.0
    %2739 = vmatprep.subr.mxu0 0.0
    %2740 = vmatpush1.msra.mxu0 0.0
    %2741 = vmatprep.subr.mxu0 0.0
    %2742 = vmatpush1.msra.mxu0 0.0
    %2743 = vmatprep.mubr.f32.mxu0 0.0
    %2744 = vmatmul.mubr.f32.gmra.mrb[0].mxu0 %v2607
    %v2745 = vpop.f32.mrb[0].mxu0
    %v2746 = vadd.f32 0.0, %v2745
    %v2747 = vpop.f32.mrb[0].mxu0
    %v2748 = vadd.f32 0.0, %v2747
    %2749 = vdwg.mxu0
    %2750 = vmatprep.subr.mxu0 %v281
    %2751 = vmatpush1.msra.mxu0 %v280
    %2752 = vmatprep.subr.mxu0 %v287
    %2753 = vmatpush1.msra.mxu0 %v286
    %2754 = vmatprep.subr.mxu0 %v293
    %2755 = vmatpush1.msra.mxu0 %v292
    %2756 = vmatprep.subr.mxu0 %v299
    %2757 = vmatpush1.msra.mxu0 %v298
    %2758 = vmatprep.subr.mxu0 %v305
    %2759 = vmatpush1.msra.mxu0 %v304
    %2760 = vmatprep.subr.mxu0 %v311
    %2761 = vmatpush1.msra.mxu0 %v310
    %2762 = vmatprep.subr.mxu0 %v317
    %2763 = vmatpush1.msra.mxu0 %v316
    %2764 = vmatprep.subr.mxu0 %v323
    %2765 = vmatpush1.msra.mxu0 %v322
    %2766 = vmatprep.subr.mxu0 %v329
    %2767 = vmatpush1.msra.mxu0 %v328
    %2768 = vmatprep.subr.mxu0 %v335
    %2769 = vmatpush1.msra.mxu0 %v334
    %2770 = vmatprep.subr.mxu0 %v341
    %2771 = vmatpush1.msra.mxu0 %v340
    %2772 = vmatprep.subr.mxu0 %v347
    %2773 = vmatpush1.msra.mxu0 %v346
    %2774 = vmatprep.subr.mxu0 %v353
    %2775 = vmatpush1.msra.mxu0 %v352
    %2776 = vmatprep.subr.mxu0 %v359
    %2777 = vmatpush1.msra.mxu0 %v358
    %2778 = vmatprep.subr.mxu0 %v365
    %2779 = vmatpush1.msra.mxu0 %v364
    %2780 = vmatprep.subr.mxu0 %v371
    %2781 = vmatpush1.msra.mxu0 %v370
    %2782 = vmatprep.subr.mxu0 0.0
    %2783 = vmatpush1.msra.mxu0 0.0
    %2784 = vmatprep.subr.mxu0 0.0
    %2785 = vmatpush1.msra.mxu0 0.0
    %2786 = vmatprep.subr.mxu0 0.0
    %2787 = vmatpush1.msra.mxu0 0.0
    %2788 = vmatprep.subr.mxu0 0.0
    %2789 = vmatpush1.msra.mxu0 0.0
    %2790 = vmatprep.subr.mxu0 0.0
    %2791 = vmatpush1.msra.mxu0 0.0
    %2792 = vmatprep.subr.mxu0 0.0
    %2793 = vmatpush1.msra.mxu0 0.0
    %2794 = vmatprep.subr.mxu0 0.0
    %2795 = vmatpush1.msra.mxu0 0.0
    %2796 = vmatprep.subr.mxu0 0.0
    %2797 = vmatpush1.msra.mxu0 0.0
    %2798 = vmatprep.subr.mxu0 0.0
    %2799 = vmatpush1.msra.mxu0 0.0
    %2800 = vmatprep.subr.mxu0 0.0
    %2801 = vmatpush1.msra.mxu0 0.0
    %2802 = vmatprep.subr.mxu0 0.0
    %2803 = vmatpush1.msra.mxu0 0.0
    %2804 = vmatprep.subr.mxu0 0.0
    %2805 = vmatpush1.msra.mxu0 0.0
    %2806 = vmatprep.subr.mxu0 0.0
    %2807 = vmatpush1.msra.mxu0 0.0
    %2808 = vmatprep.subr.mxu0 0.0
    %2809 = vmatpush1.msra.mxu0 0.0
    %2810 = vmatprep.subr.mxu0 0.0
    %2811 = vmatpush1.msra.mxu0 0.0
    %2812 = vmatprep.subr.mxu0 0.0
    %2813 = vmatpush1.msra.mxu0 0.0
    %2814 = vmatprep.mubr.f32.mxu0 0.0
    %2815 = vmatmul.mubr.f32.gmra.mrb[0].mxu0 %v2607
    %v2816 = vpop.f32.mrb[0].mxu0
    %v2817 = vadd.f32 0.0, %v2816
    %v2818 = vpop.f32.mrb[0].mxu0
    %v2819 = vadd.f32 0.0, %v2818
    %2820 = vdwg.mxu0
    %v2821 = vadd.f32 %v2748, %v79
    %v2822 = vadd.f32 %v2817, %v83
    %v2823 = vadd.f32 %v2819, %v87
    %2824 = vmatprep.subr.mxu0 %v589
    %2825 = vmatpush1.msra.mxu0 %v588
    %2826 = vmatprep.subr.mxu0 %v592
    %2827 = vmatpush1.msra.mxu0 %v591
    %2828 = vmatprep.subr.mxu0 %v595
    %2829 = vmatpush1.msra.mxu0 %v594
    %2830 = vmatprep.subr.mxu0 %v598
    %2831 = vmatpush1.msra.mxu0 %v597
    %2832 = vmatprep.subr.mxu0 %v601
    %2833 = vmatpush1.msra.mxu0 %v600
    %2834 = vmatprep.subr.mxu0 %v604
    %2835 = vmatpush1.msra.mxu0 %v603
    %2836 = vmatprep.subr.mxu0 %v607
    %2837 = vmatpush1.msra.mxu0 %v606
    %2838 = vmatprep.subr.mxu0 %v610
    %2839 = vmatpush1.msra.mxu0 %v609
    %2840 = vmatprep.subr.mxu0 %v613
    %2841 = vmatpush1.msra.mxu0 %v612
    %2842 = vmatprep.subr.mxu0 %v616
    %2843 = vmatpush1.msra.mxu0 %v615
    %2844 = vmatprep.subr.mxu0 %v619
    %2845 = vmatpush1.msra.mxu0 %v618
    %2846 = vmatprep.subr.mxu0 %v622
    %2847 = vmatpush1.msra.mxu0 %v621
    %2848 = vmatprep.subr.mxu0 %v625
    %2849 = vmatpush1.msra.mxu0 %v624
    %2850 = vmatprep.subr.mxu0 %v628
    %2851 = vmatpush1.msra.mxu0 %v627
    %2852 = vmatprep.subr.mxu0 %v631
    %2853 = vmatpush1.msra.mxu0 %v630
    %2854 = vmatprep.subr.mxu0 %v634
    %2855 = vmatpush1.msra.mxu0 %v633
    %2856 = vmatprep.subr.mxu0 0.0
    %2857 = vmatpush1.msra.mxu0 0.0
    %2858 = vmatprep.subr.mxu0 0.0
    %2859 = vmatpush1.msra.mxu0 0.0
    %2860 = vmatprep.subr.mxu0 0.0
    %2861 = vmatpush1.msra.mxu0 0.0
    %2862 = vmatprep.subr.mxu0 0.0
    %2863 = vmatpush1.msra.mxu0 0.0
    %2864 = vmatprep.subr.mxu0 0.0
    %2865 = vmatpush1.msra.mxu0 0.0
    %2866 = vmatprep.subr.mxu0 0.0
    %2867 = vmatpush1.msra.mxu0 0.0
    %2868 = vmatprep.subr.mxu0 0.0
    %2869 = vmatpush1.msra.mxu0 0.0
    %2870 = vmatprep.subr.mxu0 0.0
    %2871 = vmatpush1.msra.mxu0 0.0
    %2872 = vmatprep.subr.mxu0 0.0
    %2873 = vmatpush1.msra.mxu0 0.0
    %2874 = vmatprep.subr.mxu0 0.0
    %2875 = vmatpush1.msra.mxu0 0.0
    %2876 = vmatprep.subr.mxu0 0.0
    %2877 = vmatpush1.msra.mxu0 0.0
    %2878 = vmatprep.subr.mxu0 0.0
    %2879 = vmatpush1.msra.mxu0 0.0
    %2880 = vmatprep.subr.mxu0 0.0
    %2881 = vmatpush1.msra.mxu0 0.0
    %2882 = vmatprep.subr.mxu0 0.0
    %2883 = vmatpush1.msra.mxu0 0.0
    %2884 = vmatprep.subr.mxu0 0.0
    %2885 = vmatpush1.msra.mxu0 0.0
    %2886 = vmatprep.subr.mxu0 0.0
    %2887 = vmatpush1.msra.mxu0 0.0
    %2888 = vmatprep.mubr.f32.mxu0 0.0
    %2889 = vmatmul.mubr.f32.gmra.mrb[0].mxu0 %v2439
    %v2890 = vpop.f32.mrb[0].mxu0
    %v2891 = vadd.f32 0.0, %v2890
    %v2892 = vpop.f32.mrb[0].mxu0
    %v2893 = vadd.f32 0.0, %v2892
    %2894 = vdwg.mxu0
    %2895 = vmatprep.subr.mxu0 0.0
    %2896 = vmatpush1.msra.mxu0 %v590
    %2897 = vmatprep.subr.mxu0 0.0
    %2898 = vmatpush1.msra.mxu0 %v593
    %2899 = vmatprep.subr.mxu0 0.0
    %2900 = vmatpush1.msra.mxu0 %v596
    %2901 = vmatprep.subr.mxu0 0.0
    %2902 = vmatpush1.msra.mxu0 %v599
    %2903 = vmatprep.subr.mxu0 0.0
    %2904 = vmatpush1.msra.mxu0 %v602
    %2905 = vmatprep.subr.mxu0 0.0
    %2906 = vmatpush1.msra.mxu0 %v605
    %2907 = vmatprep.subr.mxu0 0.0
    %2908 = vmatpush1.msra.mxu0 %v608
    %2909 = vmatprep.subr.mxu0 0.0
    %2910 = vmatpush1.msra.mxu0 %v611
    %2911 = vmatprep.subr.mxu0 0.0
    %2912 = vmatpush1.msra.mxu0 %v614
    %2913 = vmatprep.subr.mxu0 0.0
    %2914 = vmatpush1.msra.mxu0 %v617
    %2915 = vmatprep.subr.mxu0 0.0
    %2916 = vmatpush1.msra.mxu0 %v620
    %2917 = vmatprep.subr.mxu0 0.0
    %2918 = vmatpush1.msra.mxu0 %v623
    %2919 = vmatprep.subr.mxu0 0.0
    %2920 = vmatpush1.msra.mxu0 %v626
    %2921 = vmatprep.subr.mxu0 0.0
    %2922 = vmatpush1.msra.mxu0 %v629
    %2923 = vmatprep.subr.mxu0 0.0
    %2924 = vmatpush1.msra.mxu0 %v632
    %2925 = vmatprep.subr.mxu0 0.0
    %2926 = vmatpush1.msra.mxu0 %v635
    %2927 = vmatprep.subr.mxu0 0.0
    %2928 = vmatpush1.msra.mxu0 0.0
    %2929 = vmatprep.subr.mxu0 0.0
    %2930 = vmatpush1.msra.mxu0 0.0
    %2931 = vmatprep.subr.mxu0 0.0
    %2932 = vmatpush1.msra.mxu0 0.0
    %2933 = vmatprep.subr.mxu0 0.0
    %2934 = vmatpush1.msra.mxu0 0.0
    %2935 = vmatprep.subr.mxu0 0.0
    %2936 = vmatpush1.msra.mxu0 0.0
    %2937 = vmatprep.subr.mxu0 0.0
    %2938 = vmatpush1.msra.mxu0 0.0
    %2939 = vmatprep.subr.mxu0 0.0
    %2940 = vmatpush1.msra.mxu0 0.0
    %2941 = vmatprep.subr.mxu0 0.0
    %2942 = vmatpush1.msra.mxu0 0.0
    %2943 = vmatprep.subr.mxu0 0.0
    %2944 = vmatpush1.msra.mxu0 0.0
    %2945 = vmatprep.subr.mxu0 0.0
    %2946 = vmatpush1.msra.mxu0 0.0
    %2947 = vmatprep.subr.mxu0 0.0
    %2948 = vmatpush1.msra.mxu0 0.0
    %2949 = vmatprep.subr.mxu0 0.0
    %2950 = vmatpush1.msra.mxu0 0.0
    %2951 = vmatprep.subr.mxu0 0.0
    %2952 = vmatpush1.msra.mxu0 0.0
    %2953 = vmatprep.subr.mxu0 0.0
    %2954 = vmatpush1.msra.mxu0 0.0
    %2955 = vmatprep.subr.mxu0 0.0
    %2956 = vmatpush1.msra.mxu0 0.0
    %2957 = vmatprep.subr.mxu0 0.0
    %2958 = vmatpush1.msra.mxu0 0.0
    %2959 = vmatprep.mubr.f32.mxu0 0.0
    %2960 = vmatmul.mubr.f32.gmra.mrb[0].mxu0 %v2439
    %v2961 = vpop.f32.mrb[0].mxu0
    %v2962 = vadd.f32 0.0, %v2961
    %v2963 = vpop.f32.mrb[0].mxu0
    %2964 = vdwg.mxu0
    %v2965 = vadd.f32 %v2821, %v2891
    %v2966 = vxor.u32 %v2965, 2147483648
    %v2967 = vmul.f32 %v2966, 1.442695
    %v2968 = vpow.pop %v2967
    %v2969 = vadd.f32 %v2968, 1.0
    %v2970 = vrcp.pop %v2969
    %v2971 = vmul.f32 1.0, %v2970
    %v2972 = vadd.f32 %v2822, %v2893
    %v2973 = vxor.u32 %v2972, 2147483648
    %v2974 = vmul.f32 %v2973, 1.442695
    %v2975 = vpow.pop %v2974
    %v2976 = vadd.f32 %v2975, 1.0
    %v2977 = vrcp.pop %v2976
    %v2978 = vmul.f32 1.0, %v2977
    %v2979 = vadd.f32 %v2962, %v103
    %v2980 = vmul.f32 %v2971, %v2979
    %v2981 = vadd.f32 %v2823, %v2980
    %v2982 = vtanh.pop %v2981
    %v2983 = vsub.f32 1.0, %v2978
    %v2984 = vmul.f32 %v2983, %v2982
    %v2985 = vmul.f32 %v2978, %v2439
    %v2986 = vadd.f32 %v2984, %v2985
    %s2987 = scalar_lea.vmem %s0, 40
    %v2988 = vld [vmem:[%s2987] sm:$0xff]
    %v2990 = vsel %vm109, %v2988, 0
    %2992 = vmatprep.subr.mxu0 %v107
    %2993 = vmatpush1.msra.mxu0 %v106
    %2994 = vmatprep.subr.mxu0 0.0
    %2995 = vmatpush1.msra.mxu0 0.0
    %2996 = vmatprep.subr.mxu0 0.0
    %2997 = vmatpush1.msra.mxu0 0.0
    %2998 = vmatprep.subr.mxu0 0.0
    %2999 = vmatpush1.msra.mxu0 0.0
    %3000 = vmatprep.subr.mxu0 0.0
    %3001 = vmatpush1.msra.mxu0 0.0
    %3002 = vmatprep.subr.mxu0 0.0
    %3003 = vmatpush1.msra.mxu0 0.0
    %3004 = vmatprep.subr.mxu0 0.0
    %3005 = vmatpush1.msra.mxu0 0.0
    %3006 = vmatprep.subr.mxu0 0.0
    %3007 = vmatpush1.msra.mxu0 0.0
    %3008 = vmatprep.subr.mxu0 0.0
    %3009 = vmatpush1.msra.mxu0 0.0
    %3010 = vmatprep.subr.mxu0 0.0
    %3011 = vmatpush1.msra.mxu0 0.0
    %3012 = vmatprep.subr.mxu0 0.0
    %3013 = vmatpush1.msra.mxu0 0.0
    %3014 = vmatprep.subr.mxu0 0.0
    %3015 = vmatpush1.msra.mxu0 0.0
    %3016 = vmatprep.subr.mxu0 0.0
    %3017 = vmatpush1.msra.mxu0 0.0
    %3018 = vmatprep.subr.mxu0 0.0
    %3019 = vmatpush1.msra.mxu0 0.0
    %3020 = vmatprep.subr.mxu0 0.0
    %3021 = vmatpush1.msra.mxu0 0.0
    %3022 = vmatprep.subr.mxu0 0.0
    %3023 = vmatpush1.msra.mxu0 0.0
    %3024 = vmatprep.subr.mxu0 0.0
    %3025 = vmatpush1.msra.mxu0 0.0
    %3026 = vmatprep.subr.mxu0 0.0
    %3027 = vmatpush1.msra.mxu0 0.0
    %3028 = vmatprep.subr.mxu0 0.0
    %3029 = vmatpush1.msra.mxu0 0.0
    %3030 = vmatprep.subr.mxu0 0.0
    %3031 = vmatpush1.msra.mxu0 0.0
    %3032 = vmatprep.subr.mxu0 0.0
    %3033 = vmatpush1.msra.mxu0 0.0
    %3034 = vmatprep.subr.mxu0 0.0
    %3035 = vmatpush1.msra.mxu0 0.0
    %3036 = vmatprep.subr.mxu0 0.0
    %3037 = vmatpush1.msra.mxu0 0.0
    %3038 = vmatprep.subr.mxu0 0.0
    %3039 = vmatpush1.msra.mxu0 0.0
    %3040 = vmatprep.subr.mxu0 0.0
    %3041 = vmatpush1.msra.mxu0 0.0
    %3042 = vmatprep.subr.mxu0 0.0
    %3043 = vmatpush1.msra.mxu0 0.0
    %3044 = vmatprep.subr.mxu0 0.0
    %3045 = vmatpush1.msra.mxu0 0.0
    %3046 = vmatprep.subr.mxu0 0.0
    %3047 = vmatpush1.msra.mxu0 0.0
    %3048 = vmatprep.subr.mxu0 0.0
    %3049 = vmatpush1.msra.mxu0 0.0
    %3050 = vmatprep.subr.mxu0 0.0
    %3051 = vmatpush1.msra.mxu0 0.0
    %3052 = vmatprep.subr.mxu0 0.0
    %3053 = vmatpush1.msra.mxu0 0.0
    %3054 = vmatprep.subr.mxu0 0.0
    %3055 = vmatpush1.msra.mxu0 0.0
    %3056 = vmatprep.mubr.f32.mxu0 0.0
    %3057 = vmatmul.mubr.f32.gmra.mrb[0].mxu0 %v2990
    %v3058 = vpop.f32.mrb[0].mxu0
    %v3059 = vadd.f32 %v62, %v3058
    %v3060 = vpop.f32.mrb[0].mxu0
    %v3061 = vadd.f32 %v66, %v3060
    %3062 = vdwg.mxu0
    %3063 = vmatprep.subr.mxu0 0.0
    %3064 = vmatpush1.msra.mxu0 %v108
    %3065 = vmatprep.subr.mxu0 0.0
    %3066 = vmatpush1.msra.mxu0 0.0
    %3067 = vmatprep.subr.mxu0 0.0
    %3068 = vmatpush1.msra.mxu0 0.0
    %3069 = vmatprep.subr.mxu0 0.0
    %3070 = vmatpush1.msra.mxu0 0.0
    %3071 = vmatprep.subr.mxu0 0.0
    %3072 = vmatpush1.msra.mxu0 0.0
    %3073 = vmatprep.subr.mxu0 0.0
    %3074 = vmatpush1.msra.mxu0 0.0
    %3075 = vmatprep.subr.mxu0 0.0
    %3076 = vmatpush1.msra.mxu0 0.0
    %3077 = vmatprep.subr.mxu0 0.0
    %3078 = vmatpush1.msra.mxu0 0.0
    %3079 = vmatprep.subr.mxu0 0.0
    %3080 = vmatpush1.msra.mxu0 0.0
    %3081 = vmatprep.subr.mxu0 0.0
    %3082 = vmatpush1.msra.mxu0 0.0
    %3083 = vmatprep.subr.mxu0 0.0
    %3084 = vmatpush1.msra.mxu0 0.0
    %3085 = vmatprep.subr.mxu0 0.0
    %3086 = vmatpush1.msra.mxu0 0.0
    %3087 = vmatprep.subr.mxu0 0.0
    %3088 = vmatpush1.msra.mxu0 0.0
    %3089 = vmatprep.subr.mxu0 0.0
    %3090 = vmatpush1.msra.mxu0 0.0
    %3091 = vmatprep.subr.mxu0 0.0
    %3092 = vmatpush1.msra.mxu0 0.0
    %3093 = vmatprep.subr.mxu0 0.0
    %3094 = vmatpush1.msra.mxu0 0.0
    %3095 = vmatprep.subr.mxu0 0.0
    %3096 = vmatpush1.msra.mxu0 0.0
    %3097 = vmatprep.subr.mxu0 0.0
    %3098 = vmatpush1.msra.mxu0 0.0
    %3099 = vmatprep.subr.mxu0 0.0
    %3100 = vmatpush1.msra.mxu0 0.0
    %3101 = vmatprep.subr.mxu0 0.0
    %3102 = vmatpush1.msra.mxu0 0.0
    %3103 = vmatprep.subr.mxu0 0.0
    %3104 = vmatpush1.msra.mxu0 0.0
    %3105 = vmatprep.subr.mxu0 0.0
    %3106 = vmatpush1.msra.mxu0 0.0
    %3107 = vmatprep.subr.mxu0 0.0
    %3108 = vmatpush1.msra.mxu0 0.0
    %3109 = vmatprep.subr.mxu0 0.0
    %3110 = vmatpush1.msra.mxu0 0.0
    %3111 = vmatprep.subr.mxu0 0.0
    %3112 = vmatpush1.msra.mxu0 0.0
    %3113 = vmatprep.subr.mxu0 0.0
    %3114 = vmatpush1.msra.mxu0 0.0
    %3115 = vmatprep.subr.mxu0 0.0
    %3116 = vmatpush1.msra.mxu0 0.0
    %3117 = vmatprep.subr.mxu0 0.0
    %3118 = vmatpush1.msra.mxu0 0.0
    %3119 = vmatprep.subr.mxu0 0.0
    %3120 = vmatpush1.msra.mxu0 0.0
    %3121 = vmatprep.subr.mxu0 0.0
    %3122 = vmatpush1.msra.mxu0 0.0
    %3123 = vmatprep.subr.mxu0 0.0
    %3124 = vmatpush1.msra.mxu0 0.0
    %3125 = vmatprep.subr.mxu0 0.0
    %3126 = vmatpush1.msra.mxu0 0.0
    %3127 = vmatprep.mubr.f32.mxu0 0.0
    %3128 = vmatmul.mubr.f32.gmra.mrb[0].mxu0 %v2990
    %v3129 = vpop.f32.mrb[0].mxu0
    %v3130 = vadd.f32 %v70, %v3129
    %v3131 = vpop.f32.mrb[0].mxu0
    %3132 = vdwg.mxu0
    %v3133 = vadd.f32 %v3059, %v2675
    %v3134 = vxor.u32 %v3133, 2147483648
    %v3135 = vmul.f32 %v3134, 1.442695
    %v3136 = vpow.pop %v3135
    %v3137 = vadd.f32 %v3136, 1.0
    %v3138 = vrcp.pop %v3137
    %v3139 = vmul.f32 1.0, %v3138
    %v3140 = vadd.f32 %v3061, %v2677
    %v3141 = vxor.u32 %v3140, 2147483648
    %v3142 = vmul.f32 %v3141, 1.442695
    %v3143 = vpow.pop %v3142
    %v3144 = vadd.f32 %v3143, 1.0
    %v3145 = vrcp.pop %v3144
    %v3146 = vmul.f32 1.0, %v3145
    %v3147 = vadd.f32 %v2746, %v96
    %v3148 = vmul.f32 %v3139, %v3147
    %v3149 = vadd.f32 %v3130, %v3148
    %v3150 = vtanh.pop %v3149
    %v3151 = vsub.f32 1.0, %v3146
    %v3152 = vmul.f32 %v3151, %v3150
    %v3153 = vmul.f32 %v3146, %v2607
    %v3154 = vadd.f32 %v3152, %v3153
    %3155 = vmatprep.subr.mxu0 %v277
    %3156 = vmatpush1.msra.mxu0 %v276
    %3157 = vmatprep.subr.mxu0 %v283
    %3158 = vmatpush1.msra.mxu0 %v282
    %3159 = vmatprep.subr.mxu0 %v289
    %3160 = vmatpush1.msra.mxu0 %v288
    %3161 = vmatprep.subr.mxu0 %v295
    %3162 = vmatpush1.msra.mxu0 %v294
    %3163 = vmatprep.subr.mxu0 %v301
    %3164 = vmatpush1.msra.mxu0 %v300
    %3165 = vmatprep.subr.mxu0 %v307
    %3166 = vmatpush1.msra.mxu0 %v306
    %3167 = vmatprep.subr.mxu0 %v313
    %3168 = vmatpush1.msra.mxu0 %v312
    %3169 = vmatprep.subr.mxu0 %v319
    %3170 = vmatpush1.msra.mxu0 %v318
    %3171 = vmatprep.subr.mxu0 %v325
    %3172 = vmatpush1.msra.mxu0 %v324
    %3173 = vmatprep.subr.mxu0 %v331
    %3174 = vmatpush1.msra.mxu0 %v330
    %3175 = vmatprep.subr.mxu0 %v337
    %3176 = vmatpush1.msra.mxu0 %v336
    %3177 = vmatprep.subr.mxu0 %v343
    %3178 = vmatpush1.msra.mxu0 %v342
    %3179 = vmatprep.subr.mxu0 %v349
    %3180 = vmatpush1.msra.mxu0 %v348
    %3181 = vmatprep.subr.mxu0 %v355
    %3182 = vmatpush1.msra.mxu0 %v354
    %3183 = vmatprep.subr.mxu0 %v361
    %3184 = vmatpush1.msra.mxu0 %v360
    %3185 = vmatprep.subr.mxu0 %v367
    %3186 = vmatpush1.msra.mxu0 %v366
    %3187 = vmatprep.subr.mxu0 0.0
    %3188 = vmatpush1.msra.mxu0 0.0
    %3189 = vmatprep.subr.mxu0 0.0
    %3190 = vmatpush1.msra.mxu0 0.0
    %3191 = vmatprep.subr.mxu0 0.0
    %3192 = vmatpush1.msra.mxu0 0.0
    %3193 = vmatprep.subr.mxu0 0.0
    %3194 = vmatpush1.msra.mxu0 0.0
    %3195 = vmatprep.subr.mxu0 0.0
    %3196 = vmatpush1.msra.mxu0 0.0
    %3197 = vmatprep.subr.mxu0 0.0
    %3198 = vmatpush1.msra.mxu0 0.0
    %3199 = vmatprep.subr.mxu0 0.0
    %3200 = vmatpush1.msra.mxu0 0.0
    %3201 = vmatprep.subr.mxu0 0.0
    %3202 = vmatpush1.msra.mxu0 0.0
    %3203 = vmatprep.subr.mxu0 0.0
    %3204 = vmatpush1.msra.mxu0 0.0
    %3205 = vmatprep.subr.mxu0 0.0
    %3206 = vmatpush1.msra.mxu0 0.0
    %3207 = vmatprep.subr.mxu0 0.0
    %3208 = vmatpush1.msra.mxu0 0.0
    %3209 = vmatprep.subr.mxu0 0.0
    %3210 = vmatpush1.msra.mxu0 0.0
    %3211 = vmatprep.subr.mxu0 0.0
    %3212 = vmatpush1.msra.mxu0 0.0
    %3213 = vmatprep.subr.mxu0 0.0
    %3214 = vmatpush1.msra.mxu0 0.0
    %3215 = vmatprep.subr.mxu0 0.0
    %3216 = vmatpush1.msra.mxu0 0.0
    %3217 = vmatprep.subr.mxu0 0.0
    %3218 = vmatpush1.msra.mxu0 0.0
    %3219 = vmatprep.mubr.f32.mxu0 0.0
    %3220 = vmatmul.mubr.f32.gmra.mrb[0].mxu0 %v3154
    %v3221 = vpop.f32.mrb[0].mxu0
    %v3222 = vadd.f32 0.0, %v3221
    %v3223 = vpop.f32.mrb[0].mxu0
    %v3224 = vadd.f32 0.0, %v3223
    %3225 = vdwg.mxu0
    %3226 = vmatprep.subr.mxu0 %v279
    %3227 = vmatpush1.msra.mxu0 %v278
    %3228 = vmatprep.subr.mxu0 %v285
    %3229 = vmatpush1.msra.mxu0 %v284
    %3230 = vmatprep.subr.mxu0 %v291
    %3231 = vmatpush1.msra.mxu0 %v290
    %3232 = vmatprep.subr.mxu0 %v297
    %3233 = vmatpush1.msra.mxu0 %v296
    %3234 = vmatprep.subr.mxu0 %v303
    %3235 = vmatpush1.msra.mxu0 %v302
    %3236 = vmatprep.subr.mxu0 %v309
    %3237 = vmatpush1.msra.mxu0 %v308
    %3238 = vmatprep.subr.mxu0 %v315
    %3239 = vmatpush1.msra.mxu0 %v314
    %3240 = vmatprep.subr.mxu0 %v321
    %3241 = vmatpush1.msra.mxu0 %v320
    %3242 = vmatprep.subr.mxu0 %v327
    %3243 = vmatpush1.msra.mxu0 %v326
    %3244 = vmatprep.subr.mxu0 %v333
    %3245 = vmatpush1.msra.mxu0 %v332
    %3246 = vmatprep.subr.mxu0 %v339
    %3247 = vmatpush1.msra.mxu0 %v338
    %3248 = vmatprep.subr.mxu0 %v345
    %3249 = vmatpush1.msra.mxu0 %v344
    %3250 = vmatprep.subr.mxu0 %v351
    %3251 = vmatpush1.msra.mxu0 %v350
    %3252 = vmatprep.subr.mxu0 %v357
    %3253 = vmatpush1.msra.mxu0 %v356
    %3254 = vmatprep.subr.mxu0 %v363
    %3255 = vmatpush1.msra.mxu0 %v362
    %3256 = vmatprep.subr.mxu0 %v369
    %3257 = vmatpush1.msra.mxu0 %v368
    %3258 = vmatprep.subr.mxu0 0.0
    %3259 = vmatpush1.msra.mxu0 0.0
    %3260 = vmatprep.subr.mxu0 0.0
    %3261 = vmatpush1.msra.mxu0 0.0
    %3262 = vmatprep.subr.mxu0 0.0
    %3263 = vmatpush1.msra.mxu0 0.0
    %3264 = vmatprep.subr.mxu0 0.0
    %3265 = vmatpush1.msra.mxu0 0.0
    %3266 = vmatprep.subr.mxu0 0.0
    %3267 = vmatpush1.msra.mxu0 0.0
    %3268 = vmatprep.subr.mxu0 0.0
    %3269 = vmatpush1.msra.mxu0 0.0
    %3270 = vmatprep.subr.mxu0 0.0
    %3271 = vmatpush1.msra.mxu0 0.0
    %3272 = vmatprep.subr.mxu0 0.0
    %3273 = vmatpush1.msra.mxu0 0.0
    %3274 = vmatprep.subr.mxu0 0.0
    %3275 = vmatpush1.msra.mxu0 0.0
    %3276 = vmatprep.subr.mxu0 0.0
    %3277 = vmatpush1.msra.mxu0 0.0
    %3278 = vmatprep.subr.mxu0 0.0
    %3279 = vmatpush1.msra.mxu0 0.0
    %3280 = vmatprep.subr.mxu0 0.0
    %3281 = vmatpush1.msra.mxu0 0.0
    %3282 = vmatprep.subr.mxu0 0.0
    %3283 = vmatpush1.msra.mxu0 0.0
    %3284 = vmatprep.subr.mxu0 0.0
    %3285 = vmatpush1.msra.mxu0 0.0
    %3286 = vmatprep.subr.mxu0 0.0
    %3287 = vmatpush1.msra.mxu0 0.0
    %3288 = vmatprep.subr.mxu0 0.0
    %3289 = vmatpush1.msra.mxu0 0.0
    %3290 = vmatprep.mubr.f32.mxu0 0.0
    %3291 = vmatmul.mubr.f32.gmra.mrb[0].mxu0 %v3154
    %v3292 = vpop.f32.mrb[0].mxu0
    %v3293 = vadd.f32 0.0, %v3292
    %v3294 = vpop.f32.mrb[0].mxu0
    %v3295 = vadd.f32 0.0, %v3294
    %3296 = vdwg.mxu0
    %3297 = vmatprep.subr.mxu0 %v281
    %3298 = vmatpush1.msra.mxu0 %v280
    %3299 = vmatprep.subr.mxu0 %v287
    %3300 = vmatpush1.msra.mxu0 %v286
    %3301 = vmatprep.subr.mxu0 %v293
    %3302 = vmatpush1.msra.mxu0 %v292
    %3303 = vmatprep.subr.mxu0 %v299
    %3304 = vmatpush1.msra.mxu0 %v298
    %3305 = vmatprep.subr.mxu0 %v305
    %3306 = vmatpush1.msra.mxu0 %v304
    %3307 = vmatprep.subr.mxu0 %v311
    %3308 = vmatpush1.msra.mxu0 %v310
    %3309 = vmatprep.subr.mxu0 %v317
    %3310 = vmatpush1.msra.mxu0 %v316
    %3311 = vmatprep.subr.mxu0 %v323
    %3312 = vmatpush1.msra.mxu0 %v322
    %3313 = vmatprep.subr.mxu0 %v329
    %3314 = vmatpush1.msra.mxu0 %v328
    %3315 = vmatprep.subr.mxu0 %v335
    %3316 = vmatpush1.msra.mxu0 %v334
    %3317 = vmatprep.subr.mxu0 %v341
    %3318 = vmatpush1.msra.mxu0 %v340
    %3319 = vmatprep.subr.mxu0 %v347
    %3320 = vmatpush1.msra.mxu0 %v346
    %3321 = vmatprep.subr.mxu0 %v353
    %3322 = vmatpush1.msra.mxu0 %v352
    %3323 = vmatprep.subr.mxu0 %v359
    %3324 = vmatpush1.msra.mxu0 %v358
    %3325 = vmatprep.subr.mxu0 %v365
    %3326 = vmatpush1.msra.mxu0 %v364
    %3327 = vmatprep.subr.mxu0 %v371
    %3328 = vmatpush1.msra.mxu0 %v370
    %3329 = vmatprep.subr.mxu0 0.0
    %3330 = vmatpush1.msra.mxu0 0.0
    %3331 = vmatprep.subr.mxu0 0.0
    %3332 = vmatpush1.msra.mxu0 0.0
    %3333 = vmatprep.subr.mxu0 0.0
    %3334 = vmatpush1.msra.mxu0 0.0
    %3335 = vmatprep.subr.mxu0 0.0
    %3336 = vmatpush1.msra.mxu0 0.0
    %3337 = vmatprep.subr.mxu0 0.0
    %3338 = vmatpush1.msra.mxu0 0.0
    %3339 = vmatprep.subr.mxu0 0.0
    %3340 = vmatpush1.msra.mxu0 0.0
    %3341 = vmatprep.subr.mxu0 0.0
    %3342 = vmatpush1.msra.mxu0 0.0
    %3343 = vmatprep.subr.mxu0 0.0
    %3344 = vmatpush1.msra.mxu0 0.0
    %3345 = vmatprep.subr.mxu0 0.0
    %3346 = vmatpush1.msra.mxu0 0.0
    %3347 = vmatprep.subr.mxu0 0.0
    %3348 = vmatpush1.msra.mxu0 0.0
    %3349 = vmatprep.subr.mxu0 0.0
    %3350 = vmatpush1.msra.mxu0 0.0
    %3351 = vmatprep.subr.mxu0 0.0
    %3352 = vmatpush1.msra.mxu0 0.0
    %3353 = vmatprep.subr.mxu0 0.0
    %3354 = vmatpush1.msra.mxu0 0.0
    %3355 = vmatprep.subr.mxu0 0.0
    %3356 = vmatpush1.msra.mxu0 0.0
    %3357 = vmatprep.subr.mxu0 0.0
    %3358 = vmatpush1.msra.mxu0 0.0
    %3359 = vmatprep.subr.mxu0 0.0
    %3360 = vmatpush1.msra.mxu0 0.0
    %3361 = vmatprep.mubr.f32.mxu0 0.0
    %3362 = vmatmul.mubr.f32.gmra.mrb[0].mxu0 %v3154
    %v3363 = vpop.f32.mrb[0].mxu0
    %v3364 = vadd.f32 0.0, %v3363
    %v3365 = vpop.f32.mrb[0].mxu0
    %v3366 = vadd.f32 0.0, %v3365
    %3367 = vdwg.mxu0
    %v3368 = vadd.f32 %v3295, %v79
    %v3369 = vadd.f32 %v3364, %v83
    %v3370 = vadd.f32 %v3366, %v87
    %3371 = vmatprep.subr.mxu0 %v589
    %3372 = vmatpush1.msra.mxu0 %v588
    %3373 = vmatprep.subr.mxu0 %v592
    %3374 = vmatpush1.msra.mxu0 %v591
    %3375 = vmatprep.subr.mxu0 %v595
    %3376 = vmatpush1.msra.mxu0 %v594
    %3377 = vmatprep.subr.mxu0 %v598
    %3378 = vmatpush1.msra.mxu0 %v597
    %3379 = vmatprep.subr.mxu0 %v601
    %3380 = vmatpush1.msra.mxu0 %v600
    %3381 = vmatprep.subr.mxu0 %v604
    %3382 = vmatpush1.msra.mxu0 %v603
    %3383 = vmatprep.subr.mxu0 %v607
    %3384 = vmatpush1.msra.mxu0 %v606
    %3385 = vmatprep.subr.mxu0 %v610
    %3386 = vmatpush1.msra.mxu0 %v609
    %3387 = vmatprep.subr.mxu0 %v613
    %3388 = vmatpush1.msra.mxu0 %v612
    %3389 = vmatprep.subr.mxu0 %v616
    %3390 = vmatpush1.msra.mxu0 %v615
    %3391 = vmatprep.subr.mxu0 %v619
    %3392 = vmatpush1.msra.mxu0 %v618
    %3393 = vmatprep.subr.mxu0 %v622
    %3394 = vmatpush1.msra.mxu0 %v621
    %3395 = vmatprep.subr.mxu0 %v625
    %3396 = vmatpush1.msra.mxu0 %v624
    %3397 = vmatprep.subr.mxu0 %v628
    %3398 = vmatpush1.msra.mxu0 %v627
    %3399 = vmatprep.subr.mxu0 %v631
    %3400 = vmatpush1.msra.mxu0 %v630
    %3401 = vmatprep.subr.mxu0 %v634
    %3402 = vmatpush1.msra.mxu0 %v633
    %3403 = vmatprep.subr.mxu0 0.0
    %3404 = vmatpush1.msra.mxu0 0.0
    %3405 = vmatprep.subr.mxu0 0.0
    %3406 = vmatpush1.msra.mxu0 0.0
    %3407 = vmatprep.subr.mxu0 0.0
    %3408 = vmatpush1.msra.mxu0 0.0
    %3409 = vmatprep.subr.mxu0 0.0
    %3410 = vmatpush1.msra.mxu0 0.0
    %3411 = vmatprep.subr.mxu0 0.0
    %3412 = vmatpush1.msra.mxu0 0.0
    %3413 = vmatprep.subr.mxu0 0.0
    %3414 = vmatpush1.msra.mxu0 0.0
    %3415 = vmatprep.subr.mxu0 0.0
    %3416 = vmatpush1.msra.mxu0 0.0
    %3417 = vmatprep.subr.mxu0 0.0
    %3418 = vmatpush1.msra.mxu0 0.0
    %3419 = vmatprep.subr.mxu0 0.0
    %3420 = vmatpush1.msra.mxu0 0.0
    %3421 = vmatprep.subr.mxu0 0.0
    %3422 = vmatpush1.msra.mxu0 0.0
    %3423 = vmatprep.subr.mxu0 0.0
    %3424 = vmatpush1.msra.mxu0 0.0
    %3425 = vmatprep.subr.mxu0 0.0
    %3426 = vmatpush1.msra.mxu0 0.0
    %3427 = vmatprep.subr.mxu0 0.0
    %3428 = vmatpush1.msra.mxu0 0.0
    %3429 = vmatprep.subr.mxu0 0.0
    %3430 = vmatpush1.msra.mxu0 0.0
    %3431 = vmatprep.subr.mxu0 0.0
    %3432 = vmatpush1.msra.mxu0 0.0
    %3433 = vmatprep.subr.mxu0 0.0
    %3434 = vmatpush1.msra.mxu0 0.0
    %3435 = vmatprep.mubr.f32.mxu0 0.0
    %3436 = vmatmul.mubr.f32.gmra.mrb[0].mxu0 %v2986
    %v3437 = vpop.f32.mrb[0].mxu0
    %v3438 = vadd.f32 0.0, %v3437
    %v3439 = vpop.f32.mrb[0].mxu0
    %v3440 = vadd.f32 0.0, %v3439
    %3441 = vdwg.mxu0
    %3442 = vmatprep.subr.mxu0 0.0
    %3443 = vmatpush1.msra.mxu0 %v590
    %3444 = vmatprep.subr.mxu0 0.0
    %3445 = vmatpush1.msra.mxu0 %v593
    %3446 = vmatprep.subr.mxu0 0.0
    %3447 = vmatpush1.msra.mxu0 %v596
    %3448 = vmatprep.subr.mxu0 0.0
    %3449 = vmatpush1.msra.mxu0 %v599
    %3450 = vmatprep.subr.mxu0 0.0
    %3451 = vmatpush1.msra.mxu0 %v602
    %3452 = vmatprep.subr.mxu0 0.0
    %3453 = vmatpush1.msra.mxu0 %v605
    %3454 = vmatprep.subr.mxu0 0.0
    %3455 = vmatpush1.msra.mxu0 %v608
    %3456 = vmatprep.subr.mxu0 0.0
    %3457 = vmatpush1.msra.mxu0 %v611
    %3458 = vmatprep.subr.mxu0 0.0
    %3459 = vmatpush1.msra.mxu0 %v614
    %3460 = vmatprep.subr.mxu0 0.0
    %3461 = vmatpush1.msra.mxu0 %v617
    %3462 = vmatprep.subr.mxu0 0.0
    %3463 = vmatpush1.msra.mxu0 %v620
    %3464 = vmatprep.subr.mxu0 0.0
    %3465 = vmatpush1.msra.mxu0 %v623
    %3466 = vmatprep.subr.mxu0 0.0
    %3467 = vmatpush1.msra.mxu0 %v626
    %3468 = vmatprep.subr.mxu0 0.0
    %3469 = vmatpush1.msra.mxu0 %v629
    %3470 = vmatprep.subr.mxu0 0.0
    %3471 = vmatpush1.msra.mxu0 %v632
    %3472 = vmatprep.subr.mxu0 0.0
    %3473 = vmatpush1.msra.mxu0 %v635
    %3474 = vmatprep.subr.mxu0 0.0
    %3475 = vmatpush1.msra.mxu0 0.0
    %3476 = vmatprep.subr.mxu0 0.0
    %3477 = vmatpush1.msra.mxu0 0.0
    %3478 = vmatprep.subr.mxu0 0.0
    %3479 = vmatpush1.msra.mxu0 0.0
    %3480 = vmatprep.subr.mxu0 0.0
    %3481 = vmatpush1.msra.mxu0 0.0
    %3482 = vmatprep.subr.mxu0 0.0
    %3483 = vmatpush1.msra.mxu0 0.0
    %3484 = vmatprep.subr.mxu0 0.0
    %3485 = vmatpush1.msra.mxu0 0.0
    %3486 = vmatprep.subr.mxu0 0.0
    %3487 = vmatpush1.msra.mxu0 0.0
    %3488 = vmatprep.subr.mxu0 0.0
    %3489 = vmatpush1.msra.mxu0 0.0
    %3490 = vmatprep.subr.mxu0 0.0
    %3491 = vmatpush1.msra.mxu0 0.0
    %3492 = vmatprep.subr.mxu0 0.0
    %3493 = vmatpush1.msra.mxu0 0.0
    %3494 = vmatprep.subr.mxu0 0.0
    %3495 = vmatpush1.msra.mxu0 0.0
    %3496 = vmatprep.subr.mxu0 0.0
    %3497 = vmatpush1.msra.mxu0 0.0
    %3498 = vmatprep.subr.mxu0 0.0
    %3499 = vmatpush1.msra.mxu0 0.0
    %3500 = vmatprep.subr.mxu0 0.0
    %3501 = vmatpush1.msra.mxu0 0.0
    %3502 = vmatprep.subr.mxu0 0.0
    %3503 = vmatpush1.msra.mxu0 0.0
    %3504 = vmatprep.subr.mxu0 0.0
    %3505 = vmatpush1.msra.mxu0 0.0
    %3506 = vmatprep.mubr.f32.mxu0 0.0
    %3507 = vmatmul.mubr.f32.gmra.mrb[0].mxu0 %v2986
    %v3508 = vpop.f32.mrb[0].mxu0
    %v3509 = vadd.f32 0.0, %v3508
    %v3510 = vpop.f32.mrb[0].mxu0
    %3511 = vdwg.mxu0
    %v3512 = vadd.f32 %v3368, %v3438
    %v3513 = vxor.u32 %v3512, 2147483648
    %v3514 = vmul.f32 %v3513, 1.442695
    %v3515 = vpow.pop %v3514
    %v3516 = vadd.f32 %v3515, 1.0
    %v3517 = vrcp.pop %v3516
    %v3518 = vmul.f32 1.0, %v3517
    %v3519 = vadd.f32 %v3369, %v3440
    %v3520 = vxor.u32 %v3519, 2147483648
    %v3521 = vmul.f32 %v3520, 1.442695
    %v3522 = vpow.pop %v3521
    %v3523 = vadd.f32 %v3522, 1.0
    %v3524 = vrcp.pop %v3523
    %v3525 = vmul.f32 1.0, %v3524
    %v3526 = vadd.f32 %v3509, %v103
    %v3527 = vmul.f32 %v3518, %v3526
    %v3528 = vadd.f32 %v3370, %v3527
    %v3529 = vtanh.pop %v3528
    %v3530 = vsub.f32 1.0, %v3525
    %v3531 = vmul.f32 %v3530, %v3529
    %v3532 = vmul.f32 %v3525, %v2986
    %v3533 = vadd.f32 %v3531, %v3532
    %s3534 = scalar_lea.vmem %s0, 48
    %v3535 = vld [vmem:[%s3534] sm:$0xff]
    %v3537 = vsel %vm109, %v3535, 0
    %3539 = vmatprep.subr.mxu0 %v107
    %3540 = vmatpush1.msra.mxu0 %v106
    %3541 = vmatprep.subr.mxu0 0.0
    %3542 = vmatpush1.msra.mxu0 0.0
    %3543 = vmatprep.subr.mxu0 0.0
    %3544 = vmatpush1.msra.mxu0 0.0
    %3545 = vmatprep.subr.mxu0 0.0
    %3546 = vmatpush1.msra.mxu0 0.0
    %3547 = vmatprep.subr.mxu0 0.0
    %3548 = vmatpush1.msra.mxu0 0.0
    %3549 = vmatprep.subr.mxu0 0.0
    %3550 = vmatpush1.msra.mxu0 0.0
    %3551 = vmatprep.subr.mxu0 0.0
    %3552 = vmatpush1.msra.mxu0 0.0
    %3553 = vmatprep.subr.mxu0 0.0
    %3554 = vmatpush1.msra.mxu0 0.0
    %3555 = vmatprep.subr.mxu0 0.0
    %3556 = vmatpush1.msra.mxu0 0.0
    %3557 = vmatprep.subr.mxu0 0.0
    %3558 = vmatpush1.msra.mxu0 0.0
    %3559 = vmatprep.subr.mxu0 0.0
    %3560 = vmatpush1.msra.mxu0 0.0
    %3561 = vmatprep.subr.mxu0 0.0
    %3562 = vmatpush1.msra.mxu0 0.0
    %3563 = vmatprep.subr.mxu0 0.0
    %3564 = vmatpush1.msra.mxu0 0.0
    %3565 = vmatprep.subr.mxu0 0.0
    %3566 = vmatpush1.msra.mxu0 0.0
    %3567 = vmatprep.subr.mxu0 0.0
    %3568 = vmatpush1.msra.mxu0 0.0
    %3569 = vmatprep.subr.mxu0 0.0
    %3570 = vmatpush1.msra.mxu0 0.0
    %3571 = vmatprep.subr.mxu0 0.0
    %3572 = vmatpush1.msra.mxu0 0.0
    %3573 = vmatprep.subr.mxu0 0.0
    %3574 = vmatpush1.msra.mxu0 0.0
    %3575 = vmatprep.subr.mxu0 0.0
    %3576 = vmatpush1.msra.mxu0 0.0
    %3577 = vmatprep.subr.mxu0 0.0
    %3578 = vmatpush1.msra.mxu0 0.0
    %3579 = vmatprep.subr.mxu0 0.0
    %3580 = vmatpush1.msra.mxu0 0.0
    %3581 = vmatprep.subr.mxu0 0.0
    %3582 = vmatpush1.msra.mxu0 0.0
    %3583 = vmatprep.subr.mxu0 0.0
    %3584 = vmatpush1.msra.mxu0 0.0
    %3585 = vmatprep.subr.mxu0 0.0
    %3586 = vmatpush1.msra.mxu0 0.0
    %3587 = vmatprep.subr.mxu0 0.0
    %3588 = vmatpush1.msra.mxu0 0.0
    %3589 = vmatprep.subr.mxu0 0.0
    %3590 = vmatpush1.msra.mxu0 0.0
    %3591 = vmatprep.subr.mxu0 0.0
    %3592 = vmatpush1.msra.mxu0 0.0
    %3593 = vmatprep.subr.mxu0 0.0
    %3594 = vmatpush1.msra.mxu0 0.0
    %3595 = vmatprep.subr.mxu0 0.0
    %3596 = vmatpush1.msra.mxu0 0.0
    %3597 = vmatprep.subr.mxu0 0.0
    %3598 = vmatpush1.msra.mxu0 0.0
    %3599 = vmatprep.subr.mxu0 0.0
    %3600 = vmatpush1.msra.mxu0 0.0
    %3601 = vmatprep.subr.mxu0 0.0
    %3602 = vmatpush1.msra.mxu0 0.0
    %3603 = vmatprep.mubr.f32.mxu0 0.0
    %3604 = vmatmul.mubr.f32.gmra.mrb[0].mxu0 %v3537
    %v3605 = vpop.f32.mrb[0].mxu0
    %v3606 = vadd.f32 %v62, %v3605
    %v3607 = vpop.f32.mrb[0].mxu0
    %v3608 = vadd.f32 %v66, %v3607
    %3609 = vdwg.mxu0
    %3610 = vmatprep.subr.mxu0 0.0
    %3611 = vmatpush1.msra.mxu0 %v108
    %3612 = vmatprep.subr.mxu0 0.0
    %3613 = vmatpush1.msra.mxu0 0.0
    %3614 = vmatprep.subr.mxu0 0.0
    %3615 = vmatpush1.msra.mxu0 0.0
    %3616 = vmatprep.subr.mxu0 0.0
    %3617 = vmatpush1.msra.mxu0 0.0
    %3618 = vmatprep.subr.mxu0 0.0
    %3619 = vmatpush1.msra.mxu0 0.0
    %3620 = vmatprep.subr.mxu0 0.0
    %3621 = vmatpush1.msra.mxu0 0.0
    %3622 = vmatprep.subr.mxu0 0.0
    %3623 = vmatpush1.msra.mxu0 0.0
    %3624 = vmatprep.subr.mxu0 0.0
    %3625 = vmatpush1.msra.mxu0 0.0
    %3626 = vmatprep.subr.mxu0 0.0
    %3627 = vmatpush1.msra.mxu0 0.0
    %3628 = vmatprep.subr.mxu0 0.0
    %3629 = vmatpush1.msra.mxu0 0.0
    %3630 = vmatprep.subr.mxu0 0.0
    %3631 = vmatpush1.msra.mxu0 0.0
    %3632 = vmatprep.subr.mxu0 0.0
    %3633 = vmatpush1.msra.mxu0 0.0
    %3634 = vmatprep.subr.mxu0 0.0
    %3635 = vmatpush1.msra.mxu0 0.0
    %3636 = vmatprep.subr.mxu0 0.0
    %3637 = vmatpush1.msra.mxu0 0.0
    %3638 = vmatprep.subr.mxu0 0.0
    %3639 = vmatpush1.msra.mxu0 0.0
    %3640 = vmatprep.subr.mxu0 0.0
    %3641 = vmatpush1.msra.mxu0 0.0
    %3642 = vmatprep.subr.mxu0 0.0
    %3643 = vmatpush1.msra.mxu0 0.0
    %3644 = vmatprep.subr.mxu0 0.0
    %3645 = vmatpush1.msra.mxu0 0.0
    %3646 = vmatprep.subr.mxu0 0.0
    %3647 = vmatpush1.msra.mxu0 0.0
    %3648 = vmatprep.subr.mxu0 0.0
    %3649 = vmatpush1.msra.mxu0 0.0
    %3650 = vmatprep.subr.mxu0 0.0
    %3651 = vmatpush1.msra.mxu0 0.0
    %3652 = vmatprep.subr.mxu0 0.0
    %3653 = vmatpush1.msra.mxu0 0.0
    %3654 = vmatprep.subr.mxu0 0.0
    %3655 = vmatpush1.msra.mxu0 0.0
    %3656 = vmatprep.subr.mxu0 0.0
    %3657 = vmatpush1.msra.mxu0 0.0
    %3658 = vmatprep.subr.mxu0 0.0
    %3659 = vmatpush1.msra.mxu0 0.0
    %3660 = vmatprep.subr.mxu0 0.0
    %3661 = vmatpush1.msra.mxu0 0.0
    %3662 = vmatprep.subr.mxu0 0.0
    %3663 = vmatpush1.msra.mxu0 0.0
    %3664 = vmatprep.subr.mxu0 0.0
    %3665 = vmatpush1.msra.mxu0 0.0
    %3666 = vmatprep.subr.mxu0 0.0
    %3667 = vmatpush1.msra.mxu0 0.0
    %3668 = vmatprep.subr.mxu0 0.0
    %3669 = vmatpush1.msra.mxu0 0.0
    %3670 = vmatprep.subr.mxu0 0.0
    %3671 = vmatpush1.msra.mxu0 0.0
    %3672 = vmatprep.subr.mxu0 0.0
    %3673 = vmatpush1.msra.mxu0 0.0
    %3674 = vmatprep.mubr.f32.mxu0 0.0
    %3675 = vmatmul.mubr.f32.gmra.mrb[0].mxu0 %v3537
    %v3676 = vpop.f32.mrb[0].mxu0
    %v3677 = vadd.f32 %v70, %v3676
    %v3678 = vpop.f32.mrb[0].mxu0
    %3679 = vdwg.mxu0
    %v3680 = vadd.f32 %v3606, %v3222
    %v3681 = vxor.u32 %v3680, 2147483648
    %v3682 = vmul.f32 %v3681, 1.442695
    %v3683 = vpow.pop %v3682
    %v3684 = vadd.f32 %v3683, 1.0
    %v3685 = vrcp.pop %v3684
    %v3686 = vmul.f32 1.0, %v3685
    %v3687 = vadd.f32 %v3608, %v3224
    %v3688 = vxor.u32 %v3687, 2147483648
    %v3689 = vmul.f32 %v3688, 1.442695
    %v3690 = vpow.pop %v3689
    %v3691 = vadd.f32 %v3690, 1.0
    %v3692 = vrcp.pop %v3691
    %v3693 = vmul.f32 1.0, %v3692
    %v3694 = vadd.f32 %v3293, %v96
    %v3695 = vmul.f32 %v3686, %v3694
    %v3696 = vadd.f32 %v3677, %v3695
    %v3697 = vtanh.pop %v3696
    %v3698 = vsub.f32 1.0, %v3693
    %v3699 = vmul.f32 %v3698, %v3697
    %v3700 = vmul.f32 %v3693, %v3154
    %v3701 = vadd.f32 %v3699, %v3700
    %3702 = vmatprep.subr.mxu0 %v277
    %3703 = vmatpush1.msra.mxu0 %v276
    %3704 = vmatprep.subr.mxu0 %v283
    %3705 = vmatpush1.msra.mxu0 %v282
    %3706 = vmatprep.subr.mxu0 %v289
    %3707 = vmatpush1.msra.mxu0 %v288
    %3708 = vmatprep.subr.mxu0 %v295
    %3709 = vmatpush1.msra.mxu0 %v294
    %3710 = vmatprep.subr.mxu0 %v301
    %3711 = vmatpush1.msra.mxu0 %v300
    %3712 = vmatprep.subr.mxu0 %v307
    %3713 = vmatpush1.msra.mxu0 %v306
    %3714 = vmatprep.subr.mxu0 %v313
    %3715 = vmatpush1.msra.mxu0 %v312
    %3716 = vmatprep.subr.mxu0 %v319
    %3717 = vmatpush1.msra.mxu0 %v318
    %3718 = vmatprep.subr.mxu0 %v325
    %3719 = vmatpush1.msra.mxu0 %v324
    %3720 = vmatprep.subr.mxu0 %v331
    %3721 = vmatpush1.msra.mxu0 %v330
    %3722 = vmatprep.subr.mxu0 %v337
    %3723 = vmatpush1.msra.mxu0 %v336
    %3724 = vmatprep.subr.mxu0 %v343
    %3725 = vmatpush1.msra.mxu0 %v342
    %3726 = vmatprep.subr.mxu0 %v349
    %3727 = vmatpush1.msra.mxu0 %v348
    %3728 = vmatprep.subr.mxu0 %v355
    %3729 = vmatpush1.msra.mxu0 %v354
    %3730 = vmatprep.subr.mxu0 %v361
    %3731 = vmatpush1.msra.mxu0 %v360
    %3732 = vmatprep.subr.mxu0 %v367
    %3733 = vmatpush1.msra.mxu0 %v366
    %3734 = vmatprep.subr.mxu0 0.0
    %3735 = vmatpush1.msra.mxu0 0.0
    %3736 = vmatprep.subr.mxu0 0.0
    %3737 = vmatpush1.msra.mxu0 0.0
    %3738 = vmatprep.subr.mxu0 0.0
    %3739 = vmatpush1.msra.mxu0 0.0
    %3740 = vmatprep.subr.mxu0 0.0
    %3741 = vmatpush1.msra.mxu0 0.0
    %3742 = vmatprep.subr.mxu0 0.0
    %3743 = vmatpush1.msra.mxu0 0.0
    %3744 = vmatprep.subr.mxu0 0.0
    %3745 = vmatpush1.msra.mxu0 0.0
    %3746 = vmatprep.subr.mxu0 0.0
    %3747 = vmatpush1.msra.mxu0 0.0
    %3748 = vmatprep.subr.mxu0 0.0
    %3749 = vmatpush1.msra.mxu0 0.0
    %3750 = vmatprep.subr.mxu0 0.0
    %3751 = vmatpush1.msra.mxu0 0.0
    %3752 = vmatprep.subr.mxu0 0.0
    %3753 = vmatpush1.msra.mxu0 0.0
    %3754 = vmatprep.subr.mxu0 0.0
    %3755 = vmatpush1.msra.mxu0 0.0
    %3756 = vmatprep.subr.mxu0 0.0
    %3757 = vmatpush1.msra.mxu0 0.0
    %3758 = vmatprep.subr.mxu0 0.0
    %3759 = vmatpush1.msra.mxu0 0.0
    %3760 = vmatprep.subr.mxu0 0.0
    %3761 = vmatpush1.msra.mxu0 0.0
    %3762 = vmatprep.subr.mxu0 0.0
    %3763 = vmatpush1.msra.mxu0 0.0
    %3764 = vmatprep.subr.mxu0 0.0
    %3765 = vmatpush1.msra.mxu0 0.0
    %3766 = vmatprep.mubr.f32.mxu0 0.0
    %3767 = vmatmul.mubr.f32.gmra.mrb[0].mxu0 %v3701
    %v3768 = vpop.f32.mrb[0].mxu0
    %v3769 = vadd.f32 0.0, %v3768
    %v3770 = vpop.f32.mrb[0].mxu0
    %v3771 = vadd.f32 0.0, %v3770
    %3772 = vdwg.mxu0
    %3773 = vmatprep.subr.mxu0 %v279
    %3774 = vmatpush1.msra.mxu0 %v278
    %3775 = vmatprep.subr.mxu0 %v285
    %3776 = vmatpush1.msra.mxu0 %v284
    %3777 = vmatprep.subr.mxu0 %v291
    %3778 = vmatpush1.msra.mxu0 %v290
    %3779 = vmatprep.subr.mxu0 %v297
    %3780 = vmatpush1.msra.mxu0 %v296
    %3781 = vmatprep.subr.mxu0 %v303
    %3782 = vmatpush1.msra.mxu0 %v302
    %3783 = vmatprep.subr.mxu0 %v309
    %3784 = vmatpush1.msra.mxu0 %v308
    %3785 = vmatprep.subr.mxu0 %v315
    %3786 = vmatpush1.msra.mxu0 %v314
    %3787 = vmatprep.subr.mxu0 %v321
    %3788 = vmatpush1.msra.mxu0 %v320
    %3789 = vmatprep.subr.mxu0 %v327
    %3790 = vmatpush1.msra.mxu0 %v326
    %3791 = vmatprep.subr.mxu0 %v333
    %3792 = vmatpush1.msra.mxu0 %v332
    %3793 = vmatprep.subr.mxu0 %v339
    %3794 = vmatpush1.msra.mxu0 %v338
    %3795 = vmatprep.subr.mxu0 %v345
    %3796 = vmatpush1.msra.mxu0 %v344
    %3797 = vmatprep.subr.mxu0 %v351
    %3798 = vmatpush1.msra.mxu0 %v350
    %3799 = vmatprep.subr.mxu0 %v357
    %3800 = vmatpush1.msra.mxu0 %v356
    %3801 = vmatprep.subr.mxu0 %v363
    %3802 = vmatpush1.msra.mxu0 %v362
    %3803 = vmatprep.subr.mxu0 %v369
    %3804 = vmatpush1.msra.mxu0 %v368
    %3805 = vmatprep.subr.mxu0 0.0
    %3806 = vmatpush1.msra.mxu0 0.0
    %3807 = vmatprep.subr.mxu0 0.0
    %3808 = vmatpush1.msra.mxu0 0.0
    %3809 = vmatprep.subr.mxu0 0.0
    %3810 = vmatpush1.msra.mxu0 0.0
    %3811 = vmatprep.subr.mxu0 0.0
    %3812 = vmatpush1.msra.mxu0 0.0
    %3813 = vmatprep.subr.mxu0 0.0
    %3814 = vmatpush1.msra.mxu0 0.0
    %3815 = vmatprep.subr.mxu0 0.0
    %3816 = vmatpush1.msra.mxu0 0.0
    %3817 = vmatprep.subr.mxu0 0.0
    %3818 = vmatpush1.msra.mxu0 0.0
    %3819 = vmatprep.subr.mxu0 0.0
    %3820 = vmatpush1.msra.mxu0 0.0
    %3821 = vmatprep.subr.mxu0 0.0
    %3822 = vmatpush1.msra.mxu0 0.0
    %3823 = vmatprep.subr.mxu0 0.0
    %3824 = vmatpush1.msra.mxu0 0.0
    %3825 = vmatprep.subr.mxu0 0.0
    %3826 = vmatpush1.msra.mxu0 0.0
    %3827 = vmatprep.subr.mxu0 0.0
    %3828 = vmatpush1.msra.mxu0 0.0
    %3829 = vmatprep.subr.mxu0 0.0
    %3830 = vmatpush1.msra.mxu0 0.0
    %3831 = vmatprep.subr.mxu0 0.0
    %3832 = vmatpush1.msra.mxu0 0.0
    %3833 = vmatprep.subr.mxu0 0.0
    %3834 = vmatpush1.msra.mxu0 0.0
    %3835 = vmatprep.subr.mxu0 0.0
    %3836 = vmatpush1.msra.mxu0 0.0
    %3837 = vmatprep.mubr.f32.mxu0 0.0
    %3838 = vmatmul.mubr.f32.gmra.mrb[0].mxu0 %v3701
    %v3839 = vpop.f32.mrb[0].mxu0
    %v3840 = vadd.f32 0.0, %v3839
    %v3841 = vpop.f32.mrb[0].mxu0
    %v3842 = vadd.f32 0.0, %v3841
    %3843 = vdwg.mxu0
    %3844 = vmatprep.subr.mxu0 %v281
    %3845 = vmatpush1.msra.mxu0 %v280
    %3846 = vmatprep.subr.mxu0 %v287
    %3847 = vmatpush1.msra.mxu0 %v286
    %3848 = vmatprep.subr.mxu0 %v293
    %3849 = vmatpush1.msra.mxu0 %v292
    %3850 = vmatprep.subr.mxu0 %v299
    %3851 = vmatpush1.msra.mxu0 %v298
    %3852 = vmatprep.subr.mxu0 %v305
    %3853 = vmatpush1.msra.mxu0 %v304
    %3854 = vmatprep.subr.mxu0 %v311
    %3855 = vmatpush1.msra.mxu0 %v310
    %3856 = vmatprep.subr.mxu0 %v317
    %3857 = vmatpush1.msra.mxu0 %v316
    %3858 = vmatprep.subr.mxu0 %v323
    %3859 = vmatpush1.msra.mxu0 %v322
    %3860 = vmatprep.subr.mxu0 %v329
    %3861 = vmatpush1.msra.mxu0 %v328
    %3862 = vmatprep.subr.mxu0 %v335
    %3863 = vmatpush1.msra.mxu0 %v334
    %3864 = vmatprep.subr.mxu0 %v341
    %3865 = vmatpush1.msra.mxu0 %v340
    %3866 = vmatprep.subr.mxu0 %v347
    %3867 = vmatpush1.msra.mxu0 %v346
    %3868 = vmatprep.subr.mxu0 %v353
    %3869 = vmatpush1.msra.mxu0 %v352
    %3870 = vmatprep.subr.mxu0 %v359
    %3871 = vmatpush1.msra.mxu0 %v358
    %3872 = vmatprep.subr.mxu0 %v365
    %3873 = vmatpush1.msra.mxu0 %v364
    %3874 = vmatprep.subr.mxu0 %v371
    %3875 = vmatpush1.msra.mxu0 %v370
    %3876 = vmatprep.subr.mxu0 0.0
    %3877 = vmatpush1.msra.mxu0 0.0
    %3878 = vmatprep.subr.mxu0 0.0
    %3879 = vmatpush1.msra.mxu0 0.0
    %3880 = vmatprep.subr.mxu0 0.0
    %3881 = vmatpush1.msra.mxu0 0.0
    %3882 = vmatprep.subr.mxu0 0.0
    %3883 = vmatpush1.msra.mxu0 0.0
    %3884 = vmatprep.subr.mxu0 0.0
    %3885 = vmatpush1.msra.mxu0 0.0
    %3886 = vmatprep.subr.mxu0 0.0
    %3887 = vmatpush1.msra.mxu0 0.0
    %3888 = vmatprep.subr.mxu0 0.0
    %3889 = vmatpush1.msra.mxu0 0.0
    %3890 = vmatprep.subr.mxu0 0.0
    %3891 = vmatpush1.msra.mxu0 0.0
    %3892 = vmatprep.subr.mxu0 0.0
    %3893 = vmatpush1.msra.mxu0 0.0
    %3894 = vmatprep.subr.mxu0 0.0
    %3895 = vmatpush1.msra.mxu0 0.0
    %3896 = vmatprep.subr.mxu0 0.0
    %3897 = vmatpush1.msra.mxu0 0.0
    %3898 = vmatprep.subr.mxu0 0.0
    %3899 = vmatpush1.msra.mxu0 0.0
    %3900 = vmatprep.subr.mxu0 0.0
    %3901 = vmatpush1.msra.mxu0 0.0
    %3902 = vmatprep.subr.mxu0 0.0
    %3903 = vmatpush1.msra.mxu0 0.0
    %3904 = vmatprep.subr.mxu0 0.0
    %3905 = vmatpush1.msra.mxu0 0.0
    %3906 = vmatprep.subr.mxu0 0.0
    %3907 = vmatpush1.msra.mxu0 0.0
    %3908 = vmatprep.mubr.f32.mxu0 0.0
    %3909 = vmatmul.mubr.f32.gmra.mrb[0].mxu0 %v3701
    %v3910 = vpop.f32.mrb[0].mxu0
    %v3911 = vadd.f32 0.0, %v3910
    %v3912 = vpop.f32.mrb[0].mxu0
    %v3913 = vadd.f32 0.0, %v3912
    %3914 = vdwg.mxu0
    %v3915 = vadd.f32 %v3842, %v79
    %v3916 = vadd.f32 %v3911, %v83
    %v3917 = vadd.f32 %v3913, %v87
    %3918 = vmatprep.subr.mxu0 %v589
    %3919 = vmatpush1.msra.mxu0 %v588
    %3920 = vmatprep.subr.mxu0 %v592
    %3921 = vmatpush1.msra.mxu0 %v591
    %3922 = vmatprep.subr.mxu0 %v595
    %3923 = vmatpush1.msra.mxu0 %v594
    %3924 = vmatprep.subr.mxu0 %v598
    %3925 = vmatpush1.msra.mxu0 %v597
    %3926 = vmatprep.subr.mxu0 %v601
    %3927 = vmatpush1.msra.mxu0 %v600
    %3928 = vmatprep.subr.mxu0 %v604
    %3929 = vmatpush1.msra.mxu0 %v603
    %3930 = vmatprep.subr.mxu0 %v607
    %3931 = vmatpush1.msra.mxu0 %v606
    %3932 = vmatprep.subr.mxu0 %v610
    %3933 = vmatpush1.msra.mxu0 %v609
    %3934 = vmatprep.subr.mxu0 %v613
    %3935 = vmatpush1.msra.mxu0 %v612
    %3936 = vmatprep.subr.mxu0 %v616
    %3937 = vmatpush1.msra.mxu0 %v615
    %3938 = vmatprep.subr.mxu0 %v619
    %3939 = vmatpush1.msra.mxu0 %v618
    %3940 = vmatprep.subr.mxu0 %v622
    %3941 = vmatpush1.msra.mxu0 %v621
    %3942 = vmatprep.subr.mxu0 %v625
    %3943 = vmatpush1.msra.mxu0 %v624
    %3944 = vmatprep.subr.mxu0 %v628
    %3945 = vmatpush1.msra.mxu0 %v627
    %3946 = vmatprep.subr.mxu0 %v631
    %3947 = vmatpush1.msra.mxu0 %v630
    %3948 = vmatprep.subr.mxu0 %v634
    %3949 = vmatpush1.msra.mxu0 %v633
    %3950 = vmatprep.subr.mxu0 0.0
    %3951 = vmatpush1.msra.mxu0 0.0
    %3952 = vmatprep.subr.mxu0 0.0
    %3953 = vmatpush1.msra.mxu0 0.0
    %3954 = vmatprep.subr.mxu0 0.0
    %3955 = vmatpush1.msra.mxu0 0.0
    %3956 = vmatprep.subr.mxu0 0.0
    %3957 = vmatpush1.msra.mxu0 0.0
    %3958 = vmatprep.subr.mxu0 0.0
    %3959 = vmatpush1.msra.mxu0 0.0
    %3960 = vmatprep.subr.mxu0 0.0
    %3961 = vmatpush1.msra.mxu0 0.0
    %3962 = vmatprep.subr.mxu0 0.0
    %3963 = vmatpush1.msra.mxu0 0.0
    %3964 = vmatprep.subr.mxu0 0.0
    %3965 = vmatpush1.msra.mxu0 0.0
    %3966 = vmatprep.subr.mxu0 0.0
    %3967 = vmatpush1.msra.mxu0 0.0
    %3968 = vmatprep.subr.mxu0 0.0
    %3969 = vmatpush1.msra.mxu0 0.0
    %3970 = vmatprep.subr.mxu0 0.0
    %3971 = vmatpush1.msra.mxu0 0.0
    %3972 = vmatprep.subr.mxu0 0.0
    %3973 = vmatpush1.msra.mxu0 0.0
    %3974 = vmatprep.subr.mxu0 0.0
    %3975 = vmatpush1.msra.mxu0 0.0
    %3976 = vmatprep.subr.mxu0 0.0
    %3977 = vmatpush1.msra.mxu0 0.0
    %3978 = vmatprep.subr.mxu0 0.0
    %3979 = vmatpush1.msra.mxu0 0.0
    %3980 = vmatprep.subr.mxu0 0.0
    %3981 = vmatpush1.msra.mxu0 0.0
    %3982 = vmatprep.mubr.f32.mxu0 0.0
    %3983 = vmatmul.mubr.f32.gmra.mrb[0].mxu0 %v3533
    %v3984 = vpop.f32.mrb[0].mxu0
    %v3985 = vadd.f32 0.0, %v3984
    %v3986 = vpop.f32.mrb[0].mxu0
    %v3987 = vadd.f32 0.0, %v3986
    %3988 = vdwg.mxu0
    %3989 = vmatprep.subr.mxu0 0.0
    %3990 = vmatpush1.msra.mxu0 %v590
    %3991 = vmatprep.subr.mxu0 0.0
    %3992 = vmatpush1.msra.mxu0 %v593
    %3993 = vmatprep.subr.mxu0 0.0
    %3994 = vmatpush1.msra.mxu0 %v596
    %3995 = vmatprep.subr.mxu0 0.0
    %3996 = vmatpush1.msra.mxu0 %v599
    %3997 = vmatprep.subr.mxu0 0.0
    %3998 = vmatpush1.msra.mxu0 %v602
    %3999 = vmatprep.subr.mxu0 0.0
    %4000 = vmatpush1.msra.mxu0 %v605
    %4001 = vmatprep.subr.mxu0 0.0
    %4002 = vmatpush1.msra.mxu0 %v608
    %4003 = vmatprep.subr.mxu0 0.0
    %4004 = vmatpush1.msra.mxu0 %v611
    %4005 = vmatprep.subr.mxu0 0.0
    %4006 = vmatpush1.msra.mxu0 %v614
    %4007 = vmatprep.subr.mxu0 0.0
    %4008 = vmatpush1.msra.mxu0 %v617
    %4009 = vmatprep.subr.mxu0 0.0
    %4010 = vmatpush1.msra.mxu0 %v620
    %4011 = vmatprep.subr.mxu0 0.0
    %4012 = vmatpush1.msra.mxu0 %v623
    %4013 = vmatprep.subr.mxu0 0.0
    %4014 = vmatpush1.msra.mxu0 %v626
    %4015 = vmatprep.subr.mxu0 0.0
    %4016 = vmatpush1.msra.mxu0 %v629
    %4017 = vmatprep.subr.mxu0 0.0
    %4018 = vmatpush1.msra.mxu0 %v632
    %4019 = vmatprep.subr.mxu0 0.0
    %4020 = vmatpush1.msra.mxu0 %v635
    %4021 = vmatprep.subr.mxu0 0.0
    %4022 = vmatpush1.msra.mxu0 0.0
    %4023 = vmatprep.subr.mxu0 0.0
    %4024 = vmatpush1.msra.mxu0 0.0
    %4025 = vmatprep.subr.mxu0 0.0
    %4026 = vmatpush1.msra.mxu0 0.0
    %4027 = vmatprep.subr.mxu0 0.0
    %4028 = vmatpush1.msra.mxu0 0.0
    %4029 = vmatprep.subr.mxu0 0.0
    %4030 = vmatpush1.msra.mxu0 0.0
    %4031 = vmatprep.subr.mxu0 0.0
    %4032 = vmatpush1.msra.mxu0 0.0
    %4033 = vmatprep.subr.mxu0 0.0
    %4034 = vmatpush1.msra.mxu0 0.0
    %4035 = vmatprep.subr.mxu0 0.0
    %4036 = vmatpush1.msra.mxu0 0.0
    %4037 = vmatprep.subr.mxu0 0.0
    %4038 = vmatpush1.msra.mxu0 0.0
    %4039 = vmatprep.subr.mxu0 0.0
    %4040 = vmatpush1.msra.mxu0 0.0
    %4041 = vmatprep.subr.mxu0 0.0
    %4042 = vmatpush1.msra.mxu0 0.0
    %4043 = vmatprep.subr.mxu0 0.0
    %4044 = vmatpush1.msra.mxu0 0.0
    %4045 = vmatprep.subr.mxu0 0.0
    %4046 = vmatpush1.msra.mxu0 0.0
    %4047 = vmatprep.subr.mxu0 0.0
    %4048 = vmatpush1.msra.mxu0 0.0
    %4049 = vmatprep.subr.mxu0 0.0
    %4050 = vmatpush1.msra.mxu0 0.0
    %4051 = vmatprep.subr.mxu0 0.0
    %4052 = vmatpush1.msra.mxu0 0.0
    %4053 = vmatprep.mubr.f32.mxu0 0.0
    %4054 = vmatmul.mubr.f32.gmra.mrb[0].mxu0 %v3533
    %v4055 = vpop.f32.mrb[0].mxu0
    %v4056 = vadd.f32 0.0, %v4055
    %v4057 = vpop.f32.mrb[0].mxu0
    %4058 = vdwg.mxu0
    %v4059 = vadd.f32 %v3915, %v3985
    %v4060 = vxor.u32 %v4059, 2147483648
    %v4061 = vmul.f32 %v4060, 1.442695
    %v4062 = vpow.pop %v4061
    %v4063 = vadd.f32 %v4062, 1.0
    %v4064 = vrcp.pop %v4063
    %v4065 = vmul.f32 1.0, %v4064
    %v4066 = vadd.f32 %v3916, %v3987
    %v4067 = vxor.u32 %v4066, 2147483648
    %v4068 = vmul.f32 %v4067, 1.442695
    %v4069 = vpow.pop %v4068
    %v4070 = vadd.f32 %v4069, 1.0
    %v4071 = vrcp.pop %v4070
    %v4072 = vmul.f32 1.0, %v4071
    %v4073 = vadd.f32 %v4056, %v103
    %v4074 = vmul.f32 %v4065, %v4073
    %v4075 = vadd.f32 %v3917, %v4074
    %v4076 = vtanh.pop %v4075
    %v4077 = vsub.f32 1.0, %v4072
    %v4078 = vmul.f32 %v4077, %v4076
    %v4079 = vmul.f32 %v4072, %v3533
    %v4080 = vadd.f32 %v4078, %v4079
    %s4081 = scalar_lea.vmem %s0, 56
    %v4082 = vld [vmem:[%s4081] sm:$0xff]
    %v4084 = vsel %vm109, %v4082, 0
    %4086 = vmatprep.subr.mxu0 %v107
    %4087 = vmatpush1.msra.mxu0 %v106
    %4088 = vmatprep.subr.mxu0 0.0
    %4089 = vmatpush1.msra.mxu0 0.0
    %4090 = vmatprep.subr.mxu0 0.0
    %4091 = vmatpush1.msra.mxu0 0.0
    %4092 = vmatprep.subr.mxu0 0.0
    %4093 = vmatpush1.msra.mxu0 0.0
    %4094 = vmatprep.subr.mxu0 0.0
    %4095 = vmatpush1.msra.mxu0 0.0
    %4096 = vmatprep.subr.mxu0 0.0
    %4097 = vmatpush1.msra.mxu0 0.0
    %4098 = vmatprep.subr.mxu0 0.0
    %4099 = vmatpush1.msra.mxu0 0.0
    %4100 = vmatprep.subr.mxu0 0.0
    %4101 = vmatpush1.msra.mxu0 0.0
    %4102 = vmatprep.subr.mxu0 0.0
    %4103 = vmatpush1.msra.mxu0 0.0
    %4104 = vmatprep.subr.mxu0 0.0
    %4105 = vmatpush1.msra.mxu0 0.0
    %4106 = vmatprep.subr.mxu0 0.0
    %4107 = vmatpush1.msra.mxu0 0.0
    %4108 = vmatprep.subr.mxu0 0.0
    %4109 = vmatpush1.msra.mxu0 0.0
    %4110 = vmatprep.subr.mxu0 0.0
    %4111 = vmatpush1.msra.mxu0 0.0
    %4112 = vmatprep.subr.mxu0 0.0
    %4113 = vmatpush1.msra.mxu0 0.0
    %4114 = vmatprep.subr.mxu0 0.0
    %4115 = vmatpush1.msra.mxu0 0.0
    %4116 = vmatprep.subr.mxu0 0.0
    %4117 = vmatpush1.msra.mxu0 0.0
    %4118 = vmatprep.subr.mxu0 0.0
    %4119 = vmatpush1.msra.mxu0 0.0
    %4120 = vmatprep.subr.mxu0 0.0
    %4121 = vmatpush1.msra.mxu0 0.0
    %4122 = vmatprep.subr.mxu0 0.0
    %4123 = vmatpush1.msra.mxu0 0.0
    %4124 = vmatprep.subr.mxu0 0.0
    %4125 = vmatpush1.msra.mxu0 0.0
    %4126 = vmatprep.subr.mxu0 0.0
    %4127 = vmatpush1.msra.mxu0 0.0
    %4128 = vmatprep.subr.mxu0 0.0
    %4129 = vmatpush1.msra.mxu0 0.0
    %4130 = vmatprep.subr.mxu0 0.0
    %4131 = vmatpush1.msra.mxu0 0.0
    %4132 = vmatprep.subr.mxu0 0.0
    %4133 = vmatpush1.msra.mxu0 0.0
    %4134 = vmatprep.subr.mxu0 0.0
    %4135 = vmatpush1.msra.mxu0 0.0
    %4136 = vmatprep.subr.mxu0 0.0
    %4137 = vmatpush1.msra.mxu0 0.0
    %4138 = vmatprep.subr.mxu0 0.0
    %4139 = vmatpush1.msra.mxu0 0.0
    %4140 = vmatprep.subr.mxu0 0.0
    %4141 = vmatpush1.msra.mxu0 0.0
    %4142 = vmatprep.subr.mxu0 0.0
    %4143 = vmatpush1.msra.mxu0 0.0
    %4144 = vmatprep.subr.mxu0 0.0
    %4145 = vmatpush1.msra.mxu0 0.0
    %4146 = vmatprep.subr.mxu0 0.0
    %4147 = vmatpush1.msra.mxu0 0.0
    %4148 = vmatprep.subr.mxu0 0.0
    %4149 = vmatpush1.msra.mxu0 0.0
    %4150 = vmatprep.mubr.f32.mxu0 0.0
    %4151 = vmatmul.mubr.f32.gmra.mrb[0].mxu0 %v4084
    %v4152 = vpop.f32.mrb[0].mxu0
    %v4153 = vadd.f32 %v62, %v4152
    %v4154 = vpop.f32.mrb[0].mxu0
    %v4155 = vadd.f32 %v66, %v4154
    %4156 = vdwg.mxu0
    %4157 = vmatprep.subr.mxu0 0.0
    %4158 = vmatpush1.msra.mxu0 %v108
    %4159 = vmatprep.subr.mxu0 0.0
    %4160 = vmatpush1.msra.mxu0 0.0
    %4161 = vmatprep.subr.mxu0 0.0
    %4162 = vmatpush1.msra.mxu0 0.0
    %4163 = vmatprep.subr.mxu0 0.0
    %4164 = vmatpush1.msra.mxu0 0.0
    %4165 = vmatprep.subr.mxu0 0.0
    %4166 = vmatpush1.msra.mxu0 0.0
    %4167 = vmatprep.subr.mxu0 0.0
    %4168 = vmatpush1.msra.mxu0 0.0
    %4169 = vmatprep.subr.mxu0 0.0
    %4170 = vmatpush1.msra.mxu0 0.0
    %4171 = vmatprep.subr.mxu0 0.0
    %4172 = vmatpush1.msra.mxu0 0.0
    %4173 = vmatprep.subr.mxu0 0.0
    %4174 = vmatpush1.msra.mxu0 0.0
    %4175 = vmatprep.subr.mxu0 0.0
    %4176 = vmatpush1.msra.mxu0 0.0
    %4177 = vmatprep.subr.mxu0 0.0
    %4178 = vmatpush1.msra.mxu0 0.0
    %4179 = vmatprep.subr.mxu0 0.0
    %4180 = vmatpush1.msra.mxu0 0.0
    %4181 = vmatprep.subr.mxu0 0.0
    %4182 = vmatpush1.msra.mxu0 0.0
    %4183 = vmatprep.subr.mxu0 0.0
    %4184 = vmatpush1.msra.mxu0 0.0
    %4185 = vmatprep.subr.mxu0 0.0
    %4186 = vmatpush1.msra.mxu0 0.0
    %4187 = vmatprep.subr.mxu0 0.0
    %4188 = vmatpush1.msra.mxu0 0.0
    %4189 = vmatprep.subr.mxu0 0.0
    %4190 = vmatpush1.msra.mxu0 0.0
    %4191 = vmatprep.subr.mxu0 0.0
    %4192 = vmatpush1.msra.mxu0 0.0
    %4193 = vmatprep.subr.mxu0 0.0
    %4194 = vmatpush1.msra.mxu0 0.0
    %4195 = vmatprep.subr.mxu0 0.0
    %4196 = vmatpush1.msra.mxu0 0.0
    %4197 = vmatprep.subr.mxu0 0.0
    %4198 = vmatpush1.msra.mxu0 0.0
    %4199 = vmatprep.subr.mxu0 0.0
    %4200 = vmatpush1.msra.mxu0 0.0
    %4201 = vmatprep.subr.mxu0 0.0
    %4202 = vmatpush1.msra.mxu0 0.0
    %4203 = vmatprep.subr.mxu0 0.0
    %4204 = vmatpush1.msra.mxu0 0.0
    %4205 = vmatprep.subr.mxu0 0.0
    %4206 = vmatpush1.msra.mxu0 0.0
    %4207 = vmatprep.subr.mxu0 0.0
    %4208 = vmatpush1.msra.mxu0 0.0
    %4209 = vmatprep.subr.mxu0 0.0
    %4210 = vmatpush1.msra.mxu0 0.0
    %4211 = vmatprep.subr.mxu0 0.0
    %4212 = vmatpush1.msra.mxu0 0.0
    %4213 = vmatprep.subr.mxu0 0.0
    %4214 = vmatpush1.msra.mxu0 0.0
    %4215 = vmatprep.subr.mxu0 0.0
    %4216 = vmatpush1.msra.mxu0 0.0
    %4217 = vmatprep.subr.mxu0 0.0
    %4218 = vmatpush1.msra.mxu0 0.0
    %4219 = vmatprep.subr.mxu0 0.0
    %4220 = vmatpush1.msra.mxu0 0.0
    %4221 = vmatprep.mubr.f32.mxu0 0.0
    %4222 = vmatmul.mubr.f32.gmra.mrb[0].mxu0 %v4084
    %v4223 = vpop.f32.mrb[0].mxu0
    %v4224 = vadd.f32 %v70, %v4223
    %v4225 = vpop.f32.mrb[0].mxu0
    %4226 = vdwg.mxu0
    %v4227 = vadd.f32 %v4153, %v3769
    %v4228 = vxor.u32 %v4227, 2147483648
    %v4229 = vmul.f32 %v4228, 1.442695
    %v4230 = vpow.pop %v4229
    %v4231 = vadd.f32 %v4230, 1.0
    %v4232 = vrcp.pop %v4231
    %v4233 = vmul.f32 1.0, %v4232
    %v4234 = vadd.f32 %v4155, %v3771
    %v4235 = vxor.u32 %v4234, 2147483648
    %v4236 = vmul.f32 %v4235, 1.442695
    %v4237 = vpow.pop %v4236
    %v4238 = vadd.f32 %v4237, 1.0
    %v4239 = vrcp.pop %v4238
    %v4240 = vmul.f32 1.0, %v4239
    %v4241 = vadd.f32 %v3840, %v96
    %v4242 = vmul.f32 %v4233, %v4241
    %v4243 = vadd.f32 %v4224, %v4242
    %v4244 = vtanh.pop %v4243
    %v4245 = vsub.f32 1.0, %v4240
    %v4246 = vmul.f32 %v4245, %v4244
    %v4247 = vmul.f32 %v4240, %v3701
    %v4248 = vadd.f32 %v4246, %v4247
    %4249 = vmatprep.subr.mxu0 %v279
    %4250 = vmatpush1.msra.mxu0 %v278
    %4251 = vmatprep.subr.mxu0 %v285
    %4252 = vmatpush1.msra.mxu0 %v284
    %4253 = vmatprep.subr.mxu0 %v291
    %4254 = vmatpush1.msra.mxu0 %v290
    %4255 = vmatprep.subr.mxu0 %v297
    %4256 = vmatpush1.msra.mxu0 %v296
    %4257 = vmatprep.subr.mxu0 %v303
    %4258 = vmatpush1.msra.mxu0 %v302
    %4259 = vmatprep.subr.mxu0 %v309
    %4260 = vmatpush1.msra.mxu0 %v308
    %4261 = vmatprep.subr.mxu0 %v315
    %4262 = vmatpush1.msra.mxu0 %v314
    %4263 = vmatprep.subr.mxu0 %v321
    %4264 = vmatpush1.msra.mxu0 %v320
    %4265 = vmatprep.subr.mxu0 %v327
    %4266 = vmatpush1.msra.mxu0 %v326
    %4267 = vmatprep.subr.mxu0 %v333
    %4268 = vmatpush1.msra.mxu0 %v332
    %4269 = vmatprep.subr.mxu0 %v339
    %4270 = vmatpush1.msra.mxu0 %v338
    %4271 = vmatprep.subr.mxu0 %v345
    %4272 = vmatpush1.msra.mxu0 %v344
    %4273 = vmatprep.subr.mxu0 %v351
    %4274 = vmatpush1.msra.mxu0 %v350
    %4275 = vmatprep.subr.mxu0 %v357
    %4276 = vmatpush1.msra.mxu0 %v356
    %4277 = vmatprep.subr.mxu0 %v363
    %4278 = vmatpush1.msra.mxu0 %v362
    %4279 = vmatprep.subr.mxu0 %v369
    %4280 = vmatpush1.msra.mxu0 %v368
    %4281 = vmatprep.subr.mxu0 0.0
    %4282 = vmatpush1.msra.mxu0 0.0
    %4283 = vmatprep.subr.mxu0 0.0
    %4284 = vmatpush1.msra.mxu0 0.0
    %4285 = vmatprep.subr.mxu0 0.0
    %4286 = vmatpush1.msra.mxu0 0.0
    %4287 = vmatprep.subr.mxu0 0.0
    %4288 = vmatpush1.msra.mxu0 0.0
    %4289 = vmatprep.subr.mxu0 0.0
    %4290 = vmatpush1.msra.mxu0 0.0
    %4291 = vmatprep.subr.mxu0 0.0
    %4292 = vmatpush1.msra.mxu0 0.0
    %4293 = vmatprep.subr.mxu0 0.0
    %4294 = vmatpush1.msra.mxu0 0.0
    %4295 = vmatprep.subr.mxu0 0.0
    %4296 = vmatpush1.msra.mxu0 0.0
    %4297 = vmatprep.subr.mxu0 0.0
    %4298 = vmatpush1.msra.mxu0 0.0
    %4299 = vmatprep.subr.mxu0 0.0
    %4300 = vmatpush1.msra.mxu0 0.0
    %4301 = vmatprep.subr.mxu0 0.0
    %4302 = vmatpush1.msra.mxu0 0.0
    %4303 = vmatprep.subr.mxu0 0.0
    %4304 = vmatpush1.msra.mxu0 0.0
    %4305 = vmatprep.subr.mxu0 0.0
    %4306 = vmatpush1.msra.mxu0 0.0
    %4307 = vmatprep.subr.mxu0 0.0
    %4308 = vmatpush1.msra.mxu0 0.0
    %4309 = vmatprep.subr.mxu0 0.0
    %4310 = vmatpush1.msra.mxu0 0.0
    %4311 = vmatprep.subr.mxu0 0.0
    %4312 = vmatpush1.msra.mxu0 0.0
    %4313 = vmatprep.mubr.f32.mxu0 0.0
    %4314 = vmatmul.mubr.f32.gmra.mrb[0].mxu0 %v4248
    %v4315 = vpop.f32.mrb[0].mxu0
    %v4316 = vpop.f32.mrb[0].mxu0
    %v4317 = vadd.f32 0.0, %v4316
    %4318 = vdwg.mxu0
    %4319 = vmatprep.subr.mxu0 %v281
    %4320 = vmatpush1.msra.mxu0 %v280
    %4321 = vmatprep.subr.mxu0 %v287
    %4322 = vmatpush1.msra.mxu0 %v286
    %4323 = vmatprep.subr.mxu0 %v293
    %4324 = vmatpush1.msra.mxu0 %v292
    %4325 = vmatprep.subr.mxu0 %v299
    %4326 = vmatpush1.msra.mxu0 %v298
    %4327 = vmatprep.subr.mxu0 %v305
    %4328 = vmatpush1.msra.mxu0 %v304
    %4329 = vmatprep.subr.mxu0 %v311
    %4330 = vmatpush1.msra.mxu0 %v310
    %4331 = vmatprep.subr.mxu0 %v317
    %4332 = vmatpush1.msra.mxu0 %v316
    %4333 = vmatprep.subr.mxu0 %v323
    %4334 = vmatpush1.msra.mxu0 %v322
    %4335 = vmatprep.subr.mxu0 %v329
    %4336 = vmatpush1.msra.mxu0 %v328
    %4337 = vmatprep.subr.mxu0 %v335
    %4338 = vmatpush1.msra.mxu0 %v334
    %4339 = vmatprep.subr.mxu0 %v341
    %4340 = vmatpush1.msra.mxu0 %v340
    %4341 = vmatprep.subr.mxu0 %v347
    %4342 = vmatpush1.msra.mxu0 %v346
    %4343 = vmatprep.subr.mxu0 %v353
    %4344 = vmatpush1.msra.mxu0 %v352
    %4345 = vmatprep.subr.mxu0 %v359
    %4346 = vmatpush1.msra.mxu0 %v358
    %4347 = vmatprep.subr.mxu0 %v365
    %4348 = vmatpush1.msra.mxu0 %v364
    %4349 = vmatprep.subr.mxu0 %v371
    %4350 = vmatpush1.msra.mxu0 %v370
    %4351 = vmatprep.subr.mxu0 0.0
    %4352 = vmatpush1.msra.mxu0 0.0
    %4353 = vmatprep.subr.mxu0 0.0
    %4354 = vmatpush1.msra.mxu0 0.0
    %4355 = vmatprep.subr.mxu0 0.0
    %4356 = vmatpush1.msra.mxu0 0.0
    %4357 = vmatprep.subr.mxu0 0.0
    %4358 = vmatpush1.msra.mxu0 0.0
    %4359 = vmatprep.subr.mxu0 0.0
    %4360 = vmatpush1.msra.mxu0 0.0
    %4361 = vmatprep.subr.mxu0 0.0
    %4362 = vmatpush1.msra.mxu0 0.0
    %4363 = vmatprep.subr.mxu0 0.0
    %4364 = vmatpush1.msra.mxu0 0.0
    %4365 = vmatprep.subr.mxu0 0.0
    %4366 = vmatpush1.msra.mxu0 0.0
    %4367 = vmatprep.subr.mxu0 0.0
    %4368 = vmatpush1.msra.mxu0 0.0
    %4369 = vmatprep.subr.mxu0 0.0
    %4370 = vmatpush1.msra.mxu0 0.0
    %4371 = vmatprep.subr.mxu0 0.0
    %4372 = vmatpush1.msra.mxu0 0.0
    %4373 = vmatprep.subr.mxu0 0.0
    %4374 = vmatpush1.msra.mxu0 0.0
    %4375 = vmatprep.subr.mxu0 0.0
    %4376 = vmatpush1.msra.mxu0 0.0
    %4377 = vmatprep.subr.mxu0 0.0
    %4378 = vmatpush1.msra.mxu0 0.0
    %4379 = vmatprep.subr.mxu0 0.0
    %4380 = vmatpush1.msra.mxu0 0.0
    %4381 = vmatprep.subr.mxu0 0.0
    %4382 = vmatpush1.msra.mxu0 0.0
    %4383 = vmatprep.mubr.f32.mxu0 0.0
    %4384 = vmatmul.mubr.f32.gmra.mrb[0].mxu0 %v4248
    %v4385 = vpop.f32.mrb[0].mxu0
    %v4386 = vadd.f32 0.0, %v4385
    %v4387 = vpop.f32.mrb[0].mxu0
    %v4388 = vadd.f32 0.0, %v4387
    %4389 = vdwg.mxu0
    %v4390 = vadd.f32 %v4317, %v79
    %v4391 = vadd.f32 %v4386, %v83
    %v4392 = vadd.f32 %v4388, %v87
    %4393 = vmatprep.subr.mxu0 %v589
    %4394 = vmatpush1.msra.mxu0 %v588
    %4395 = vmatprep.subr.mxu0 %v592
    %4396 = vmatpush1.msra.mxu0 %v591
    %4397 = vmatprep.subr.mxu0 %v595
    %4398 = vmatpush1.msra.mxu0 %v594
    %4399 = vmatprep.subr.mxu0 %v598
    %4400 = vmatpush1.msra.mxu0 %v597
    %4401 = vmatprep.subr.mxu0 %v601
    %4402 = vmatpush1.msra.mxu0 %v600
    %4403 = vmatprep.subr.mxu0 %v604
    %4404 = vmatpush1.msra.mxu0 %v603
    %4405 = vmatprep.subr.mxu0 %v607
    %4406 = vmatpush1.msra.mxu0 %v606
    %4407 = vmatprep.subr.mxu0 %v610
    %4408 = vmatpush1.msra.mxu0 %v609
    %4409 = vmatprep.subr.mxu0 %v613
    %4410 = vmatpush1.msra.mxu0 %v612
    %4411 = vmatprep.subr.mxu0 %v616
    %4412 = vmatpush1.msra.mxu0 %v615
    %4413 = vmatprep.subr.mxu0 %v619
    %4414 = vmatpush1.msra.mxu0 %v618
    %4415 = vmatprep.subr.mxu0 %v622
    %4416 = vmatpush1.msra.mxu0 %v621
    %4417 = vmatprep.subr.mxu0 %v625
    %4418 = vmatpush1.msra.mxu0 %v624
    %4419 = vmatprep.subr.mxu0 %v628
    %4420 = vmatpush1.msra.mxu0 %v627
    %4421 = vmatprep.subr.mxu0 %v631
    %4422 = vmatpush1.msra.mxu0 %v630
    %4423 = vmatprep.subr.mxu0 %v634
    %4424 = vmatpush1.msra.mxu0 %v633
    %4425 = vmatprep.subr.mxu0 0.0
    %4426 = vmatpush1.msra.mxu0 0.0
    %4427 = vmatprep.subr.mxu0 0.0
    %4428 = vmatpush1.msra.mxu0 0.0
    %4429 = vmatprep.subr.mxu0 0.0
    %4430 = vmatpush1.msra.mxu0 0.0
    %4431 = vmatprep.subr.mxu0 0.0
    %4432 = vmatpush1.msra.mxu0 0.0
    %4433 = vmatprep.subr.mxu0 0.0
    %4434 = vmatpush1.msra.mxu0 0.0
    %4435 = vmatprep.subr.mxu0 0.0
    %4436 = vmatpush1.msra.mxu0 0.0
    %4437 = vmatprep.subr.mxu0 0.0
    %4438 = vmatpush1.msra.mxu0 0.0
    %4439 = vmatprep.subr.mxu0 0.0
    %4440 = vmatpush1.msra.mxu0 0.0
    %4441 = vmatprep.subr.mxu0 0.0
    %4442 = vmatpush1.msra.mxu0 0.0
    %4443 = vmatprep.subr.mxu0 0.0
    %4444 = vmatpush1.msra.mxu0 0.0
    %4445 = vmatprep.subr.mxu0 0.0
    %4446 = vmatpush1.msra.mxu0 0.0
    %4447 = vmatprep.subr.mxu0 0.0
    %4448 = vmatpush1.msra.mxu0 0.0
    %4449 = vmatprep.subr.mxu0 0.0
    %4450 = vmatpush1.msra.mxu0 0.0
    %4451 = vmatprep.subr.mxu0 0.0
    %4452 = vmatpush1.msra.mxu0 0.0
    %4453 = vmatprep.subr.mxu0 0.0
    %4454 = vmatpush1.msra.mxu0 0.0
    %4455 = vmatprep.subr.mxu0 0.0
    %4456 = vmatpush1.msra.mxu0 0.0
    %4457 = vmatprep.mubr.f32.mxu0 0.0
    %4458 = vmatmul.mubr.f32.gmra.mrb[0].mxu0 %v4080
    %v4459 = vpop.f32.mrb[0].mxu0
    %v4460 = vadd.f32 0.0, %v4459
    %v4461 = vpop.f32.mrb[0].mxu0
    %v4462 = vadd.f32 0.0, %v4461
    %4463 = vdwg.mxu0
    %4464 = vmatprep.subr.mxu0 0.0
    %4465 = vmatpush1.msra.mxu0 %v590
    %4466 = vmatprep.subr.mxu0 0.0
    %4467 = vmatpush1.msra.mxu0 %v593
    %4468 = vmatprep.subr.mxu0 0.0
    %4469 = vmatpush1.msra.mxu0 %v596
    %4470 = vmatprep.subr.mxu0 0.0
    %4471 = vmatpush1.msra.mxu0 %v599
    %4472 = vmatprep.subr.mxu0 0.0
    %4473 = vmatpush1.msra.mxu0 %v602
    %4474 = vmatprep.subr.mxu0 0.0
    %4475 = vmatpush1.msra.mxu0 %v605
    %4476 = vmatprep.subr.mxu0 0.0
    %4477 = vmatpush1.msra.mxu0 %v608
    %4478 = vmatprep.subr.mxu0 0.0
    %4479 = vmatpush1.msra.mxu0 %v611
    %4480 = vmatprep.subr.mxu0 0.0
    %4481 = vmatpush1.msra.mxu0 %v614
    %4482 = vmatprep.subr.mxu0 0.0
    %4483 = vmatpush1.msra.mxu0 %v617
    %4484 = vmatprep.subr.mxu0 0.0
    %4485 = vmatpush1.msra.mxu0 %v620
    %4486 = vmatprep.subr.mxu0 0.0
    %4487 = vmatpush1.msra.mxu0 %v623
    %4488 = vmatprep.subr.mxu0 0.0
    %4489 = vmatpush1.msra.mxu0 %v626
    %4490 = vmatprep.subr.mxu0 0.0
    %4491 = vmatpush1.msra.mxu0 %v629
    %4492 = vmatprep.subr.mxu0 0.0
    %4493 = vmatpush1.msra.mxu0 %v632
    %4494 = vmatprep.subr.mxu0 0.0
    %4495 = vmatpush1.msra.mxu0 %v635
    %4496 = vmatprep.subr.mxu0 0.0
    %4497 = vmatpush1.msra.mxu0 0.0
    %4498 = vmatprep.subr.mxu0 0.0
    %4499 = vmatpush1.msra.mxu0 0.0
    %4500 = vmatprep.subr.mxu0 0.0
    %4501 = vmatpush1.msra.mxu0 0.0
    %4502 = vmatprep.subr.mxu0 0.0
    %4503 = vmatpush1.msra.mxu0 0.0
    %4504 = vmatprep.subr.mxu0 0.0
    %4505 = vmatpush1.msra.mxu0 0.0
    %4506 = vmatprep.subr.mxu0 0.0
    %4507 = vmatpush1.msra.mxu0 0.0
    %4508 = vmatprep.subr.mxu0 0.0
    %4509 = vmatpush1.msra.mxu0 0.0
    %4510 = vmatprep.subr.mxu0 0.0
    %4511 = vmatpush1.msra.mxu0 0.0
    %4512 = vmatprep.subr.mxu0 0.0
    %4513 = vmatpush1.msra.mxu0 0.0
    %4514 = vmatprep.subr.mxu0 0.0
    %4515 = vmatpush1.msra.mxu0 0.0
    %4516 = vmatprep.subr.mxu0 0.0
    %4517 = vmatpush1.msra.mxu0 0.0
    %4518 = vmatprep.subr.mxu0 0.0
    %4519 = vmatpush1.msra.mxu0 0.0
    %4520 = vmatprep.subr.mxu0 0.0
    %4521 = vmatpush1.msra.mxu0 0.0
    %4522 = vmatprep.subr.mxu0 0.0
    %4523 = vmatpush1.msra.mxu0 0.0
    %4524 = vmatprep.subr.mxu0 0.0
    %4525 = vmatpush1.msra.mxu0 0.0
    %4526 = vmatprep.subr.mxu0 0.0
    %4527 = vmatpush1.msra.mxu0 0.0
    %4528 = vmatprep.mubr.f32.mxu0 0.0
    %4529 = vmatmul.mubr.f32.gmra.mrb[0].mxu0 %v4080
    %v4530 = vpop.f32.mrb[0].mxu0
    %v4531 = vadd.f32 0.0, %v4530
    %v4532 = vpop.f32.mrb[0].mxu0
    %4533 = vdwg.mxu0
    %v4534 = vadd.f32 %v4390, %v4460
    %v4535 = vxor.u32 %v4534, 2147483648
    %v4536 = vmul.f32 %v4535, 1.442695
    %v4537 = vpow.pop %v4536
    %v4538 = vadd.f32 %v4537, 1.0
    %v4539 = vrcp.pop %v4538
    %v4540 = vmul.f32 1.0, %v4539
    %v4541 = vadd.f32 %v4391, %v4462
    %v4542 = vxor.u32 %v4541, 2147483648
    %v4543 = vmul.f32 %v4542, 1.442695
    %v4544 = vpow.pop %v4543
    %v4545 = vadd.f32 %v4544, 1.0
    %v4546 = vrcp.pop %v4545
    %v4547 = vmul.f32 1.0, %v4546
    %v4548 = vadd.f32 %v4531, %v103
    %v4549 = vmul.f32 %v4540, %v4548
    %v4550 = vadd.f32 %v4392, %v4549
    %v4551 = vtanh.pop %v4550
    %v4552 = vsub.f32 1.0, %v4547
    %v4553 = vmul.f32 %v4552, %v4551
    %v4554 = vmul.f32 %v4547, %v4080
    %v4555 = vadd.f32 %v4553, %v4554
    %4556 = vst [vmem:[%s8] sm:$0xff] %v4555
    // Predicated region
    $region42: #{gru_model_forward.1} parent=1 // pred_check
      _
    $region43: #{gru_model_forward.1} parent=1 // pred_check_branch
      %4558 = sbr.rel (0) target = $region45
    $region44: #{gru_model_forward.1} parent=1 // pred_region
      _
    $region45: #{gru_model_forward.1} parent=1 // pred_fallthru
      _
    // Predicated region
    $region46: #{gru_model_forward.1} parent=1 // pred_check
      _
    $region47: #{gru_model_forward.1} parent=1 // pred_check_branch
      %4560 = sbr.rel (0) target = $region49
    $region48: #{gru_model_forward.1} parent=1 // pred_region
      _
    $region49: #{gru_model_forward.1} parent=1 // pred_fallthru
      _
    %4561 = vsyncpa [#allocation3], 1
    %4562 = vsyncpa [#allocation5], 1

</llo_original>
